<compile_context>
chip_gen: v7x
topology: tpu7x:2x2x1
jax: 0.10.0
libtpu: 0.0.40
codegen_flags: <defaults>
</compile_context>

<pallas_src>
import math
from functools import partial

import numpy as np

import jax
import jax.numpy as jnp
from jax.experimental import pallas as pl
from jax.experimental.pallas import tpu as pltpu


# ----------------------------------------------------------------------------
# Parameter packing: conv -> dense matrix on the flattened (h, w, c) layout
# ----------------------------------------------------------------------------
def _conv_to_dense(w_hwio, bias, hin, win):
    """Lower a 3x3 / stride-2 / pad-1 conv to a dense matrix + bias row.

    For a per-sample activation x_flat[(h*Win + w)*Cin + c] the conv output is
      y_flat[(ho*Wout + wo)*Cout + co] = x_flat @ dense + b
    Zero padding and the stride-2 gathers are folded into `dense`.
    """
    w = np.asarray(w_hwio, np.float32)
    cin, cout = w.shape[2], w.shape[3]
    hout = (hin - 1) // 2 + 1
    wout = (win - 1) // 2 + 1

    dense = np.zeros((hin * win * cin, hout * wout * cout), np.float32)
    for ho in range(hout):
        for kh in range(3):
            hi = 2 * ho + kh - 1
            if hi < 0 or hi >= hin:
                continue
            for wo in range(wout):
                for kw in range(3):
                    wi = 2 * wo + kw - 1
                    if wi < 0 or wi >= win:
                        continue
                    r = (hi * win + wi) * cin
                    c = (ho * wout + wo) * cout
                    dense[r:r + cin, c:c + cout] = w[kh, kw]

    b = np.tile(np.asarray(bias, np.float32), hout * wout).reshape(1, -1)
    return (jnp.asarray(dense, jnp.bfloat16), jnp.asarray(b, jnp.float32)), (hout, wout)


def init_discriminator_params(key, img_shape, n_classes):
    """PyTorch-like fan-in uniform init.  Returns (packed_params, reference_params)."""
    c0, h, w = img_shape
    assert h % 16 == 0 and w % 16 == 0, "spatial dims must be divisible by 16"
    channels = [c0, 16, 32, 64, 128]
    eps = 0.8                                  # BatchNorm2d(out_feat, 0.8) -> eps=0.8
    ds_h, ds_w = h // 16, w // 16
    feat_dim = 128 * ds_h * ds_w

    raw_blocks = []
    for i in range(4):
        key, k1, k2 = jax.random.split(key, 3)
        cin, cout = channels[i], channels[i + 1]
        bound = 1.0 / math.sqrt(cin * 9)
        wk = jax.random.uniform(k1, (3, 3, cin, cout), jnp.float32, -bound, bound)
        bk = jax.random.uniform(k2, (cout,), jnp.float32, -bound, bound)
        raw_blocks.append((wk, bk, i > 0))     # (weight HWIO, bias, has_bn)

    key, k1, k2, k3, k4 = jax.random.split(key, 5)
    lb = 1.0 / math.sqrt(feat_dim)
    adv_w = jax.random.uniform(k1, (feat_dim, 1), jnp.float32, -lb, lb)
    adv_b = jax.random.uniform(k2, (1,), jnp.float32, -lb, lb)
    aux_w = jax.random.uniform(k3, (feat_dim, n_classes), jnp.float32, -lb, lb)
    aux_b = jax.random.uniform(k4, (n_classes,), jnp.float32, -lb, lb)

    # Reference-layout params (PyTorch semantics, used only for verification).
    ref_params = {
        "blocks": raw_blocks,
        "head_w": jnp.concatenate([adv_w, aux_w], axis=1),   # (feat, 1+nc), rows (c,h,w)
        "head_b": jnp.concatenate([adv_b, aux_b], axis=0),   # (1+nc,)
    }

    # Packed params: 4 conv layers + fused head, each a (weight, bias) GEMM pair.
    bn_scale = 1.0 / math.sqrt(1.0 + eps)      # eval-mode BN folded into conv (exact)
    layers = []
    hin, win = h, w
    for i in range(4):
        wk, bk, has_bn = raw_blocks[i]
        s = bn_scale if has_bn else 1.0
        packed, (hin, win) = _conv_to_dense(np.asarray(wk) * s, np.asarray(bk) * s,
                                            hin, win)
        layers.append(packed)

    # Fused head: rows permuted from PyTorch (c, h, w) flatten order to the
    # kernel's (h, w, c) order; output columns zero-padded to a multiple of 128.
    n_out = 1 + n_classes
    n_out_pad = -(-n_out // 128) * 128
    hw = np.asarray(ref_params["head_w"], np.float32)
    hw = hw.reshape(128, ds_h, ds_w, n_out).transpose(1, 2, 0, 3).reshape(feat_dim, n_out)
    hw_pad = np.zeros((feat_dim, n_out_pad), np.float32)
    hw_pad[:, :n_out] = hw
    hb_pad = np.zeros((1, n_out_pad), np.float32)
    hb_pad[0, :n_out] = np.asarray(ref_params["head_b"], np.float32)
    layers.append((jnp.asarray(hw_pad, jnp.bfloat16), jnp.asarray(hb_pad, jnp.float32)))

    return {"layers": layers}, ref_params


# ----------------------------------------------------------------------------
# Fused Pallas kernel: 5 chained dense GEMMs (4 conv blocks + fused heads)
# ----------------------------------------------------------------------------
def _kernel(*refs):
    x_ref = refs[0]
    out_ref = refs[-1]
    layer_refs = refs[1:-1]                       # (w, b) pairs
    n_layers = len(layer_refs) // 2

    x = x_ref[...]                                # (TILE_B, K0) bf16
    for li in range(n_layers):
        w_ref = layer_refs[2 * li]
        b_ref = layer_refs[2 * li + 1]
        acc = jnp.dot(x, w_ref[...], preferred_element_type=jnp.float32) + b_ref[...]
        if li + 1 < n_layers:
            acc = jnp.where(acc > 0, acc, 0.2 * acc)      # LeakyReLU(0.2), f32
            # TODO(synk): Dropout2d(0.25) train-mode noise omitted (eval identity).
            x = acc.astype(jnp.bfloat16)
        else:
            out_ref[...] = acc                    # lane-dense (TILE_B, 128k) logits


@partial(jax.jit, static_argnames=("n_classes",))
def discriminator_forward(params, img_nchw, *, n_classes):
    n, c0, h, w = img_nchw.shape
    k0 = h * w * c0                               # multiple of 128 (h, w mult. of 16)
    layers = params["layers"]
    n_out_pad = layers[-1][0].shape[1]

    # NCHW -> flattened (h, w, c) per-sample feature vectors, bf16.
    x = jnp.transpose(img_nchw, (0, 2, 3, 1)).astype(jnp.bfloat16).reshape(n, k0)

    # Batch blocking: M = TILE_B rows per GEMM (target 256; >=8 sublanes).
    tile_b = 256 if n >= 256 else max(8, -(-n // 8) * 8)
    n_pad = -(-n // tile_b) * tile_b
    if n_pad != n:
        x = jnp.pad(x, ((0, n_pad - n), (0, 0)))

    flat_inputs = [x]
    in_specs = [pl.BlockSpec((tile_b, k0), lambda i: (i, 0))]
    for (wl, bl) in layers:
        flat_inputs += [wl, bl]
        in_specs += [pl.BlockSpec(wl.shape, lambda i: (0, 0)),
                     pl.BlockSpec(bl.shape, lambda i: (0, 0))]

    logits = pl.pallas_call(
        _kernel,
        out_shape=jax.ShapeDtypeStruct((n_pad, n_out_pad), jnp.float32),
        grid=(n_pad // tile_b,),
        in_specs=in_specs,
        out_specs=pl.BlockSpec((tile_b, n_out_pad), lambda i: (i, 0)),
        compiler_params=pltpu.CompilerParams(
            dimension_semantics=("parallel",),
            vmem_limit_bytes=48 * 1024 * 1024),
    )(*flat_inputs)

    logits = logits[:n]
    validity = jax.nn.sigmoid(logits[:, 0:1])
    labels = logits[:, 1:1 + n_classes]
    return validity, labels


# ----------------------------------------------------------------------------
# Pure-JAX reference (PyTorch semantics, eval mode, f32) for verification
# ----------------------------------------------------------------------------
def reference_forward(ref_params, img_nchw):
    x = jnp.transpose(img_nchw, (0, 2, 3, 1)).astype(jnp.float32)
    for (wk, bk, has_bn) in ref_params["blocks"]:
        x = jax.lax.conv_general_dilated(
            x, wk, window_strides=(2, 2), padding=((1, 1), (1, 1)),
            dimension_numbers=("NHWC", "HWIO", "NHWC"))
        x = x + bk
        x = jnp.where(x > 0, x, 0.2 * x)                     # LeakyReLU(0.2)
        if has_bn:                                           # eval BN, eps=0.8
            x = x / jnp.sqrt(jnp.float32(1.8))
    n = x.shape[0]
    feat = jnp.transpose(x, (0, 3, 1, 2)).reshape(n, -1)     # PyTorch channel-major
    logits = feat @ ref_params["head_w"] + ref_params["head_b"]
    return jax.nn.sigmoid(logits[:, 0:1]), logits[:, 1:]


if __name__ == "__main__":
    key = jax.random.PRNGKey(0)
    img_shape = (4, 16, 16)    # (C, H, W); H, W divisible by 16
    n_classes = 10
    batch = 2

    pkey, xkey = jax.random.split(key)
    params, ref_params = init_discriminator_params(pkey, img_shape, n_classes)
    img = jax.random.normal(xkey, (batch,) + img_shape, jnp.float32)

    validity, labels = discriminator_forward(params, img, n_classes=n_classes)
    jax.block_until_ready((validity, labels))

    assert validity.shape == (batch, 1)
    assert labels.shape == (batch, n_classes)
    assert bool(jnp.all((validity >= 0.0) & (validity <= 1.0)))

    # Cross-check against the pure-JAX/f32 reference (tolerance for bf16 GEMMs).
    ref_v, ref_l = reference_forward(ref_params, img)
    assert bool(jnp.allclose(validity, ref_v, rtol=2e-1, atol=2e-2))
    assert bool(jnp.allclose(labels, ref_l, rtol=2e-1, atol=2e-2))

    print("KERNEL_OK")
</pallas_src>

<mosaic_0001>
module attributes {stable_mosaic.version = 11 : i64} {
  func.func @_kernel(%arg0: i32, %arg1: memref<8x1024xbf16, #tpu.memory_space<vmem>>, %arg2: memref<1024x1024xbf16, #tpu.memory_space<vmem>>, %arg3: memref<1x1024xf32, #tpu.memory_space<vmem>>, %arg4: memref<1024x512xbf16, #tpu.memory_space<vmem>>, %arg5: memref<1x512xf32, #tpu.memory_space<vmem>>, %arg6: memref<512x256xbf16, #tpu.memory_space<vmem>>, %arg7: memref<1x256xf32, #tpu.memory_space<vmem>>, %arg8: memref<256x128xbf16, #tpu.memory_space<vmem>>, %arg9: memref<1x128xf32, #tpu.memory_space<vmem>>, %arg10: memref<128x128xbf16, #tpu.memory_space<vmem>>, %arg11: memref<1x128xf32, #tpu.memory_space<vmem>>, %arg12: memref<8x128xf32, #tpu.memory_space<vmem>>) attributes {dimension_semantics = [#tpu.dimension_semantics<parallel>], iteration_bounds = array<i64: 1>, scalar_prefetch = 0 : i64, scratch_operands = 0 : i64, tpu.core_type = #tpu.core_type<tc>, window_params = [{transform_indices = @transform_0, window_bounds = array<i64: 8, 1024>}, {pipeline_mode = #tpu.pipeline_mode<synchronous>, transform_indices = @transform_1, window_bounds = array<i64: 1024, 1024>}, {pipeline_mode = #tpu.pipeline_mode<synchronous>, transform_indices = @transform_2, window_bounds = array<i64: 1, 1024>}, {pipeline_mode = #tpu.pipeline_mode<synchronous>, transform_indices = @transform_3, window_bounds = array<i64: 1024, 512>}, {pipeline_mode = #tpu.pipeline_mode<synchronous>, transform_indices = @transform_4, window_bounds = array<i64: 1, 512>}, {pipeline_mode = #tpu.pipeline_mode<synchronous>, transform_indices = @transform_5, window_bounds = array<i64: 512, 256>}, {pipeline_mode = #tpu.pipeline_mode<synchronous>, transform_indices = @transform_6, window_bounds = array<i64: 1, 256>}, {pipeline_mode = #tpu.pipeline_mode<synchronous>, transform_indices = @transform_7, window_bounds = array<i64: 256, 128>}, {pipeline_mode = #tpu.pipeline_mode<synchronous>, transform_indices = @transform_8, window_bounds = array<i64: 1, 128>}, {pipeline_mode = #tpu.pipeline_mode<synchronous>, transform_indices = @transform_9, window_bounds = array<i64: 128, 128>}, {pipeline_mode = #tpu.pipeline_mode<synchronous>, transform_indices = @transform_10, window_bounds = array<i64: 1, 128>}, {transform_indices = @transform_11, window_bounds = array<i64: 8, 128>}]} {
    %c0 = arith.constant 0 : index
    %c0_0 = arith.constant 0 : index
    %0 = vector.load %arg1[%c0, %c0_0] : memref<8x1024xbf16, #tpu.memory_space<vmem>>, vector<8x1024xbf16>
    %c0_1 = arith.constant 0 : index
    %c0_2 = arith.constant 0 : index
    %1 = vector.load %arg2[%c0_1, %c0_2] : memref<1024x1024xbf16, #tpu.memory_space<vmem>>, vector<1024x1024xbf16>
    %cst = arith.constant dense<0.000000e+00> : vector<8x1024xf32>
    %2 = tpu.matmul %0, %1, %cst {dimension_numbers = #tpu.dot_dimension_numbers<[1], [0], [0], [1], [0, 0, 1, 1], [], []>} : vector<8x1024xbf16>, vector<1024x1024xbf16>, vector<8x1024xf32> -> vector<8x1024xf32>
    %c0_3 = arith.constant 0 : index
    %c0_4 = arith.constant 0 : index
    %3 = vector.load %arg3[%c0_3, %c0_4] : memref<1x1024xf32, #tpu.memory_space<vmem>>, vector<1x1024xf32>
    %4 = vector.broadcast %3 : vector<1x1024xf32> to vector<8x1024xf32>
    %5 = arith.addf %2, %4 : vector<8x1024xf32>
    %cst_5 = arith.constant 0.000000e+00 : f32
    %6 = vector.broadcast %cst_5 : f32 to vector<8x1024xf32>
    %7 = arith.cmpf ogt, %5, %6 : vector<8x1024xf32>
    %cst_6 = arith.constant 2.000000e-01 : f32
    %8 = vector.broadcast %cst_6 : f32 to vector<8x1024xf32>
    %9 = arith.mulf %8, %5 : vector<8x1024xf32>
    %10 = arith.select %7, %5, %9 : vector<8x1024xi1>, vector<8x1024xf32>
    %11 = arith.truncf %10 : vector<8x1024xf32> to vector<8x1024xbf16>
    %c0_7 = arith.constant 0 : index
    %c0_8 = arith.constant 0 : index
    %12 = vector.load %arg4[%c0_7, %c0_8] : memref<1024x512xbf16, #tpu.memory_space<vmem>>, vector<1024x512xbf16>
    %cst_9 = arith.constant dense<0.000000e+00> : vector<8x512xf32>
    %13 = tpu.matmul %11, %12, %cst_9 {dimension_numbers = #tpu.dot_dimension_numbers<[1], [0], [0], [1], [0, 0, 1, 1], [], []>} : vector<8x1024xbf16>, vector<1024x512xbf16>, vector<8x512xf32> -> vector<8x512xf32>
    %c0_10 = arith.constant 0 : index
    %c0_11 = arith.constant 0 : index
    %14 = vector.load %arg5[%c0_10, %c0_11] : memref<1x512xf32, #tpu.memory_space<vmem>>, vector<1x512xf32>
    %15 = vector.broadcast %14 : vector<1x512xf32> to vector<8x512xf32>
    %16 = arith.addf %13, %15 : vector<8x512xf32>
    %cst_12 = arith.constant 0.000000e+00 : f32
    %17 = vector.broadcast %cst_12 : f32 to vector<8x512xf32>
    %18 = arith.cmpf ogt, %16, %17 : vector<8x512xf32>
    %cst_13 = arith.constant 2.000000e-01 : f32
    %19 = vector.broadcast %cst_13 : f32 to vector<8x512xf32>
    %20 = arith.mulf %19, %16 : vector<8x512xf32>
    %21 = arith.select %18, %16, %20 : vector<8x512xi1>, vector<8x512xf32>
    %22 = arith.truncf %21 : vector<8x512xf32> to vector<8x512xbf16>
    %c0_14 = arith.constant 0 : index
    %c0_15 = arith.constant 0 : index
    %23 = vector.load %arg6[%c0_14, %c0_15] : memref<512x256xbf16, #tpu.memory_space<vmem>>, vector<512x256xbf16>
    %cst_16 = arith.constant dense<0.000000e+00> : vector<8x256xf32>
    %24 = tpu.matmul %22, %23, %cst_16 {dimension_numbers = #tpu.dot_dimension_numbers<[1], [0], [0], [1], [0, 0, 1, 1], [], []>} : vector<8x512xbf16>, vector<512x256xbf16>, vector<8x256xf32> -> vector<8x256xf32>
    %c0_17 = arith.constant 0 : index
    %c0_18 = arith.constant 0 : index
    %25 = vector.load %arg7[%c0_17, %c0_18] : memref<1x256xf32, #tpu.memory_space<vmem>>, vector<1x256xf32>
    %26 = vector.broadcast %25 : vector<1x256xf32> to vector<8x256xf32>
    %27 = arith.addf %24, %26 : vector<8x256xf32>
    %cst_19 = arith.constant 0.000000e+00 : f32
    %28 = vector.broadcast %cst_19 : f32 to vector<8x256xf32>
    %29 = arith.cmpf ogt, %27, %28 : vector<8x256xf32>
    %cst_20 = arith.constant 2.000000e-01 : f32
    %30 = vector.broadcast %cst_20 : f32 to vector<8x256xf32>
    %31 = arith.mulf %30, %27 : vector<8x256xf32>
    %32 = arith.select %29, %27, %31 : vector<8x256xi1>, vector<8x256xf32>
    %33 = arith.truncf %32 : vector<8x256xf32> to vector<8x256xbf16>
    %c0_21 = arith.constant 0 : index
    %c0_22 = arith.constant 0 : index
    %34 = vector.load %arg8[%c0_21, %c0_22] : memref<256x128xbf16, #tpu.memory_space<vmem>>, vector<256x128xbf16>
    %cst_23 = arith.constant dense<0.000000e+00> : vector<8x128xf32>
    %35 = tpu.matmul %33, %34, %cst_23 {dimension_numbers = #tpu.dot_dimension_numbers<[1], [0], [0], [1], [0, 0, 1, 1], [], []>} : vector<8x256xbf16>, vector<256x128xbf16>, vector<8x128xf32> -> vector<8x128xf32>
    %c0_24 = arith.constant 0 : index
    %c0_25 = arith.constant 0 : index
    %36 = vector.load %arg9[%c0_24, %c0_25] : memref<1x128xf32, #tpu.memory_space<vmem>>, vector<1x128xf32>
    %37 = vector.broadcast %36 : vector<1x128xf32> to vector<8x128xf32>
    %38 = arith.addf %35, %37 : vector<8x128xf32>
    %cst_26 = arith.constant 0.000000e+00 : f32
    %39 = vector.broadcast %cst_26 : f32 to vector<8x128xf32>
    %40 = arith.cmpf ogt, %38, %39 : vector<8x128xf32>
    %cst_27 = arith.constant 2.000000e-01 : f32
    %41 = vector.broadcast %cst_27 : f32 to vector<8x128xf32>
    %42 = arith.mulf %41, %38 : vector<8x128xf32>
    %43 = arith.select %40, %38, %42 : vector<8x128xi1>, vector<8x128xf32>
    %44 = arith.truncf %43 : vector<8x128xf32> to vector<8x128xbf16>
    %c0_28 = arith.constant 0 : index
    %c0_29 = arith.constant 0 : index
    %45 = vector.load %arg10[%c0_28, %c0_29] : memref<128x128xbf16, #tpu.memory_space<vmem>>, vector<128x128xbf16>
    %cst_30 = arith.constant dense<0.000000e+00> : vector<8x128xf32>
    %46 = tpu.matmul %44, %45, %cst_30 {dimension_numbers = #tpu.dot_dimension_numbers<[1], [0], [0], [1], [0, 0, 1, 1], [], []>} : vector<8x128xbf16>, vector<128x128xbf16>, vector<8x128xf32> -> vector<8x128xf32>
    %c0_31 = arith.constant 0 : index
    %c0_32 = arith.constant 0 : index
    %47 = vector.load %arg11[%c0_31, %c0_32] : memref<1x128xf32, #tpu.memory_space<vmem>>, vector<1x128xf32>
    %48 = vector.broadcast %47 : vector<1x128xf32> to vector<8x128xf32>
    %49 = arith.addf %46, %48 : vector<8x128xf32>
    %c0_33 = arith.constant 0 : index
    %c0_34 = arith.constant 0 : index
    %50 = vector.load %arg12[%c0_33, %c0_34] : memref<8x128xf32, #tpu.memory_space<vmem>>, vector<8x128xf32>
    tpu.vector_store %arg12[%c0_33, %c0_34], %49 {strides = array<i32>} : memref<8x128xf32, #tpu.memory_space<vmem>>, vector<8x128xf32>,
    return
  }
  func.func @transform_0(%arg0: i32) -> (i32, i32) {
    %c0_i32 = arith.constant 0 : i32
    %c0_i32_0 = arith.constant 0 : i32
    return %arg0, %c0_i32 : i32, i32
  }
  func.func @transform_1(%arg0: i32) -> (i32, i32) {
    %c0_i32 = arith.constant 0 : i32
    %c0_i32_0 = arith.constant 0 : i32
    %c0_i32_1 = arith.constant 0 : i32
    return %c0_i32, %c0_i32_0 : i32, i32
  }
  func.func @transform_2(%arg0: i32) -> (i32, i32) {
    %c0_i32 = arith.constant 0 : i32
    %c0_i32_0 = arith.constant 0 : i32
    %c0_i32_1 = arith.constant 0 : i32
    return %c0_i32, %c0_i32_0 : i32, i32
  }
  func.func @transform_3(%arg0: i32) -> (i32, i32) {
    %c0_i32 = arith.constant 0 : i32
    %c0_i32_0 = arith.constant 0 : i32
    %c0_i32_1 = arith.constant 0 : i32
    return %c0_i32, %c0_i32_0 : i32, i32
  }
  func.func @transform_4(%arg0: i32) -> (i32, i32) {
    %c0_i32 = arith.constant 0 : i32
    %c0_i32_0 = arith.constant 0 : i32
    %c0_i32_1 = arith.constant 0 : i32
    return %c0_i32, %c0_i32_0 : i32, i32
  }
  func.func @transform_5(%arg0: i32) -> (i32, i32) {
    %c0_i32 = arith.constant 0 : i32
    %c0_i32_0 = arith.constant 0 : i32
    %c0_i32_1 = arith.constant 0 : i32
    return %c0_i32, %c0_i32_0 : i32, i32
  }
  func.func @transform_6(%arg0: i32) -> (i32, i32) {
    %c0_i32 = arith.constant 0 : i32
    %c0_i32_0 = arith.constant 0 : i32
    %c0_i32_1 = arith.constant 0 : i32
    return %c0_i32, %c0_i32_0 : i32, i32
  }
  func.func @transform_7(%arg0: i32) -> (i32, i32) {
    %c0_i32 = arith.constant 0 : i32
    %c0_i32_0 = arith.constant 0 : i32
    %c0_i32_1 = arith.constant 0 : i32
    return %c0_i32, %c0_i32_0 : i32, i32
  }
  func.func @transform_8(%arg0: i32) -> (i32, i32) {
    %c0_i32 = arith.constant 0 : i32
    %c0_i32_0 = arith.constant 0 : i32
    %c0_i32_1 = arith.constant 0 : i32
    return %c0_i32, %c0_i32_0 : i32, i32
  }
  func.func @transform_9(%arg0: i32) -> (i32, i32) {
    %c0_i32 = arith.constant 0 : i32
    %c0_i32_0 = arith.constant 0 : i32
    %c0_i32_1 = arith.constant 0 : i32
    return %c0_i32, %c0_i32_0 : i32, i32
  }
  func.func @transform_10(%arg0: i32) -> (i32, i32) {
    %c0_i32 = arith.constant 0 : i32
    %c0_i32_0 = arith.constant 0 : i32
    %c0_i32_1 = arith.constant 0 : i32
    return %c0_i32, %c0_i32_0 : i32, i32
  }
  func.func @transform_11(%arg0: i32) -> (i32, i32) {
    %c0_i32 = arith.constant 0 : i32
    %c0_i32_0 = arith.constant 0 : i32
    return %arg0, %c0_i32 : i32, i32
  }
}

</mosaic_0001>

<llo_original>
// kernel: discriminator_forward.1
$region0: #{discriminator_forward.1}
  #allocation0 [shape = 'u32[]', space=smem, size = 0x4, offset = 0x4, fixed_abs, tag = 'smem constant byte address 0x4 - core index']
  #allocation1 [shape = 'u32[144,128]{1,0:T(1,128)}', space=vmem, size = 0x12000, scoped, tag = 'internal scratch']
  %s0 = inlined_call_operand.vmem [shape: bf16[8,1024], index: 0, kind: input, shape index: {}]
  %s1 = inlined_call_operand.hbm [shape: bf16[1024,1024], index: 1, kind: input, shape index: {}]
  %s2 = inlined_call_operand.hbm [shape: f32[1,1024], index: 2, kind: input, shape index: {}]
  %s3 = inlined_call_operand.hbm [shape: bf16[1024,512], index: 3, kind: input, shape index: {}]
  %s4 = inlined_call_operand.hbm [shape: f32[1,512], index: 4, kind: input, shape index: {}]
  %s5 = inlined_call_operand.hbm [shape: bf16[512,256], index: 5, kind: input, shape index: {}]
  %s6 = inlined_call_operand.hbm [shape: f32[1,256], index: 6, kind: input, shape index: {}]
  %s7 = inlined_call_operand.hbm [shape: bf16[256,128], index: 7, kind: input, shape index: {}]
  %s8 = inlined_call_operand.hbm [shape: f32[1,128], index: 8, kind: input, shape index: {}]
  %s9 = inlined_call_operand.hbm [shape: bf16[128,128], index: 9, kind: input, shape index: {}]
  %s10 = inlined_call_operand.hbm [shape: f32[1,128], index: 10, kind: input, shape index: {}]
  %s11 = inlined_call_operand.vmem [shape: f32[8,128], index: 11, kind: output, shape index: {}]
  %s12 = sld [smem:[#allocation0]]
  $region94: #{discriminator_forward.1} parent=0
    _
  %s14 = ssub.s32 1, %s12
  %s15 = scalar_select 0, %s14, %s12
  $region1: #{discriminator_forward.1} parent=0
    #allocation2 [shape = 'u8[2097152]{0}', space=vmem, size = 0x200000, scoped, tag = 'input window, operand 1, single buffered']
    #allocation3 [shape = 's32[1]{0}', space=sflag, size = 0x4, scoped, tag = 'scoped memory for discriminator_forward.1']
    #allocation4 [shape = 'u8[4096]{0}', space=vmem, size = 0x1000, scoped, tag = 'input window, operand 2, single buffered']
    #allocation5 [shape = 's32[1]{0}', space=sflag, size = 0x4, scoped, tag = 'scoped memory for discriminator_forward.1']
    #allocation6 [shape = 'u8[1048576]{0}', space=vmem, size = 0x100000, scoped, tag = 'input window, operand 3, single buffered']
    #allocation7 [shape = 'u8[2048]{0}', space=vmem, size = 0x800, scoped, tag = 'input window, operand 4, single buffered']
    #allocation8 [shape = 's32[1]{0}', space=sflag, size = 0x4, scoped, tag = 'scoped memory for discriminator_forward.1']
    #allocation9 [shape = 'u8[262144]{0}', space=vmem, size = 0x40000, scoped, tag = 'input window, operand 5, single buffered']
    #allocation10 [shape = 'u8[1024]{0}', space=vmem, size = 0x400, scoped, tag = 'input window, operand 6, single buffered']
    #allocation11 [shape = 's32[1]{0}', space=sflag, size = 0x4, scoped, tag = 'scoped memory for discriminator_forward.1']
    #allocation12 [shape = 'u8[65536]{0}', space=vmem, size = 0x10000, scoped, tag = 'input window, operand 7, single buffered']
    #allocation13 [shape = 'u8[512]{0}', space=vmem, size = 0x400, scoped, tag = 'input window, operand 8, single buffered']
    #allocation14 [shape = 's32[1]{0}', space=sflag, size = 0x4, scoped, tag = 'scoped memory for discriminator_forward.1']
    #allocation15 [shape = 'u8[32768]{0}', space=vmem, size = 0x8000, scoped, tag = 'input window, operand 9, single buffered']
    #allocation16 [shape = 'u8[512]{0}', space=vmem, size = 0x400, scoped, tag = 'input window, operand 10, single buffered']
    #allocation17 [shape = 's32[1]{0}', space=sflag, size = 0x4, scoped, tag = 'scoped memory for discriminator_forward.1']
    %16 = vsyncpa [#allocation3], 0
    %17 = vsyncpa [#allocation5], 0
    %18 = vsyncpa [#allocation8], 0
    %19 = vsyncpa [#allocation11], 0
    %20 = vsyncpa [#allocation14], 0
    %21 = vsyncpa [#allocation17], 0
    // Predicated region
    $region2: #{discriminator_forward.1} parent=1 // pred_check
      _
    $region3: #{discriminator_forward.1} parent=1 // pred_check_branch
      %23 = sbr.rel (0) target = $region5
    $region4: #{discriminator_forward.1} parent=1 // pred_region
      _
    $region5: #{discriminator_forward.1} parent=1 // pred_fallthru
      _
    // Predicated region
    $region6: #{discriminator_forward.1} parent=1 // pred_check
      _
    $region7: #{discriminator_forward.1} parent=1 // pred_check_branch
      %25 = sbr.rel (0) target = $region9
    $region8: #{discriminator_forward.1} parent=1 // pred_region
      %s27 = ssub.s32 65536, 65536
      %28 = vsyncadd [#allocation3], %s27
      %s29 = sshll.u32 [#allocation2], 4
      %s30 = int_to_ptr.vmem [resolvable:$true] %s29
      %35 = dma.hbm_to_vmem [thread:$0]  %s1, 65536, %s30, [#allocation3], 512, 512, 32
    $region9: #{discriminator_forward.1} parent=1 // pred_fallthru
      _
    // Predicated region
    $region10: #{discriminator_forward.1} parent=1 // pred_check
      _
    $region11: #{discriminator_forward.1} parent=1 // pred_check_branch
      %37 = sbr.rel (0) target = $region13
    $region12: #{discriminator_forward.1} parent=1 // pred_region
      %s39 = ssub.s32 128, 128
      %40 = vsyncadd [#allocation5], %s39
      %s42 = sshll.u32 [#allocation4], 4
      %s43 = int_to_ptr.vmem [resolvable:$true] %s42
      %45 = dma.hbm_to_vmem [thread:$0]  %s2, 128, %s43, [#allocation5]
    $region13: #{discriminator_forward.1} parent=1 // pred_fallthru
      _
    // Predicated region
    $region14: #{discriminator_forward.1} parent=1 // pred_check
      _
    $region15: #{discriminator_forward.1} parent=1 // pred_check_branch
      %47 = sbr.rel (0) target = $region17
    $region16: #{discriminator_forward.1} parent=1 // pred_region
      %s49 = ssub.s32 32768, 32768
      %50 = vsyncadd [#allocation5], %s49
      %s51 = sshll.u32 [#allocation6], 4
      %s52 = int_to_ptr.vmem [resolvable:$true] %s51
      %57 = dma.hbm_to_vmem [thread:$0]  %s3, 32768, %s52, [#allocation5], 256, 256, 16
    $region17: #{discriminator_forward.1} parent=1 // pred_fallthru
      _
    // Predicated region
    $region18: #{discriminator_forward.1} parent=1 // pred_check
      _
    $region19: #{discriminator_forward.1} parent=1 // pred_check_branch
      %59 = sbr.rel (0) target = $region21
    $region20: #{discriminator_forward.1} parent=1 // pred_region
      %s61 = ssub.s32 64, 64
      %62 = vsyncadd [#allocation8], %s61
      %s64 = sshll.u32 [#allocation7], 4
      %s65 = int_to_ptr.vmem [resolvable:$true] %s64
      %67 = dma.hbm_to_vmem [thread:$0]  %s4, 64, %s65, [#allocation8]
    $region21: #{discriminator_forward.1} parent=1 // pred_fallthru
      _
    // Predicated region
    $region22: #{discriminator_forward.1} parent=1 // pred_check
      _
    $region23: #{discriminator_forward.1} parent=1 // pred_check_branch
      %69 = sbr.rel (0) target = $region25
    $region24: #{discriminator_forward.1} parent=1 // pred_region
      %s71 = ssub.s32 8192, 8192
      %72 = vsyncadd [#allocation8], %s71
      %s73 = sshll.u32 [#allocation9], 4
      %s74 = int_to_ptr.vmem [resolvable:$true] %s73
      %79 = dma.hbm_to_vmem [thread:$0]  %s5, 8192, %s74, [#allocation8], 128, 128, 8
    $region25: #{discriminator_forward.1} parent=1 // pred_fallthru
      _
    // Predicated region
    $region26: #{discriminator_forward.1} parent=1 // pred_check
      _
    $region27: #{discriminator_forward.1} parent=1 // pred_check_branch
      %81 = sbr.rel (0) target = $region29
    $region28: #{discriminator_forward.1} parent=1 // pred_region
      %s83 = ssub.s32 32, 32
      %84 = vsyncadd [#allocation11], %s83
      %s86 = sshll.u32 [#allocation10], 4
      %s87 = int_to_ptr.vmem [resolvable:$true] %s86
      %89 = dma.hbm_to_vmem [thread:$0]  %s6, 32, %s87, [#allocation11]
    $region29: #{discriminator_forward.1} parent=1 // pred_fallthru
      _
    // Predicated region
    $region30: #{discriminator_forward.1} parent=1 // pred_check
      _
    $region31: #{discriminator_forward.1} parent=1 // pred_check_branch
      %91 = sbr.rel (0) target = $region33
    $region32: #{discriminator_forward.1} parent=1 // pred_region
      %s93 = ssub.s32 2048, 2048
      %94 = vsyncadd [#allocation11], %s93
      %s95 = sshll.u32 [#allocation12], 4
      %s96 = int_to_ptr.vmem [resolvable:$true] %s95
      %101 = dma.hbm_to_vmem [thread:$0]  %s7, 2048, %s96, [#allocation11], 64, 64, 4
    $region33: #{discriminator_forward.1} parent=1 // pred_fallthru
      _
    // Predicated region
    $region34: #{discriminator_forward.1} parent=1 // pred_check
      _
    $region35: #{discriminator_forward.1} parent=1 // pred_check_branch
      %103 = sbr.rel (0) target = $region37
    $region36: #{discriminator_forward.1} parent=1 // pred_region
      %s105 = ssub.s32 16, 16
      %106 = vsyncadd [#allocation14], %s105
      %s108 = sshll.u32 [#allocation13], 4
      %s109 = int_to_ptr.vmem [resolvable:$true] %s108
      %111 = dma.hbm_to_vmem [thread:$0]  %s8, 16, %s109, [#allocation14]
    $region37: #{discriminator_forward.1} parent=1 // pred_fallthru
      _
    // Predicated region
    $region38: #{discriminator_forward.1} parent=1 // pred_check
      _
    $region39: #{discriminator_forward.1} parent=1 // pred_check_branch
      %113 = sbr.rel (0) target = $region41
    $region40: #{discriminator_forward.1} parent=1 // pred_region
      %s115 = ssub.s32 1024, 1024
      %116 = vsyncadd [#allocation14], %s115
      %s117 = sshll.u32 [#allocation15], 4
      %s118 = int_to_ptr.vmem [resolvable:$true] %s117
      %123 = dma.hbm_to_vmem [thread:$0]  %s9, 1024, %s118, [#allocation14], 64, 64, 4
    $region41: #{discriminator_forward.1} parent=1 // pred_fallthru
      _
    // Predicated region
    $region42: #{discriminator_forward.1} parent=1 // pred_check
      _
    $region43: #{discriminator_forward.1} parent=1 // pred_check_branch
      %125 = sbr.rel (0) target = $region45
    $region44: #{discriminator_forward.1} parent=1 // pred_region
      %s127 = ssub.s32 16, 16
      %128 = vsyncadd [#allocation17], %s127
      %s130 = sshll.u32 [#allocation16], 4
      %s131 = int_to_ptr.vmem [resolvable:$true] %s130
      %133 = dma.hbm_to_vmem [thread:$0]  %s10, 16, %s131, [#allocation17]
    $region45: #{discriminator_forward.1} parent=1 // pred_fallthru
      _
    // Predicated region
    $region46: #{discriminator_forward.1} parent=1 // pred_check
      _
    $region47: #{discriminator_forward.1} parent=1 // pred_check_branch
      %135 = sbr.rel (0) target = $region49
    $region48: #{discriminator_forward.1} parent=1 // pred_region
      %136 = dma.done [#allocation3], 65536
    $region49: #{discriminator_forward.1} parent=1 // pred_fallthru
      _
    // Predicated region
    $region50: #{discriminator_forward.1} parent=1 // pred_check
      _
    $region51: #{discriminator_forward.1} parent=1 // pred_check_branch
      %138 = sbr.rel (0) target = $region53
    $region52: #{discriminator_forward.1} parent=1 // pred_region
      %139 = dma.done [#allocation5], 128
    $region53: #{discriminator_forward.1} parent=1 // pred_fallthru
      _
    // Predicated region
    $region54: #{discriminator_forward.1} parent=1 // pred_check
      _
    $region55: #{discriminator_forward.1} parent=1 // pred_check_branch
      %141 = sbr.rel (0) target = $region57
    $region56: #{discriminator_forward.1} parent=1 // pred_region
      %142 = dma.done [#allocation5], 32768
    $region57: #{discriminator_forward.1} parent=1 // pred_fallthru
      _
    // Predicated region
    $region58: #{discriminator_forward.1} parent=1 // pred_check
      _
    $region59: #{discriminator_forward.1} parent=1 // pred_check_branch
      %144 = sbr.rel (0) target = $region61
    $region60: #{discriminator_forward.1} parent=1 // pred_region
      %145 = dma.done [#allocation8], 64
    $region61: #{discriminator_forward.1} parent=1 // pred_fallthru
      _
    // Predicated region
    $region62: #{discriminator_forward.1} parent=1 // pred_check
      _
    $region63: #{discriminator_forward.1} parent=1 // pred_check_branch
      %147 = sbr.rel (0) target = $region65
    $region64: #{discriminator_forward.1} parent=1 // pred_region
      %148 = dma.done [#allocation8], 8192
    $region65: #{discriminator_forward.1} parent=1 // pred_fallthru
      _
    // Predicated region
    $region66: #{discriminator_forward.1} parent=1 // pred_check
      _
    $region67: #{discriminator_forward.1} parent=1 // pred_check_branch
      %150 = sbr.rel (0) target = $region69
    $region68: #{discriminator_forward.1} parent=1 // pred_region
      %151 = dma.done [#allocation11], 32
    $region69: #{discriminator_forward.1} parent=1 // pred_fallthru
      _
    // Predicated region
    $region70: #{discriminator_forward.1} parent=1 // pred_check
      _
    $region71: #{discriminator_forward.1} parent=1 // pred_check_branch
      %153 = sbr.rel (0) target = $region73
    $region72: #{discriminator_forward.1} parent=1 // pred_region
      %154 = dma.done [#allocation11], 2048
    $region73: #{discriminator_forward.1} parent=1 // pred_fallthru
      _
    // Predicated region
    $region74: #{discriminator_forward.1} parent=1 // pred_check
      _
    $region75: #{discriminator_forward.1} parent=1 // pred_check_branch
      %156 = sbr.rel (0) target = $region77
    $region76: #{discriminator_forward.1} parent=1 // pred_region
      %157 = dma.done [#allocation14], 16
    $region77: #{discriminator_forward.1} parent=1 // pred_fallthru
      _
    // Predicated region
    $region78: #{discriminator_forward.1} parent=1 // pred_check
      _
    $region79: #{discriminator_forward.1} parent=1 // pred_check_branch
      %159 = sbr.rel (0) target = $region81
    $region80: #{discriminator_forward.1} parent=1 // pred_region
      %160 = dma.done [#allocation14], 1024
    $region81: #{discriminator_forward.1} parent=1 // pred_fallthru
      _
    // Predicated region
    $region82: #{discriminator_forward.1} parent=1 // pred_check
      _
    $region83: #{discriminator_forward.1} parent=1 // pred_check_branch
      %162 = sbr.rel (0) target = $region85
    $region84: #{discriminator_forward.1} parent=1 // pred_region
      %163 = dma.done [#allocation17], 16
    $region85: #{discriminator_forward.1} parent=1 // pred_fallthru
      _
    %v165 = vld [vmem:[%s0] sm:$0xff]
    %v166 = vld [vmem:[%s0 + $0x8] sm:$0xff]
    %v167 = vld [vmem:[%s0 + $0x10] sm:$0xff]
    %v168 = vld [vmem:[%s0 + $0x18] sm:$0xff]
    %v169 = vld [vmem:[#allocation2] sm:$0xff]
    %v170 = vld [vmem:[#allocation2 + $0x8] sm:$0xff]
    %v171 = vld [vmem:[#allocation2 + $0x10] sm:$0xff]
    %v172 = vld [vmem:[#allocation2 + $0x18] sm:$0xff]
    %v173 = vld [vmem:[#allocation2 + $0x20] sm:$0xff]
    %v174 = vld [vmem:[#allocation2 + $0x28] sm:$0xff]
    %v175 = vld [vmem:[#allocation2 + $0x30] sm:$0xff]
    %v176 = vld [vmem:[#allocation2 + $0x38] sm:$0xff]
    %v177 = vld [vmem:[#allocation2 + $0x40] sm:$0xff]
    %v178 = vld [vmem:[#allocation2 + $0x48] sm:$0xff]
    %v179 = vld [vmem:[#allocation2 + $0x50] sm:$0xff]
    %v180 = vld [vmem:[#allocation2 + $0x58] sm:$0xff]
    %v181 = vld [vmem:[#allocation2 + $0x60] sm:$0xff]
    %v182 = vld [vmem:[#allocation2 + $0x68] sm:$0xff]
    %v183 = vld [vmem:[#allocation2 + $0x70] sm:$0xff]
    %v184 = vld [vmem:[#allocation2 + $0x78] sm:$0xff]
    %v185 = vld [vmem:[#allocation2 + $0x80] sm:$0xff]
    %v186 = vld [vmem:[#allocation2 + $0x88] sm:$0xff]
    %v187 = vld [vmem:[#allocation2 + $0x90] sm:$0xff]
    %v188 = vld [vmem:[#allocation2 + $0x98] sm:$0xff]
    %v189 = vld [vmem:[#allocation2 + $0xa0] sm:$0xff]
    %v190 = vld [vmem:[#allocation2 + $0xa8] sm:$0xff]
    %v191 = vld [vmem:[#allocation2 + $0xb0] sm:$0xff]
    %v192 = vld [vmem:[#allocation2 + $0xb8] sm:$0xff]
    %v193 = vld [vmem:[#allocation2 + $0xc0] sm:$0xff]
    %v194 = vld [vmem:[#allocation2 + $0xc8] sm:$0xff]
    %v195 = vld [vmem:[#allocation2 + $0xd0] sm:$0xff]
    %v196 = vld [vmem:[#allocation2 + $0xd8] sm:$0xff]
    %v197 = vld [vmem:[#allocation2 + $0xe0] sm:$0xff]
    %v198 = vld [vmem:[#allocation2 + $0xe8] sm:$0xff]
    %v199 = vld [vmem:[#allocation2 + $0xf0] sm:$0xff]
    %v200 = vld [vmem:[#allocation2 + $0xf8] sm:$0xff]
    %v201 = vld [vmem:[#allocation2 + $0x100] sm:$0xff]
    %v202 = vld [vmem:[#allocation2 + $0x108] sm:$0xff]
    %v203 = vld [vmem:[#allocation2 + $0x110] sm:$0xff]
    %v204 = vld [vmem:[#allocation2 + $0x118] sm:$0xff]
    %v205 = vld [vmem:[#allocation2 + $0x120] sm:$0xff]
    %v206 = vld [vmem:[#allocation2 + $0x128] sm:$0xff]
    %v207 = vld [vmem:[#allocation2 + $0x130] sm:$0xff]
    %v208 = vld [vmem:[#allocation2 + $0x138] sm:$0xff]
    %v209 = vld [vmem:[#allocation2 + $0x140] sm:$0xff]
    %v210 = vld [vmem:[#allocation2 + $0x148] sm:$0xff]
    %v211 = vld [vmem:[#allocation2 + $0x150] sm:$0xff]
    %v212 = vld [vmem:[#allocation2 + $0x158] sm:$0xff]
    %v213 = vld [vmem:[#allocation2 + $0x160] sm:$0xff]
    %v214 = vld [vmem:[#allocation2 + $0x168] sm:$0xff]
    %v215 = vld [vmem:[#allocation2 + $0x170] sm:$0xff]
    %v216 = vld [vmem:[#allocation2 + $0x178] sm:$0xff]
    %v217 = vld [vmem:[#allocation2 + $0x180] sm:$0xff]
    %v218 = vld [vmem:[#allocation2 + $0x188] sm:$0xff]
    %v219 = vld [vmem:[#allocation2 + $0x190] sm:$0xff]
    %v220 = vld [vmem:[#allocation2 + $0x198] sm:$0xff]
    %v221 = vld [vmem:[#allocation2 + $0x1a0] sm:$0xff]
    %v222 = vld [vmem:[#allocation2 + $0x1a8] sm:$0xff]
    %v223 = vld [vmem:[#allocation2 + $0x1b0] sm:$0xff]
    %v224 = vld [vmem:[#allocation2 + $0x1b8] sm:$0xff]
    %v225 = vld [vmem:[#allocation2 + $0x1c0] sm:$0xff]
    %v226 = vld [vmem:[#allocation2 + $0x1c8] sm:$0xff]
    %v227 = vld [vmem:[#allocation2 + $0x1d0] sm:$0xff]
    %v228 = vld [vmem:[#allocation2 + $0x1d8] sm:$0xff]
    %v229 = vld [vmem:[#allocation2 + $0x1e0] sm:$0xff]
    %v230 = vld [vmem:[#allocation2 + $0x1e8] sm:$0xff]
    %v231 = vld [vmem:[#allocation2 + $0x1f0] sm:$0xff]
    %v232 = vld [vmem:[#allocation2 + $0x1f8] sm:$0xff]
    %v233 = vld [vmem:[#allocation2 + $0x200] sm:$0xff]
    %v234 = vld [vmem:[#allocation2 + $0x208] sm:$0xff]
    %v235 = vld [vmem:[#allocation2 + $0x210] sm:$0xff]
    %v236 = vld [vmem:[#allocation2 + $0x218] sm:$0xff]
    %v237 = vld [vmem:[#allocation2 + $0x220] sm:$0xff]
    %v238 = vld [vmem:[#allocation2 + $0x228] sm:$0xff]
    %v239 = vld [vmem:[#allocation2 + $0x230] sm:$0xff]
    %v240 = vld [vmem:[#allocation2 + $0x238] sm:$0xff]
    %v241 = vld [vmem:[#allocation2 + $0x240] sm:$0xff]
    %v242 = vld [vmem:[#allocation2 + $0x248] sm:$0xff]
    %v243 = vld [vmem:[#allocation2 + $0x250] sm:$0xff]
    %v244 = vld [vmem:[#allocation2 + $0x258] sm:$0xff]
    %v245 = vld [vmem:[#allocation2 + $0x260] sm:$0xff]
    %v246 = vld [vmem:[#allocation2 + $0x268] sm:$0xff]
    %v247 = vld [vmem:[#allocation2 + $0x270] sm:$0xff]
    %v248 = vld [vmem:[#allocation2 + $0x278] sm:$0xff]
    %v249 = vld [vmem:[#allocation2 + $0x280] sm:$0xff]
    %v250 = vld [vmem:[#allocation2 + $0x288] sm:$0xff]
    %v251 = vld [vmem:[#allocation2 + $0x290] sm:$0xff]
    %v252 = vld [vmem:[#allocation2 + $0x298] sm:$0xff]
    %v253 = vld [vmem:[#allocation2 + $0x2a0] sm:$0xff]
    %v254 = vld [vmem:[#allocation2 + $0x2a8] sm:$0xff]
    %v255 = vld [vmem:[#allocation2 + $0x2b0] sm:$0xff]
    %v256 = vld [vmem:[#allocation2 + $0x2b8] sm:$0xff]
    %v257 = vld [vmem:[#allocation2 + $0x2c0] sm:$0xff]
    %v258 = vld [vmem:[#allocation2 + $0x2c8] sm:$0xff]
    %v259 = vld [vmem:[#allocation2 + $0x2d0] sm:$0xff]
    %v260 = vld [vmem:[#allocation2 + $0x2d8] sm:$0xff]
    %v261 = vld [vmem:[#allocation2 + $0x2e0] sm:$0xff]
    %v262 = vld [vmem:[#allocation2 + $0x2e8] sm:$0xff]
    %v263 = vld [vmem:[#allocation2 + $0x2f0] sm:$0xff]
    %v264 = vld [vmem:[#allocation2 + $0x2f8] sm:$0xff]
    %v265 = vld [vmem:[#allocation2 + $0x300] sm:$0xff]
    %v266 = vld [vmem:[#allocation2 + $0x308] sm:$0xff]
    %v267 = vld [vmem:[#allocation2 + $0x310] sm:$0xff]
    %v268 = vld [vmem:[#allocation2 + $0x318] sm:$0xff]
    %v269 = vld [vmem:[#allocation2 + $0x320] sm:$0xff]
    %v270 = vld [vmem:[#allocation2 + $0x328] sm:$0xff]
    %v271 = vld [vmem:[#allocation2 + $0x330] sm:$0xff]
    %v272 = vld [vmem:[#allocation2 + $0x338] sm:$0xff]
    %v273 = vld [vmem:[#allocation2 + $0x340] sm:$0xff]
    %v274 = vld [vmem:[#allocation2 + $0x348] sm:$0xff]
    %v275 = vld [vmem:[#allocation2 + $0x350] sm:$0xff]
    %v276 = vld [vmem:[#allocation2 + $0x358] sm:$0xff]
    %v277 = vld [vmem:[#allocation2 + $0x360] sm:$0xff]
    %v278 = vld [vmem:[#allocation2 + $0x368] sm:$0xff]
    %v279 = vld [vmem:[#allocation2 + $0x370] sm:$0xff]
    %v280 = vld [vmem:[#allocation2 + $0x378] sm:$0xff]
    %v281 = vld [vmem:[#allocation2 + $0x380] sm:$0xff]
    %v282 = vld [vmem:[#allocation2 + $0x388] sm:$0xff]
    %v283 = vld [vmem:[#allocation2 + $0x390] sm:$0xff]
    %v284 = vld [vmem:[#allocation2 + $0x398] sm:$0xff]
    %v285 = vld [vmem:[#allocation2 + $0x3a0] sm:$0xff]
    %v286 = vld [vmem:[#allocation2 + $0x3a8] sm:$0xff]
    %v287 = vld [vmem:[#allocation2 + $0x3b0] sm:$0xff]
    %v288 = vld [vmem:[#allocation2 + $0x3b8] sm:$0xff]
    %v289 = vld [vmem:[#allocation2 + $0x3c0] sm:$0xff]
    %v290 = vld [vmem:[#allocation2 + $0x3c8] sm:$0xff]
    %v291 = vld [vmem:[#allocation2 + $0x3d0] sm:$0xff]
    %v292 = vld [vmem:[#allocation2 + $0x3d8] sm:$0xff]
    %v293 = vld [vmem:[#allocation2 + $0x3e0] sm:$0xff]
    %v294 = vld [vmem:[#allocation2 + $0x3e8] sm:$0xff]
    %v295 = vld [vmem:[#allocation2 + $0x3f0] sm:$0xff]
    %v296 = vld [vmem:[#allocation2 + $0x3f8] sm:$0xff]
    %v297 = vld [vmem:[#allocation2 + $0x400] sm:$0xff]
    %v298 = vld [vmem:[#allocation2 + $0x408] sm:$0xff]
    %v299 = vld [vmem:[#allocation2 + $0x410] sm:$0xff]
    %v300 = vld [vmem:[#allocation2 + $0x418] sm:$0xff]
    %v301 = vld [vmem:[#allocation2 + $0x420] sm:$0xff]
    %v302 = vld [vmem:[#allocation2 + $0x428] sm:$0xff]
    %v303 = vld [vmem:[#allocation2 + $0x430] sm:$0xff]
    %v304 = vld [vmem:[#allocation2 + $0x438] sm:$0xff]
    %v305 = vld [vmem:[#allocation2 + $0x440] sm:$0xff]
    %v306 = vld [vmem:[#allocation2 + $0x448] sm:$0xff]
    %v307 = vld [vmem:[#allocation2 + $0x450] sm:$0xff]
    %v308 = vld [vmem:[#allocation2 + $0x458] sm:$0xff]
    %v309 = vld [vmem:[#allocation2 + $0x460] sm:$0xff]
    %v310 = vld [vmem:[#allocation2 + $0x468] sm:$0xff]
    %v311 = vld [vmem:[#allocation2 + $0x470] sm:$0xff]
    %v312 = vld [vmem:[#allocation2 + $0x478] sm:$0xff]
    %v313 = vld [vmem:[#allocation2 + $0x480] sm:$0xff]
    %v314 = vld [vmem:[#allocation2 + $0x488] sm:$0xff]
    %v315 = vld [vmem:[#allocation2 + $0x490] sm:$0xff]
    %v316 = vld [vmem:[#allocation2 + $0x498] sm:$0xff]
    %v317 = vld [vmem:[#allocation2 + $0x4a0] sm:$0xff]
    %v318 = vld [vmem:[#allocation2 + $0x4a8] sm:$0xff]
    %v319 = vld [vmem:[#allocation2 + $0x4b0] sm:$0xff]
    %v320 = vld [vmem:[#allocation2 + $0x4b8] sm:$0xff]
    %v321 = vld [vmem:[#allocation2 + $0x4c0] sm:$0xff]
    %v322 = vld [vmem:[#allocation2 + $0x4c8] sm:$0xff]
    %v323 = vld [vmem:[#allocation2 + $0x4d0] sm:$0xff]
    %v324 = vld [vmem:[#allocation2 + $0x4d8] sm:$0xff]
    %v325 = vld [vmem:[#allocation2 + $0x4e0] sm:$0xff]
    %v326 = vld [vmem:[#allocation2 + $0x4e8] sm:$0xff]
    %v327 = vld [vmem:[#allocation2 + $0x4f0] sm:$0xff]
    %v328 = vld [vmem:[#allocation2 + $0x4f8] sm:$0xff]
    %v329 = vld [vmem:[#allocation2 + $0x500] sm:$0xff]
    %v330 = vld [vmem:[#allocation2 + $0x508] sm:$0xff]
    %v331 = vld [vmem:[#allocation2 + $0x510] sm:$0xff]
    %v332 = vld [vmem:[#allocation2 + $0x518] sm:$0xff]
    %v333 = vld [vmem:[#allocation2 + $0x520] sm:$0xff]
    %v334 = vld [vmem:[#allocation2 + $0x528] sm:$0xff]
    %v335 = vld [vmem:[#allocation2 + $0x530] sm:$0xff]
    %v336 = vld [vmem:[#allocation2 + $0x538] sm:$0xff]
    %v337 = vld [vmem:[#allocation2 + $0x540] sm:$0xff]
    %v338 = vld [vmem:[#allocation2 + $0x548] sm:$0xff]
    %v339 = vld [vmem:[#allocation2 + $0x550] sm:$0xff]
    %v340 = vld [vmem:[#allocation2 + $0x558] sm:$0xff]
    %v341 = vld [vmem:[#allocation2 + $0x560] sm:$0xff]
    %v342 = vld [vmem:[#allocation2 + $0x568] sm:$0xff]
    %v343 = vld [vmem:[#allocation2 + $0x570] sm:$0xff]
    %v344 = vld [vmem:[#allocation2 + $0x578] sm:$0xff]
    %v345 = vld [vmem:[#allocation2 + $0x580] sm:$0xff]
    %v346 = vld [vmem:[#allocation2 + $0x588] sm:$0xff]
    %v347 = vld [vmem:[#allocation2 + $0x590] sm:$0xff]
    %v348 = vld [vmem:[#allocation2 + $0x598] sm:$0xff]
    %v349 = vld [vmem:[#allocation2 + $0x5a0] sm:$0xff]
    %v350 = vld [vmem:[#allocation2 + $0x5a8] sm:$0xff]
    %v351 = vld [vmem:[#allocation2 + $0x5b0] sm:$0xff]
    %v352 = vld [vmem:[#allocation2 + $0x5b8] sm:$0xff]
    %v353 = vld [vmem:[#allocation2 + $0x5c0] sm:$0xff]
    %v354 = vld [vmem:[#allocation2 + $0x5c8] sm:$0xff]
    %v355 = vld [vmem:[#allocation2 + $0x5d0] sm:$0xff]
    %v356 = vld [vmem:[#allocation2 + $0x5d8] sm:$0xff]
    %v357 = vld [vmem:[#allocation2 + $0x5e0] sm:$0xff]
    %v358 = vld [vmem:[#allocation2 + $0x5e8] sm:$0xff]
    %v359 = vld [vmem:[#allocation2 + $0x5f0] sm:$0xff]
    %v360 = vld [vmem:[#allocation2 + $0x5f8] sm:$0xff]
    %v361 = vld [vmem:[#allocation2 + $0x600] sm:$0xff]
    %v362 = vld [vmem:[#allocation2 + $0x608] sm:$0xff]
    %v363 = vld [vmem:[#allocation2 + $0x610] sm:$0xff]
    %v364 = vld [vmem:[#allocation2 + $0x618] sm:$0xff]
    %v365 = vld [vmem:[#allocation2 + $0x620] sm:$0xff]
    %v366 = vld [vmem:[#allocation2 + $0x628] sm:$0xff]
    %v367 = vld [vmem:[#allocation2 + $0x630] sm:$0xff]
    %v368 = vld [vmem:[#allocation2 + $0x638] sm:$0xff]
    %v369 = vld [vmem:[#allocation2 + $0x640] sm:$0xff]
    %v370 = vld [vmem:[#allocation2 + $0x648] sm:$0xff]
    %v371 = vld [vmem:[#allocation2 + $0x650] sm:$0xff]
    %v372 = vld [vmem:[#allocation2 + $0x658] sm:$0xff]
    %v373 = vld [vmem:[#allocation2 + $0x660] sm:$0xff]
    %v374 = vld [vmem:[#allocation2 + $0x668] sm:$0xff]
    %v375 = vld [vmem:[#allocation2 + $0x670] sm:$0xff]
    %v376 = vld [vmem:[#allocation2 + $0x678] sm:$0xff]
    %v377 = vld [vmem:[#allocation2 + $0x680] sm:$0xff]
    %v378 = vld [vmem:[#allocation2 + $0x688] sm:$0xff]
    %v379 = vld [vmem:[#allocation2 + $0x690] sm:$0xff]
    %v380 = vld [vmem:[#allocation2 + $0x698] sm:$0xff]
    %v381 = vld [vmem:[#allocation2 + $0x6a0] sm:$0xff]
    %v382 = vld [vmem:[#allocation2 + $0x6a8] sm:$0xff]
    %v383 = vld [vmem:[#allocation2 + $0x6b0] sm:$0xff]
    %v384 = vld [vmem:[#allocation2 + $0x6b8] sm:$0xff]
    %v385 = vld [vmem:[#allocation2 + $0x6c0] sm:$0xff]
    %v386 = vld [vmem:[#allocation2 + $0x6c8] sm:$0xff]
    %v387 = vld [vmem:[#allocation2 + $0x6d0] sm:$0xff]
    %v388 = vld [vmem:[#allocation2 + $0x6d8] sm:$0xff]
    %v389 = vld [vmem:[#allocation2 + $0x6e0] sm:$0xff]
    %v390 = vld [vmem:[#allocation2 + $0x6e8] sm:$0xff]
    %v391 = vld [vmem:[#allocation2 + $0x6f0] sm:$0xff]
    %v392 = vld [vmem:[#allocation2 + $0x6f8] sm:$0xff]
    %v393 = vld [vmem:[#allocation2 + $0x700] sm:$0xff]
    %v394 = vld [vmem:[#allocation2 + $0x708] sm:$0xff]
    %v395 = vld [vmem:[#allocation2 + $0x710] sm:$0xff]
    %v396 = vld [vmem:[#allocation2 + $0x718] sm:$0xff]
    %v397 = vld [vmem:[#allocation2 + $0x720] sm:$0xff]
    %v398 = vld [vmem:[#allocation2 + $0x728] sm:$0xff]
    %v399 = vld [vmem:[#allocation2 + $0x730] sm:$0xff]
    %v400 = vld [vmem:[#allocation2 + $0x738] sm:$0xff]
    %v401 = vld [vmem:[#allocation2 + $0x740] sm:$0xff]
    %v402 = vld [vmem:[#allocation2 + $0x748] sm:$0xff]
    %v403 = vld [vmem:[#allocation2 + $0x750] sm:$0xff]
    %v404 = vld [vmem:[#allocation2 + $0x758] sm:$0xff]
    %v405 = vld [vmem:[#allocation2 + $0x760] sm:$0xff]
    %v406 = vld [vmem:[#allocation2 + $0x768] sm:$0xff]
    %v407 = vld [vmem:[#allocation2 + $0x770] sm:$0xff]
    %v408 = vld [vmem:[#allocation2 + $0x778] sm:$0xff]
    %v409 = vld [vmem:[#allocation2 + $0x780] sm:$0xff]
    %v410 = vld [vmem:[#allocation2 + $0x788] sm:$0xff]
    %v411 = vld [vmem:[#allocation2 + $0x790] sm:$0xff]
    %v412 = vld [vmem:[#allocation2 + $0x798] sm:$0xff]
    %v413 = vld [vmem:[#allocation2 + $0x7a0] sm:$0xff]
    %v414 = vld [vmem:[#allocation2 + $0x7a8] sm:$0xff]
    %v415 = vld [vmem:[#allocation2 + $0x7b0] sm:$0xff]
    %v416 = vld [vmem:[#allocation2 + $0x7b8] sm:$0xff]
    %v417 = vld [vmem:[#allocation2 + $0x7c0] sm:$0xff]
    %v418 = vld [vmem:[#allocation2 + $0x7c8] sm:$0xff]
    %v419 = vld [vmem:[#allocation2 + $0x7d0] sm:$0xff]
    %v420 = vld [vmem:[#allocation2 + $0x7d8] sm:$0xff]
    %v421 = vld [vmem:[#allocation2 + $0x7e0] sm:$0xff]
    %v422 = vld [vmem:[#allocation2 + $0x7e8] sm:$0xff]
    %v423 = vld [vmem:[#allocation2 + $0x7f0] sm:$0xff]
    %v424 = vld [vmem:[#allocation2 + $0x7f8] sm:$0xff]
    %v425 = vld [vmem:[#allocation2 + $0x800] sm:$0xff]
    %v426 = vld [vmem:[#allocation2 + $0x808] sm:$0xff]
    %v427 = vld [vmem:[#allocation2 + $0x810] sm:$0xff]
    %v428 = vld [vmem:[#allocation2 + $0x818] sm:$0xff]
    %v429 = vld [vmem:[#allocation2 + $0x820] sm:$0xff]
    %v430 = vld [vmem:[#allocation2 + $0x828] sm:$0xff]
    %v431 = vld [vmem:[#allocation2 + $0x830] sm:$0xff]
    %v432 = vld [vmem:[#allocation2 + $0x838] sm:$0xff]
    %v433 = vld [vmem:[#allocation2 + $0x840] sm:$0xff]
    %v434 = vld [vmem:[#allocation2 + $0x848] sm:$0xff]
    %v435 = vld [vmem:[#allocation2 + $0x850] sm:$0xff]
    %v436 = vld [vmem:[#allocation2 + $0x858] sm:$0xff]
    %v437 = vld [vmem:[#allocation2 + $0x860] sm:$0xff]
    %v438 = vld [vmem:[#allocation2 + $0x868] sm:$0xff]
    %v439 = vld [vmem:[#allocation2 + $0x870] sm:$0xff]
    %v440 = vld [vmem:[#allocation2 + $0x878] sm:$0xff]
    %v441 = vld [vmem:[#allocation2 + $0x880] sm:$0xff]
    %v442 = vld [vmem:[#allocation2 + $0x888] sm:$0xff]
    %v443 = vld [vmem:[#allocation2 + $0x890] sm:$0xff]
    %v444 = vld [vmem:[#allocation2 + $0x898] sm:$0xff]
    %v445 = vld [vmem:[#allocation2 + $0x8a0] sm:$0xff]
    %v446 = vld [vmem:[#allocation2 + $0x8a8] sm:$0xff]
    %v447 = vld [vmem:[#allocation2 + $0x8b0] sm:$0xff]
    %v448 = vld [vmem:[#allocation2 + $0x8b8] sm:$0xff]
    %v449 = vld [vmem:[#allocation2 + $0x8c0] sm:$0xff]
    %v450 = vld [vmem:[#allocation2 + $0x8c8] sm:$0xff]
    %v451 = vld [vmem:[#allocation2 + $0x8d0] sm:$0xff]
    %v452 = vld [vmem:[#allocation2 + $0x8d8] sm:$0xff]
    %v453 = vld [vmem:[#allocation2 + $0x8e0] sm:$0xff]
    %v454 = vld [vmem:[#allocation2 + $0x8e8] sm:$0xff]
    %v455 = vld [vmem:[#allocation2 + $0x8f0] sm:$0xff]
    %v456 = vld [vmem:[#allocation2 + $0x8f8] sm:$0xff]
    %v457 = vld [vmem:[#allocation2 + $0x900] sm:$0xff]
    %v458 = vld [vmem:[#allocation2 + $0x908] sm:$0xff]
    %v459 = vld [vmem:[#allocation2 + $0x910] sm:$0xff]
    %v460 = vld [vmem:[#allocation2 + $0x918] sm:$0xff]
    %v461 = vld [vmem:[#allocation2 + $0x920] sm:$0xff]
    %v462 = vld [vmem:[#allocation2 + $0x928] sm:$0xff]
    %v463 = vld [vmem:[#allocation2 + $0x930] sm:$0xff]
    %v464 = vld [vmem:[#allocation2 + $0x938] sm:$0xff]
    %v465 = vld [vmem:[#allocation2 + $0x940] sm:$0xff]
    %v466 = vld [vmem:[#allocation2 + $0x948] sm:$0xff]
    %v467 = vld [vmem:[#allocation2 + $0x950] sm:$0xff]
    %v468 = vld [vmem:[#allocation2 + $0x958] sm:$0xff]
    %v469 = vld [vmem:[#allocation2 + $0x960] sm:$0xff]
    %v470 = vld [vmem:[#allocation2 + $0x968] sm:$0xff]
    %v471 = vld [vmem:[#allocation2 + $0x970] sm:$0xff]
    %v472 = vld [vmem:[#allocation2 + $0x978] sm:$0xff]
    %v473 = vld [vmem:[#allocation2 + $0x980] sm:$0xff]
    %v474 = vld [vmem:[#allocation2 + $0x988] sm:$0xff]
    %v475 = vld [vmem:[#allocation2 + $0x990] sm:$0xff]
    %v476 = vld [vmem:[#allocation2 + $0x998] sm:$0xff]
    %v477 = vld [vmem:[#allocation2 + $0x9a0] sm:$0xff]
    %v478 = vld [vmem:[#allocation2 + $0x9a8] sm:$0xff]
    %v479 = vld [vmem:[#allocation2 + $0x9b0] sm:$0xff]
    %v480 = vld [vmem:[#allocation2 + $0x9b8] sm:$0xff]
    %v481 = vld [vmem:[#allocation2 + $0x9c0] sm:$0xff]
    %v482 = vld [vmem:[#allocation2 + $0x9c8] sm:$0xff]
    %v483 = vld [vmem:[#allocation2 + $0x9d0] sm:$0xff]
    %v484 = vld [vmem:[#allocation2 + $0x9d8] sm:$0xff]
    %v485 = vld [vmem:[#allocation2 + $0x9e0] sm:$0xff]
    %v486 = vld [vmem:[#allocation2 + $0x9e8] sm:$0xff]
    %v487 = vld [vmem:[#allocation2 + $0x9f0] sm:$0xff]
    %v488 = vld [vmem:[#allocation2 + $0x9f8] sm:$0xff]
    %v489 = vld [vmem:[#allocation2 + $0xa00] sm:$0xff]
    %v490 = vld [vmem:[#allocation2 + $0xa08] sm:$0xff]
    %v491 = vld [vmem:[#allocation2 + $0xa10] sm:$0xff]
    %v492 = vld [vmem:[#allocation2 + $0xa18] sm:$0xff]
    %v493 = vld [vmem:[#allocation2 + $0xa20] sm:$0xff]
    %v494 = vld [vmem:[#allocation2 + $0xa28] sm:$0xff]
    %v495 = vld [vmem:[#allocation2 + $0xa30] sm:$0xff]
    %v496 = vld [vmem:[#allocation2 + $0xa38] sm:$0xff]
    %v497 = vld [vmem:[#allocation2 + $0xa40] sm:$0xff]
    %v498 = vld [vmem:[#allocation2 + $0xa48] sm:$0xff]
    %v499 = vld [vmem:[#allocation2 + $0xa50] sm:$0xff]
    %v500 = vld [vmem:[#allocation2 + $0xa58] sm:$0xff]
    %v501 = vld [vmem:[#allocation2 + $0xa60] sm:$0xff]
    %v502 = vld [vmem:[#allocation2 + $0xa68] sm:$0xff]
    %v503 = vld [vmem:[#allocation2 + $0xa70] sm:$0xff]
    %v504 = vld [vmem:[#allocation2 + $0xa78] sm:$0xff]
    %v505 = vld [vmem:[#allocation2 + $0xa80] sm:$0xff]
    %v506 = vld [vmem:[#allocation2 + $0xa88] sm:$0xff]
    %v507 = vld [vmem:[#allocation2 + $0xa90] sm:$0xff]
    %v508 = vld [vmem:[#allocation2 + $0xa98] sm:$0xff]
    %v509 = vld [vmem:[#allocation2 + $0xaa0] sm:$0xff]
    %v510 = vld [vmem:[#allocation2 + $0xaa8] sm:$0xff]
    %v511 = vld [vmem:[#allocation2 + $0xab0] sm:$0xff]
    %v512 = vld [vmem:[#allocation2 + $0xab8] sm:$0xff]
    %v513 = vld [vmem:[#allocation2 + $0xac0] sm:$0xff]
    %v514 = vld [vmem:[#allocation2 + $0xac8] sm:$0xff]
    %v515 = vld [vmem:[#allocation2 + $0xad0] sm:$0xff]
    %v516 = vld [vmem:[#allocation2 + $0xad8] sm:$0xff]
    %v517 = vld [vmem:[#allocation2 + $0xae0] sm:$0xff]
    %v518 = vld [vmem:[#allocation2 + $0xae8] sm:$0xff]
    %v519 = vld [vmem:[#allocation2 + $0xaf0] sm:$0xff]
    %v520 = vld [vmem:[#allocation2 + $0xaf8] sm:$0xff]
    %v521 = vld [vmem:[#allocation2 + $0xb00] sm:$0xff]
    %v522 = vld [vmem:[#allocation2 + $0xb08] sm:$0xff]
    %v523 = vld [vmem:[#allocation2 + $0xb10] sm:$0xff]
    %v524 = vld [vmem:[#allocation2 + $0xb18] sm:$0xff]
    %v525 = vld [vmem:[#allocation2 + $0xb20] sm:$0xff]
    %v526 = vld [vmem:[#allocation2 + $0xb28] sm:$0xff]
    %v527 = vld [vmem:[#allocation2 + $0xb30] sm:$0xff]
    %v528 = vld [vmem:[#allocation2 + $0xb38] sm:$0xff]
    %v529 = vld [vmem:[#allocation2 + $0xb40] sm:$0xff]
    %v530 = vld [vmem:[#allocation2 + $0xb48] sm:$0xff]
    %v531 = vld [vmem:[#allocation2 + $0xb50] sm:$0xff]
    %v532 = vld [vmem:[#allocation2 + $0xb58] sm:$0xff]
    %v533 = vld [vmem:[#allocation2 + $0xb60] sm:$0xff]
    %v534 = vld [vmem:[#allocation2 + $0xb68] sm:$0xff]
    %v535 = vld [vmem:[#allocation2 + $0xb70] sm:$0xff]
    %v536 = vld [vmem:[#allocation2 + $0xb78] sm:$0xff]
    %v537 = vld [vmem:[#allocation2 + $0xb80] sm:$0xff]
    %v538 = vld [vmem:[#allocation2 + $0xb88] sm:$0xff]
    %v539 = vld [vmem:[#allocation2 + $0xb90] sm:$0xff]
    %v540 = vld [vmem:[#allocation2 + $0xb98] sm:$0xff]
    %v541 = vld [vmem:[#allocation2 + $0xba0] sm:$0xff]
    %v542 = vld [vmem:[#allocation2 + $0xba8] sm:$0xff]
    %v543 = vld [vmem:[#allocation2 + $0xbb0] sm:$0xff]
    %v544 = vld [vmem:[#allocation2 + $0xbb8] sm:$0xff]
    %v545 = vld [vmem:[#allocation2 + $0xbc0] sm:$0xff]
    %v546 = vld [vmem:[#allocation2 + $0xbc8] sm:$0xff]
    %v547 = vld [vmem:[#allocation2 + $0xbd0] sm:$0xff]
    %v548 = vld [vmem:[#allocation2 + $0xbd8] sm:$0xff]
    %v549 = vld [vmem:[#allocation2 + $0xbe0] sm:$0xff]
    %v550 = vld [vmem:[#allocation2 + $0xbe8] sm:$0xff]
    %v551 = vld [vmem:[#allocation2 + $0xbf0] sm:$0xff]
    %v552 = vld [vmem:[#allocation2 + $0xbf8] sm:$0xff]
    %v553 = vld [vmem:[#allocation2 + $0xc00] sm:$0xff]
    %v554 = vld [vmem:[#allocation2 + $0xc08] sm:$0xff]
    %v555 = vld [vmem:[#allocation2 + $0xc10] sm:$0xff]
    %v556 = vld [vmem:[#allocation2 + $0xc18] sm:$0xff]
    %v557 = vld [vmem:[#allocation2 + $0xc20] sm:$0xff]
    %v558 = vld [vmem:[#allocation2 + $0xc28] sm:$0xff]
    %v559 = vld [vmem:[#allocation2 + $0xc30] sm:$0xff]
    %v560 = vld [vmem:[#allocation2 + $0xc38] sm:$0xff]
    %v561 = vld [vmem:[#allocation2 + $0xc40] sm:$0xff]
    %v562 = vld [vmem:[#allocation2 + $0xc48] sm:$0xff]
    %v563 = vld [vmem:[#allocation2 + $0xc50] sm:$0xff]
    %v564 = vld [vmem:[#allocation2 + $0xc58] sm:$0xff]
    %v565 = vld [vmem:[#allocation2 + $0xc60] sm:$0xff]
    %v566 = vld [vmem:[#allocation2 + $0xc68] sm:$0xff]
    %v567 = vld [vmem:[#allocation2 + $0xc70] sm:$0xff]
    %v568 = vld [vmem:[#allocation2 + $0xc78] sm:$0xff]
    %v569 = vld [vmem:[#allocation2 + $0xc80] sm:$0xff]
    %v570 = vld [vmem:[#allocation2 + $0xc88] sm:$0xff]
    %v571 = vld [vmem:[#allocation2 + $0xc90] sm:$0xff]
    %v572 = vld [vmem:[#allocation2 + $0xc98] sm:$0xff]
    %v573 = vld [vmem:[#allocation2 + $0xca0] sm:$0xff]
    %v574 = vld [vmem:[#allocation2 + $0xca8] sm:$0xff]
    %v575 = vld [vmem:[#allocation2 + $0xcb0] sm:$0xff]
    %v576 = vld [vmem:[#allocation2 + $0xcb8] sm:$0xff]
    %v577 = vld [vmem:[#allocation2 + $0xcc0] sm:$0xff]
    %v578 = vld [vmem:[#allocation2 + $0xcc8] sm:$0xff]
    %v579 = vld [vmem:[#allocation2 + $0xcd0] sm:$0xff]
    %v580 = vld [vmem:[#allocation2 + $0xcd8] sm:$0xff]
    %v581 = vld [vmem:[#allocation2 + $0xce0] sm:$0xff]
    %v582 = vld [vmem:[#allocation2 + $0xce8] sm:$0xff]
    %v583 = vld [vmem:[#allocation2 + $0xcf0] sm:$0xff]
    %v584 = vld [vmem:[#allocation2 + $0xcf8] sm:$0xff]
    %v585 = vld [vmem:[#allocation2 + $0xd00] sm:$0xff]
    %v586 = vld [vmem:[#allocation2 + $0xd08] sm:$0xff]
    %v587 = vld [vmem:[#allocation2 + $0xd10] sm:$0xff]
    %v588 = vld [vmem:[#allocation2 + $0xd18] sm:$0xff]
    %v589 = vld [vmem:[#allocation2 + $0xd20] sm:$0xff]
    %v590 = vld [vmem:[#allocation2 + $0xd28] sm:$0xff]
    %v591 = vld [vmem:[#allocation2 + $0xd30] sm:$0xff]
    %v592 = vld [vmem:[#allocation2 + $0xd38] sm:$0xff]
    %v593 = vld [vmem:[#allocation2 + $0xd40] sm:$0xff]
    %v594 = vld [vmem:[#allocation2 + $0xd48] sm:$0xff]
    %v595 = vld [vmem:[#allocation2 + $0xd50] sm:$0xff]
    %v596 = vld [vmem:[#allocation2 + $0xd58] sm:$0xff]
    %v597 = vld [vmem:[#allocation2 + $0xd60] sm:$0xff]
    %v598 = vld [vmem:[#allocation2 + $0xd68] sm:$0xff]
    %v599 = vld [vmem:[#allocation2 + $0xd70] sm:$0xff]
    %v600 = vld [vmem:[#allocation2 + $0xd78] sm:$0xff]
    %v601 = vld [vmem:[#allocation2 + $0xd80] sm:$0xff]
    %v602 = vld [vmem:[#allocation2 + $0xd88] sm:$0xff]
    %v603 = vld [vmem:[#allocation2 + $0xd90] sm:$0xff]
    %v604 = vld [vmem:[#allocation2 + $0xd98] sm:$0xff]
    %v605 = vld [vmem:[#allocation2 + $0xda0] sm:$0xff]
    %v606 = vld [vmem:[#allocation2 + $0xda8] sm:$0xff]
    %v607 = vld [vmem:[#allocation2 + $0xdb0] sm:$0xff]
    %v608 = vld [vmem:[#allocation2 + $0xdb8] sm:$0xff]
    %v609 = vld [vmem:[#allocation2 + $0xdc0] sm:$0xff]
    %v610 = vld [vmem:[#allocation2 + $0xdc8] sm:$0xff]
    %v611 = vld [vmem:[#allocation2 + $0xdd0] sm:$0xff]
    %v612 = vld [vmem:[#allocation2 + $0xdd8] sm:$0xff]
    %v613 = vld [vmem:[#allocation2 + $0xde0] sm:$0xff]
    %v614 = vld [vmem:[#allocation2 + $0xde8] sm:$0xff]
    %v615 = vld [vmem:[#allocation2 + $0xdf0] sm:$0xff]
    %v616 = vld [vmem:[#allocation2 + $0xdf8] sm:$0xff]
    %v617 = vld [vmem:[#allocation2 + $0xe00] sm:$0xff]
    %v618 = vld [vmem:[#allocation2 + $0xe08] sm:$0xff]
    %v619 = vld [vmem:[#allocation2 + $0xe10] sm:$0xff]
    %v620 = vld [vmem:[#allocation2 + $0xe18] sm:$0xff]
    %v621 = vld [vmem:[#allocation2 + $0xe20] sm:$0xff]
    %v622 = vld [vmem:[#allocation2 + $0xe28] sm:$0xff]
    %v623 = vld [vmem:[#allocation2 + $0xe30] sm:$0xff]
    %v624 = vld [vmem:[#allocation2 + $0xe38] sm:$0xff]
    %v625 = vld [vmem:[#allocation2 + $0xe40] sm:$0xff]
    %v626 = vld [vmem:[#allocation2 + $0xe48] sm:$0xff]
    %v627 = vld [vmem:[#allocation2 + $0xe50] sm:$0xff]
    %v628 = vld [vmem:[#allocation2 + $0xe58] sm:$0xff]
    %v629 = vld [vmem:[#allocation2 + $0xe60] sm:$0xff]
    %v630 = vld [vmem:[#allocation2 + $0xe68] sm:$0xff]
    %v631 = vld [vmem:[#allocation2 + $0xe70] sm:$0xff]
    %v632 = vld [vmem:[#allocation2 + $0xe78] sm:$0xff]
    %v633 = vld [vmem:[#allocation2 + $0xe80] sm:$0xff]
    %v634 = vld [vmem:[#allocation2 + $0xe88] sm:$0xff]
    %v635 = vld [vmem:[#allocation2 + $0xe90] sm:$0xff]
    %v636 = vld [vmem:[#allocation2 + $0xe98] sm:$0xff]
    %v637 = vld [vmem:[#allocation2 + $0xea0] sm:$0xff]
    %v638 = vld [vmem:[#allocation2 + $0xea8] sm:$0xff]
    %v639 = vld [vmem:[#allocation2 + $0xeb0] sm:$0xff]
    %v640 = vld [vmem:[#allocation2 + $0xeb8] sm:$0xff]
    %v641 = vld [vmem:[#allocation2 + $0xec0] sm:$0xff]
    %v642 = vld [vmem:[#allocation2 + $0xec8] sm:$0xff]
    %v643 = vld [vmem:[#allocation2 + $0xed0] sm:$0xff]
    %v644 = vld [vmem:[#allocation2 + $0xed8] sm:$0xff]
    %v645 = vld [vmem:[#allocation2 + $0xee0] sm:$0xff]
    %v646 = vld [vmem:[#allocation2 + $0xee8] sm:$0xff]
    %v647 = vld [vmem:[#allocation2 + $0xef0] sm:$0xff]
    %v648 = vld [vmem:[#allocation2 + $0xef8] sm:$0xff]
    %v649 = vld [vmem:[#allocation2 + $0xf00] sm:$0xff]
    %v650 = vld [vmem:[#allocation2 + $0xf08] sm:$0xff]
    %v651 = vld [vmem:[#allocation2 + $0xf10] sm:$0xff]
    %v652 = vld [vmem:[#allocation2 + $0xf18] sm:$0xff]
    %v653 = vld [vmem:[#allocation2 + $0xf20] sm:$0xff]
    %v654 = vld [vmem:[#allocation2 + $0xf28] sm:$0xff]
    %v655 = vld [vmem:[#allocation2 + $0xf30] sm:$0xff]
    %v656 = vld [vmem:[#allocation2 + $0xf38] sm:$0xff]
    %v657 = vld [vmem:[#allocation2 + $0xf40] sm:$0xff]
    %v658 = vld [vmem:[#allocation2 + $0xf48] sm:$0xff]
    %v659 = vld [vmem:[#allocation2 + $0xf50] sm:$0xff]
    %v660 = vld [vmem:[#allocation2 + $0xf58] sm:$0xff]
    %v661 = vld [vmem:[#allocation2 + $0xf60] sm:$0xff]
    %v662 = vld [vmem:[#allocation2 + $0xf68] sm:$0xff]
    %v663 = vld [vmem:[#allocation2 + $0xf70] sm:$0xff]
    %v664 = vld [vmem:[#allocation2 + $0xf78] sm:$0xff]
    %v665 = vld [vmem:[#allocation2 + $0xf80] sm:$0xff]
    %v666 = vld [vmem:[#allocation2 + $0xf88] sm:$0xff]
    %v667 = vld [vmem:[#allocation2 + $0xf90] sm:$0xff]
    %v668 = vld [vmem:[#allocation2 + $0xf98] sm:$0xff]
    %v669 = vld [vmem:[#allocation2 + $0xfa0] sm:$0xff]
    %v670 = vld [vmem:[#allocation2 + $0xfa8] sm:$0xff]
    %v671 = vld [vmem:[#allocation2 + $0xfb0] sm:$0xff]
    %v672 = vld [vmem:[#allocation2 + $0xfb8] sm:$0xff]
    %v673 = vld [vmem:[#allocation2 + $0xfc0] sm:$0xff]
    %v674 = vld [vmem:[#allocation2 + $0xfc8] sm:$0xff]
    %v675 = vld [vmem:[#allocation2 + $0xfd0] sm:$0xff]
    %v676 = vld [vmem:[#allocation2 + $0xfd8] sm:$0xff]
    %v677 = vld [vmem:[#allocation2 + $0xfe0] sm:$0xff]
    %v678 = vld [vmem:[#allocation2 + $0xfe8] sm:$0xff]
    %v679 = vld [vmem:[#allocation2 + $0xff0] sm:$0xff]
    %v680 = vld [vmem:[#allocation2 + $0xff8] sm:$0xff]
    %v681 = vld [vmem:[#allocation4] sm:$0xff]
    %v683 = vlaneseq
    %v684 = vshrl.u32 %v683, 7
    %v685 = vsub.s32 0, %v684
    %v686 = vrot.slane %v681, %v685
    %v687 = vlaneseq
    %v688 = vshrl.u32 %v687, 7
    %v689 = vsub.s32 1, %v688
    %v690 = vrot.slane %v681, %v689
    %v691 = vlaneseq
    %v692 = vshrl.u32 %v691, 7
    %v693 = vsub.s32 2, %v692
    %v694 = vrot.slane %v681, %v693
    %v695 = vlaneseq
    %v696 = vshrl.u32 %v695, 7
    %v697 = vsub.s32 3, %v696
    %v698 = vrot.slane %v681, %v697
    %v699 = vlaneseq
    %v700 = vshrl.u32 %v699, 7
    %v701 = vsub.s32 4, %v700
    %v702 = vrot.slane %v681, %v701
    %v703 = vlaneseq
    %v704 = vshrl.u32 %v703, 7
    %v705 = vsub.s32 5, %v704
    %v706 = vrot.slane %v681, %v705
    %v707 = vlaneseq
    %v708 = vshrl.u32 %v707, 7
    %v709 = vsub.s32 6, %v708
    %v710 = vrot.slane %v681, %v709
    %v711 = vlaneseq
    %v712 = vshrl.u32 %v711, 7
    %v713 = vsub.s32 7, %v712
    %v714 = vrot.slane %v681, %v713
    %v727 = vunpack.c.l.b16 %v165
    %v728 = vunpack.c.h.b16 %v165
    %v729 = vunpack.c.l.b16 %v166
    %v730 = vunpack.c.h.b16 %v166
    %v731 = vunpack.c.l.b16 %v167
    %v732 = vunpack.c.h.b16 %v167
    %v733 = vunpack.c.l.b16 %v168
    %v734 = vunpack.c.h.b16 %v168
    %v735 = vpack.c.b16 %v727, %v727
    %v736 = vpack.c.b16 %v728, %v728
    %v737 = vpack.c.b16 %v729, %v729
    %v738 = vpack.c.b16 %v730, %v730
    %v739 = vpack.c.b16 %v731, %v731
    %v740 = vpack.c.b16 %v732, %v732
    %v741 = vpack.c.b16 %v733, %v733
    %v742 = vpack.c.b16 %v734, %v734
    %v1263 = vunpack.c.l.b16 %v169
    %v1264 = vunpack.c.h.b16 %v169
    %v1265 = vunpack.c.l.b16 %v170
    %v1266 = vunpack.c.h.b16 %v170
    %v1267 = vunpack.c.l.b16 %v171
    %v1268 = vunpack.c.h.b16 %v171
    %v1269 = vunpack.c.l.b16 %v172
    %v1270 = vunpack.c.h.b16 %v172
    %v1271 = vunpack.c.l.b16 %v173
    %v1272 = vunpack.c.h.b16 %v173
    %v1273 = vunpack.c.l.b16 %v174
    %v1274 = vunpack.c.h.b16 %v174
    %v1275 = vunpack.c.l.b16 %v175
    %v1276 = vunpack.c.h.b16 %v175
    %v1277 = vunpack.c.l.b16 %v176
    %v1278 = vunpack.c.h.b16 %v176
    %v1279 = vunpack.c.l.b16 %v177
    %v1280 = vunpack.c.h.b16 %v177
    %v1281 = vunpack.c.l.b16 %v178
    %v1282 = vunpack.c.h.b16 %v178
    %v1283 = vunpack.c.l.b16 %v179
    %v1284 = vunpack.c.h.b16 %v179
    %v1285 = vunpack.c.l.b16 %v180
    %v1286 = vunpack.c.h.b16 %v180
    %v1287 = vunpack.c.l.b16 %v181
    %v1288 = vunpack.c.h.b16 %v181
    %v1289 = vunpack.c.l.b16 %v182
    %v1290 = vunpack.c.h.b16 %v182
    %v1291 = vunpack.c.l.b16 %v183
    %v1292 = vunpack.c.h.b16 %v183
    %v1293 = vunpack.c.l.b16 %v184
    %v1294 = vunpack.c.h.b16 %v184
    %v1295 = vunpack.c.l.b16 %v185
    %v1296 = vunpack.c.h.b16 %v185
    %v1297 = vunpack.c.l.b16 %v186
    %v1298 = vunpack.c.h.b16 %v186
    %v1299 = vunpack.c.l.b16 %v187
    %v1300 = vunpack.c.h.b16 %v187
    %v1301 = vunpack.c.l.b16 %v188
    %v1302 = vunpack.c.h.b16 %v188
    %v1303 = vunpack.c.l.b16 %v189
    %v1304 = vunpack.c.h.b16 %v189
    %v1305 = vunpack.c.l.b16 %v190
    %v1306 = vunpack.c.h.b16 %v190
    %v1307 = vunpack.c.l.b16 %v191
    %v1308 = vunpack.c.h.b16 %v191
    %v1309 = vunpack.c.l.b16 %v192
    %v1310 = vunpack.c.h.b16 %v192
    %v1311 = vunpack.c.l.b16 %v193
    %v1312 = vunpack.c.h.b16 %v193
    %v1313 = vunpack.c.l.b16 %v194
    %v1314 = vunpack.c.h.b16 %v194
    %v1315 = vunpack.c.l.b16 %v195
    %v1316 = vunpack.c.h.b16 %v195
    %v1317 = vunpack.c.l.b16 %v196
    %v1318 = vunpack.c.h.b16 %v196
    %v1319 = vunpack.c.l.b16 %v197
    %v1320 = vunpack.c.h.b16 %v197
    %v1321 = vunpack.c.l.b16 %v198
    %v1322 = vunpack.c.h.b16 %v198
    %v1323 = vunpack.c.l.b16 %v199
    %v1324 = vunpack.c.h.b16 %v199
    %v1325 = vunpack.c.l.b16 %v200
    %v1326 = vunpack.c.h.b16 %v200
    %v1327 = vunpack.c.l.b16 %v201
    %v1328 = vunpack.c.h.b16 %v201
    %v1329 = vunpack.c.l.b16 %v202
    %v1330 = vunpack.c.h.b16 %v202
    %v1331 = vunpack.c.l.b16 %v203
    %v1332 = vunpack.c.h.b16 %v203
    %v1333 = vunpack.c.l.b16 %v204
    %v1334 = vunpack.c.h.b16 %v204
    %v1335 = vunpack.c.l.b16 %v205
    %v1336 = vunpack.c.h.b16 %v205
    %v1337 = vunpack.c.l.b16 %v206
    %v1338 = vunpack.c.h.b16 %v206
    %v1339 = vunpack.c.l.b16 %v207
    %v1340 = vunpack.c.h.b16 %v207
    %v1341 = vunpack.c.l.b16 %v208
    %v1342 = vunpack.c.h.b16 %v208
    %v1343 = vunpack.c.l.b16 %v209
    %v1344 = vunpack.c.h.b16 %v209
    %v1345 = vunpack.c.l.b16 %v210
    %v1346 = vunpack.c.h.b16 %v210
    %v1347 = vunpack.c.l.b16 %v211
    %v1348 = vunpack.c.h.b16 %v211
    %v1349 = vunpack.c.l.b16 %v212
    %v1350 = vunpack.c.h.b16 %v212
    %v1351 = vunpack.c.l.b16 %v213
    %v1352 = vunpack.c.h.b16 %v213
    %v1353 = vunpack.c.l.b16 %v214
    %v1354 = vunpack.c.h.b16 %v214
    %v1355 = vunpack.c.l.b16 %v215
    %v1356 = vunpack.c.h.b16 %v215
    %v1357 = vunpack.c.l.b16 %v216
    %v1358 = vunpack.c.h.b16 %v216
    %v1359 = vunpack.c.l.b16 %v217
    %v1360 = vunpack.c.h.b16 %v217
    %v1361 = vunpack.c.l.b16 %v218
    %v1362 = vunpack.c.h.b16 %v218
    %v1363 = vunpack.c.l.b16 %v219
    %v1364 = vunpack.c.h.b16 %v219
    %v1365 = vunpack.c.l.b16 %v220
    %v1366 = vunpack.c.h.b16 %v220
    %v1367 = vunpack.c.l.b16 %v221
    %v1368 = vunpack.c.h.b16 %v221
    %v1369 = vunpack.c.l.b16 %v222
    %v1370 = vunpack.c.h.b16 %v222
    %v1371 = vunpack.c.l.b16 %v223
    %v1372 = vunpack.c.h.b16 %v223
    %v1373 = vunpack.c.l.b16 %v224
    %v1374 = vunpack.c.h.b16 %v224
    %v1375 = vunpack.c.l.b16 %v225
    %v1376 = vunpack.c.h.b16 %v225
    %v1377 = vunpack.c.l.b16 %v226
    %v1378 = vunpack.c.h.b16 %v226
    %v1379 = vunpack.c.l.b16 %v227
    %v1380 = vunpack.c.h.b16 %v227
    %v1381 = vunpack.c.l.b16 %v228
    %v1382 = vunpack.c.h.b16 %v228
    %v1383 = vunpack.c.l.b16 %v229
    %v1384 = vunpack.c.h.b16 %v229
    %v1385 = vunpack.c.l.b16 %v230
    %v1386 = vunpack.c.h.b16 %v230
    %v1387 = vunpack.c.l.b16 %v231
    %v1388 = vunpack.c.h.b16 %v231
    %v1389 = vunpack.c.l.b16 %v232
    %v1390 = vunpack.c.h.b16 %v232
    %v1391 = vunpack.c.l.b16 %v233
    %v1392 = vunpack.c.h.b16 %v233
    %v1393 = vunpack.c.l.b16 %v234
    %v1394 = vunpack.c.h.b16 %v234
    %v1395 = vunpack.c.l.b16 %v235
    %v1396 = vunpack.c.h.b16 %v235
    %v1397 = vunpack.c.l.b16 %v236
    %v1398 = vunpack.c.h.b16 %v236
    %v1399 = vunpack.c.l.b16 %v237
    %v1400 = vunpack.c.h.b16 %v237
    %v1401 = vunpack.c.l.b16 %v238
    %v1402 = vunpack.c.h.b16 %v238
    %v1403 = vunpack.c.l.b16 %v239
    %v1404 = vunpack.c.h.b16 %v239
    %v1405 = vunpack.c.l.b16 %v240
    %v1406 = vunpack.c.h.b16 %v240
    %v1407 = vunpack.c.l.b16 %v241
    %v1408 = vunpack.c.h.b16 %v241
    %v1409 = vunpack.c.l.b16 %v242
    %v1410 = vunpack.c.h.b16 %v242
    %v1411 = vunpack.c.l.b16 %v243
    %v1412 = vunpack.c.h.b16 %v243
    %v1413 = vunpack.c.l.b16 %v244
    %v1414 = vunpack.c.h.b16 %v244
    %v1415 = vunpack.c.l.b16 %v245
    %v1416 = vunpack.c.h.b16 %v245
    %v1417 = vunpack.c.l.b16 %v246
    %v1418 = vunpack.c.h.b16 %v246
    %v1419 = vunpack.c.l.b16 %v247
    %v1420 = vunpack.c.h.b16 %v247
    %v1421 = vunpack.c.l.b16 %v248
    %v1422 = vunpack.c.h.b16 %v248
    %v1423 = vunpack.c.l.b16 %v249
    %v1424 = vunpack.c.h.b16 %v249
    %v1425 = vunpack.c.l.b16 %v250
    %v1426 = vunpack.c.h.b16 %v250
    %v1427 = vunpack.c.l.b16 %v251
    %v1428 = vunpack.c.h.b16 %v251
    %v1429 = vunpack.c.l.b16 %v252
    %v1430 = vunpack.c.h.b16 %v252
    %v1431 = vunpack.c.l.b16 %v253
    %v1432 = vunpack.c.h.b16 %v253
    %v1433 = vunpack.c.l.b16 %v254
    %v1434 = vunpack.c.h.b16 %v254
    %v1435 = vunpack.c.l.b16 %v255
    %v1436 = vunpack.c.h.b16 %v255
    %v1437 = vunpack.c.l.b16 %v256
    %v1438 = vunpack.c.h.b16 %v256
    %v1439 = vunpack.c.l.b16 %v257
    %v1440 = vunpack.c.h.b16 %v257
    %v1441 = vunpack.c.l.b16 %v258
    %v1442 = vunpack.c.h.b16 %v258
    %v1443 = vunpack.c.l.b16 %v259
    %v1444 = vunpack.c.h.b16 %v259
    %v1445 = vunpack.c.l.b16 %v260
    %v1446 = vunpack.c.h.b16 %v260
    %v1447 = vunpack.c.l.b16 %v261
    %v1448 = vunpack.c.h.b16 %v261
    %v1449 = vunpack.c.l.b16 %v262
    %v1450 = vunpack.c.h.b16 %v262
    %v1451 = vunpack.c.l.b16 %v263
    %v1452 = vunpack.c.h.b16 %v263
    %v1453 = vunpack.c.l.b16 %v264
    %v1454 = vunpack.c.h.b16 %v264
    %v1455 = vunpack.c.l.b16 %v265
    %v1456 = vunpack.c.h.b16 %v265
    %v1457 = vunpack.c.l.b16 %v266
    %v1458 = vunpack.c.h.b16 %v266
    %v1459 = vunpack.c.l.b16 %v267
    %v1460 = vunpack.c.h.b16 %v267
    %v1461 = vunpack.c.l.b16 %v268
    %v1462 = vunpack.c.h.b16 %v268
    %v1463 = vunpack.c.l.b16 %v269
    %v1464 = vunpack.c.h.b16 %v269
    %v1465 = vunpack.c.l.b16 %v270
    %v1466 = vunpack.c.h.b16 %v270
    %v1467 = vunpack.c.l.b16 %v271
    %v1468 = vunpack.c.h.b16 %v271
    %v1469 = vunpack.c.l.b16 %v272
    %v1470 = vunpack.c.h.b16 %v272
    %v1471 = vunpack.c.l.b16 %v273
    %v1472 = vunpack.c.h.b16 %v273
    %v1473 = vunpack.c.l.b16 %v274
    %v1474 = vunpack.c.h.b16 %v274
    %v1475 = vunpack.c.l.b16 %v275
    %v1476 = vunpack.c.h.b16 %v275
    %v1477 = vunpack.c.l.b16 %v276
    %v1478 = vunpack.c.h.b16 %v276
    %v1479 = vunpack.c.l.b16 %v277
    %v1480 = vunpack.c.h.b16 %v277
    %v1481 = vunpack.c.l.b16 %v278
    %v1482 = vunpack.c.h.b16 %v278
    %v1483 = vunpack.c.l.b16 %v279
    %v1484 = vunpack.c.h.b16 %v279
    %v1485 = vunpack.c.l.b16 %v280
    %v1486 = vunpack.c.h.b16 %v280
    %v1487 = vunpack.c.l.b16 %v281
    %v1488 = vunpack.c.h.b16 %v281
    %v1489 = vunpack.c.l.b16 %v282
    %v1490 = vunpack.c.h.b16 %v282
    %v1491 = vunpack.c.l.b16 %v283
    %v1492 = vunpack.c.h.b16 %v283
    %v1493 = vunpack.c.l.b16 %v284
    %v1494 = vunpack.c.h.b16 %v284
    %v1495 = vunpack.c.l.b16 %v285
    %v1496 = vunpack.c.h.b16 %v285
    %v1497 = vunpack.c.l.b16 %v286
    %v1498 = vunpack.c.h.b16 %v286
    %v1499 = vunpack.c.l.b16 %v287
    %v1500 = vunpack.c.h.b16 %v287
    %v1501 = vunpack.c.l.b16 %v288
    %v1502 = vunpack.c.h.b16 %v288
    %v1503 = vunpack.c.l.b16 %v289
    %v1504 = vunpack.c.h.b16 %v289
    %v1505 = vunpack.c.l.b16 %v290
    %v1506 = vunpack.c.h.b16 %v290
    %v1507 = vunpack.c.l.b16 %v291
    %v1508 = vunpack.c.h.b16 %v291
    %v1509 = vunpack.c.l.b16 %v292
    %v1510 = vunpack.c.h.b16 %v292
    %v1511 = vunpack.c.l.b16 %v293
    %v1512 = vunpack.c.h.b16 %v293
    %v1513 = vunpack.c.l.b16 %v294
    %v1514 = vunpack.c.h.b16 %v294
    %v1515 = vunpack.c.l.b16 %v295
    %v1516 = vunpack.c.h.b16 %v295
    %v1517 = vunpack.c.l.b16 %v296
    %v1518 = vunpack.c.h.b16 %v296
    %v1519 = vunpack.c.l.b16 %v297
    %v1520 = vunpack.c.h.b16 %v297
    %v1521 = vunpack.c.l.b16 %v298
    %v1522 = vunpack.c.h.b16 %v298
    %v1523 = vunpack.c.l.b16 %v299
    %v1524 = vunpack.c.h.b16 %v299
    %v1525 = vunpack.c.l.b16 %v300
    %v1526 = vunpack.c.h.b16 %v300
    %v1527 = vunpack.c.l.b16 %v301
    %v1528 = vunpack.c.h.b16 %v301
    %v1529 = vunpack.c.l.b16 %v302
    %v1530 = vunpack.c.h.b16 %v302
    %v1531 = vunpack.c.l.b16 %v303
    %v1532 = vunpack.c.h.b16 %v303
    %v1533 = vunpack.c.l.b16 %v304
    %v1534 = vunpack.c.h.b16 %v304
    %v1535 = vunpack.c.l.b16 %v305
    %v1536 = vunpack.c.h.b16 %v305
    %v1537 = vunpack.c.l.b16 %v306
    %v1538 = vunpack.c.h.b16 %v306
    %v1539 = vunpack.c.l.b16 %v307
    %v1540 = vunpack.c.h.b16 %v307
    %v1541 = vunpack.c.l.b16 %v308
    %v1542 = vunpack.c.h.b16 %v308
    %v1543 = vunpack.c.l.b16 %v309
    %v1544 = vunpack.c.h.b16 %v309
    %v1545 = vunpack.c.l.b16 %v310
    %v1546 = vunpack.c.h.b16 %v310
    %v1547 = vunpack.c.l.b16 %v311
    %v1548 = vunpack.c.h.b16 %v311
    %v1549 = vunpack.c.l.b16 %v312
    %v1550 = vunpack.c.h.b16 %v312
    %v1551 = vunpack.c.l.b16 %v313
    %v1552 = vunpack.c.h.b16 %v313
    %v1553 = vunpack.c.l.b16 %v314
    %v1554 = vunpack.c.h.b16 %v314
    %v1555 = vunpack.c.l.b16 %v315
    %v1556 = vunpack.c.h.b16 %v315
    %v1557 = vunpack.c.l.b16 %v316
    %v1558 = vunpack.c.h.b16 %v316
    %v1559 = vunpack.c.l.b16 %v317
    %v1560 = vunpack.c.h.b16 %v317
    %v1561 = vunpack.c.l.b16 %v318
    %v1562 = vunpack.c.h.b16 %v318
    %v1563 = vunpack.c.l.b16 %v319
    %v1564 = vunpack.c.h.b16 %v319
    %v1565 = vunpack.c.l.b16 %v320
    %v1566 = vunpack.c.h.b16 %v320
    %v1567 = vunpack.c.l.b16 %v321
    %v1568 = vunpack.c.h.b16 %v321
    %v1569 = vunpack.c.l.b16 %v322
    %v1570 = vunpack.c.h.b16 %v322
    %v1571 = vunpack.c.l.b16 %v323
    %v1572 = vunpack.c.h.b16 %v323
    %v1573 = vunpack.c.l.b16 %v324
    %v1574 = vunpack.c.h.b16 %v324
    %v1575 = vunpack.c.l.b16 %v325
    %v1576 = vunpack.c.h.b16 %v325
    %v1577 = vunpack.c.l.b16 %v326
    %v1578 = vunpack.c.h.b16 %v326
    %v1579 = vunpack.c.l.b16 %v327
    %v1580 = vunpack.c.h.b16 %v327
    %v1581 = vunpack.c.l.b16 %v328
    %v1582 = vunpack.c.h.b16 %v328
    %v1583 = vunpack.c.l.b16 %v329
    %v1584 = vunpack.c.h.b16 %v329
    %v1585 = vunpack.c.l.b16 %v330
    %v1586 = vunpack.c.h.b16 %v330
    %v1587 = vunpack.c.l.b16 %v331
    %v1588 = vunpack.c.h.b16 %v331
    %v1589 = vunpack.c.l.b16 %v332
    %v1590 = vunpack.c.h.b16 %v332
    %v1591 = vunpack.c.l.b16 %v333
    %v1592 = vunpack.c.h.b16 %v333
    %v1593 = vunpack.c.l.b16 %v334
    %v1594 = vunpack.c.h.b16 %v334
    %v1595 = vunpack.c.l.b16 %v335
    %v1596 = vunpack.c.h.b16 %v335
    %v1597 = vunpack.c.l.b16 %v336
    %v1598 = vunpack.c.h.b16 %v336
    %v1599 = vunpack.c.l.b16 %v337
    %v1600 = vunpack.c.h.b16 %v337
    %v1601 = vunpack.c.l.b16 %v338
    %v1602 = vunpack.c.h.b16 %v338
    %v1603 = vunpack.c.l.b16 %v339
    %v1604 = vunpack.c.h.b16 %v339
    %v1605 = vunpack.c.l.b16 %v340
    %v1606 = vunpack.c.h.b16 %v340
    %v1607 = vunpack.c.l.b16 %v341
    %v1608 = vunpack.c.h.b16 %v341
    %v1609 = vunpack.c.l.b16 %v342
    %v1610 = vunpack.c.h.b16 %v342
    %v1611 = vunpack.c.l.b16 %v343
    %v1612 = vunpack.c.h.b16 %v343
    %v1613 = vunpack.c.l.b16 %v344
    %v1614 = vunpack.c.h.b16 %v344
    %v1615 = vunpack.c.l.b16 %v345
    %v1616 = vunpack.c.h.b16 %v345
    %v1617 = vunpack.c.l.b16 %v346
    %v1618 = vunpack.c.h.b16 %v346
    %v1619 = vunpack.c.l.b16 %v347
    %v1620 = vunpack.c.h.b16 %v347
    %v1621 = vunpack.c.l.b16 %v348
    %v1622 = vunpack.c.h.b16 %v348
    %v1623 = vunpack.c.l.b16 %v349
    %v1624 = vunpack.c.h.b16 %v349
    %v1625 = vunpack.c.l.b16 %v350
    %v1626 = vunpack.c.h.b16 %v350
    %v1627 = vunpack.c.l.b16 %v351
    %v1628 = vunpack.c.h.b16 %v351
    %v1629 = vunpack.c.l.b16 %v352
    %v1630 = vunpack.c.h.b16 %v352
    %v1631 = vunpack.c.l.b16 %v353
    %v1632 = vunpack.c.h.b16 %v353
    %v1633 = vunpack.c.l.b16 %v354
    %v1634 = vunpack.c.h.b16 %v354
    %v1635 = vunpack.c.l.b16 %v355
    %v1636 = vunpack.c.h.b16 %v355
    %v1637 = vunpack.c.l.b16 %v356
    %v1638 = vunpack.c.h.b16 %v356
    %v1639 = vunpack.c.l.b16 %v357
    %v1640 = vunpack.c.h.b16 %v357
    %v1641 = vunpack.c.l.b16 %v358
    %v1642 = vunpack.c.h.b16 %v358
    %v1643 = vunpack.c.l.b16 %v359
    %v1644 = vunpack.c.h.b16 %v359
    %v1645 = vunpack.c.l.b16 %v360
    %v1646 = vunpack.c.h.b16 %v360
    %v1647 = vunpack.c.l.b16 %v361
    %v1648 = vunpack.c.h.b16 %v361
    %v1649 = vunpack.c.l.b16 %v362
    %v1650 = vunpack.c.h.b16 %v362
    %v1651 = vunpack.c.l.b16 %v363
    %v1652 = vunpack.c.h.b16 %v363
    %v1653 = vunpack.c.l.b16 %v364
    %v1654 = vunpack.c.h.b16 %v364
    %v1655 = vunpack.c.l.b16 %v365
    %v1656 = vunpack.c.h.b16 %v365
    %v1657 = vunpack.c.l.b16 %v366
    %v1658 = vunpack.c.h.b16 %v366
    %v1659 = vunpack.c.l.b16 %v367
    %v1660 = vunpack.c.h.b16 %v367
    %v1661 = vunpack.c.l.b16 %v368
    %v1662 = vunpack.c.h.b16 %v368
    %v1663 = vunpack.c.l.b16 %v369
    %v1664 = vunpack.c.h.b16 %v369
    %v1665 = vunpack.c.l.b16 %v370
    %v1666 = vunpack.c.h.b16 %v370
    %v1667 = vunpack.c.l.b16 %v371
    %v1668 = vunpack.c.h.b16 %v371
    %v1669 = vunpack.c.l.b16 %v372
    %v1670 = vunpack.c.h.b16 %v372
    %v1671 = vunpack.c.l.b16 %v373
    %v1672 = vunpack.c.h.b16 %v373
    %v1673 = vunpack.c.l.b16 %v374
    %v1674 = vunpack.c.h.b16 %v374
    %v1675 = vunpack.c.l.b16 %v375
    %v1676 = vunpack.c.h.b16 %v375
    %v1677 = vunpack.c.l.b16 %v376
    %v1678 = vunpack.c.h.b16 %v376
    %v1679 = vunpack.c.l.b16 %v377
    %v1680 = vunpack.c.h.b16 %v377
    %v1681 = vunpack.c.l.b16 %v378
    %v1682 = vunpack.c.h.b16 %v378
    %v1683 = vunpack.c.l.b16 %v379
    %v1684 = vunpack.c.h.b16 %v379
    %v1685 = vunpack.c.l.b16 %v380
    %v1686 = vunpack.c.h.b16 %v380
    %v1687 = vunpack.c.l.b16 %v381
    %v1688 = vunpack.c.h.b16 %v381
    %v1689 = vunpack.c.l.b16 %v382
    %v1690 = vunpack.c.h.b16 %v382
    %v1691 = vunpack.c.l.b16 %v383
    %v1692 = vunpack.c.h.b16 %v383
    %v1693 = vunpack.c.l.b16 %v384
    %v1694 = vunpack.c.h.b16 %v384
    %v1695 = vunpack.c.l.b16 %v385
    %v1696 = vunpack.c.h.b16 %v385
    %v1697 = vunpack.c.l.b16 %v386
    %v1698 = vunpack.c.h.b16 %v386
    %v1699 = vunpack.c.l.b16 %v387
    %v1700 = vunpack.c.h.b16 %v387
    %v1701 = vunpack.c.l.b16 %v388
    %v1702 = vunpack.c.h.b16 %v388
    %v1703 = vunpack.c.l.b16 %v389
    %v1704 = vunpack.c.h.b16 %v389
    %v1705 = vunpack.c.l.b16 %v390
    %v1706 = vunpack.c.h.b16 %v390
    %v1707 = vunpack.c.l.b16 %v391
    %v1708 = vunpack.c.h.b16 %v391
    %v1709 = vunpack.c.l.b16 %v392
    %v1710 = vunpack.c.h.b16 %v392
    %v1711 = vunpack.c.l.b16 %v393
    %v1712 = vunpack.c.h.b16 %v393
    %v1713 = vunpack.c.l.b16 %v394
    %v1714 = vunpack.c.h.b16 %v394
    %v1715 = vunpack.c.l.b16 %v395
    %v1716 = vunpack.c.h.b16 %v395
    %v1717 = vunpack.c.l.b16 %v396
    %v1718 = vunpack.c.h.b16 %v396
    %v1719 = vunpack.c.l.b16 %v397
    %v1720 = vunpack.c.h.b16 %v397
    %v1721 = vunpack.c.l.b16 %v398
    %v1722 = vunpack.c.h.b16 %v398
    %v1723 = vunpack.c.l.b16 %v399
    %v1724 = vunpack.c.h.b16 %v399
    %v1725 = vunpack.c.l.b16 %v400
    %v1726 = vunpack.c.h.b16 %v400
    %v1727 = vunpack.c.l.b16 %v401
    %v1728 = vunpack.c.h.b16 %v401
    %v1729 = vunpack.c.l.b16 %v402
    %v1730 = vunpack.c.h.b16 %v402
    %v1731 = vunpack.c.l.b16 %v403
    %v1732 = vunpack.c.h.b16 %v403
    %v1733 = vunpack.c.l.b16 %v404
    %v1734 = vunpack.c.h.b16 %v404
    %v1735 = vunpack.c.l.b16 %v405
    %v1736 = vunpack.c.h.b16 %v405
    %v1737 = vunpack.c.l.b16 %v406
    %v1738 = vunpack.c.h.b16 %v406
    %v1739 = vunpack.c.l.b16 %v407
    %v1740 = vunpack.c.h.b16 %v407
    %v1741 = vunpack.c.l.b16 %v408
    %v1742 = vunpack.c.h.b16 %v408
    %v1743 = vunpack.c.l.b16 %v409
    %v1744 = vunpack.c.h.b16 %v409
    %v1745 = vunpack.c.l.b16 %v410
    %v1746 = vunpack.c.h.b16 %v410
    %v1747 = vunpack.c.l.b16 %v411
    %v1748 = vunpack.c.h.b16 %v411
    %v1749 = vunpack.c.l.b16 %v412
    %v1750 = vunpack.c.h.b16 %v412
    %v1751 = vunpack.c.l.b16 %v413
    %v1752 = vunpack.c.h.b16 %v413
    %v1753 = vunpack.c.l.b16 %v414
    %v1754 = vunpack.c.h.b16 %v414
    %v1755 = vunpack.c.l.b16 %v415
    %v1756 = vunpack.c.h.b16 %v415
    %v1757 = vunpack.c.l.b16 %v416
    %v1758 = vunpack.c.h.b16 %v416
    %v1759 = vunpack.c.l.b16 %v417
    %v1760 = vunpack.c.h.b16 %v417
    %v1761 = vunpack.c.l.b16 %v418
    %v1762 = vunpack.c.h.b16 %v418
    %v1763 = vunpack.c.l.b16 %v419
    %v1764 = vunpack.c.h.b16 %v419
    %v1765 = vunpack.c.l.b16 %v420
    %v1766 = vunpack.c.h.b16 %v420
    %v1767 = vunpack.c.l.b16 %v421
    %v1768 = vunpack.c.h.b16 %v421
    %v1769 = vunpack.c.l.b16 %v422
    %v1770 = vunpack.c.h.b16 %v422
    %v1771 = vunpack.c.l.b16 %v423
    %v1772 = vunpack.c.h.b16 %v423
    %v1773 = vunpack.c.l.b16 %v424
    %v1774 = vunpack.c.h.b16 %v424
    %v1775 = vunpack.c.l.b16 %v425
    %v1776 = vunpack.c.h.b16 %v425
    %v1777 = vunpack.c.l.b16 %v426
    %v1778 = vunpack.c.h.b16 %v426
    %v1779 = vunpack.c.l.b16 %v427
    %v1780 = vunpack.c.h.b16 %v427
    %v1781 = vunpack.c.l.b16 %v428
    %v1782 = vunpack.c.h.b16 %v428
    %v1783 = vunpack.c.l.b16 %v429
    %v1784 = vunpack.c.h.b16 %v429
    %v1785 = vunpack.c.l.b16 %v430
    %v1786 = vunpack.c.h.b16 %v430
    %v1787 = vunpack.c.l.b16 %v431
    %v1788 = vunpack.c.h.b16 %v431
    %v1789 = vunpack.c.l.b16 %v432
    %v1790 = vunpack.c.h.b16 %v432
    %v1791 = vunpack.c.l.b16 %v433
    %v1792 = vunpack.c.h.b16 %v433
    %v1793 = vunpack.c.l.b16 %v434
    %v1794 = vunpack.c.h.b16 %v434
    %v1795 = vunpack.c.l.b16 %v435
    %v1796 = vunpack.c.h.b16 %v435
    %v1797 = vunpack.c.l.b16 %v436
    %v1798 = vunpack.c.h.b16 %v436
    %v1799 = vunpack.c.l.b16 %v437
    %v1800 = vunpack.c.h.b16 %v437
    %v1801 = vunpack.c.l.b16 %v438
    %v1802 = vunpack.c.h.b16 %v438
    %v1803 = vunpack.c.l.b16 %v439
    %v1804 = vunpack.c.h.b16 %v439
    %v1805 = vunpack.c.l.b16 %v440
    %v1806 = vunpack.c.h.b16 %v440
    %v1807 = vunpack.c.l.b16 %v441
    %v1808 = vunpack.c.h.b16 %v441
    %v1809 = vunpack.c.l.b16 %v442
    %v1810 = vunpack.c.h.b16 %v442
    %v1811 = vunpack.c.l.b16 %v443
    %v1812 = vunpack.c.h.b16 %v443
    %v1813 = vunpack.c.l.b16 %v444
    %v1814 = vunpack.c.h.b16 %v444
    %v1815 = vunpack.c.l.b16 %v445
    %v1816 = vunpack.c.h.b16 %v445
    %v1817 = vunpack.c.l.b16 %v446
    %v1818 = vunpack.c.h.b16 %v446
    %v1819 = vunpack.c.l.b16 %v447
    %v1820 = vunpack.c.h.b16 %v447
    %v1821 = vunpack.c.l.b16 %v448
    %v1822 = vunpack.c.h.b16 %v448
    %v1823 = vunpack.c.l.b16 %v449
    %v1824 = vunpack.c.h.b16 %v449
    %v1825 = vunpack.c.l.b16 %v450
    %v1826 = vunpack.c.h.b16 %v450
    %v1827 = vunpack.c.l.b16 %v451
    %v1828 = vunpack.c.h.b16 %v451
    %v1829 = vunpack.c.l.b16 %v452
    %v1830 = vunpack.c.h.b16 %v452
    %v1831 = vunpack.c.l.b16 %v453
    %v1832 = vunpack.c.h.b16 %v453
    %v1833 = vunpack.c.l.b16 %v454
    %v1834 = vunpack.c.h.b16 %v454
    %v1835 = vunpack.c.l.b16 %v455
    %v1836 = vunpack.c.h.b16 %v455
    %v1837 = vunpack.c.l.b16 %v456
    %v1838 = vunpack.c.h.b16 %v456
    %v1839 = vunpack.c.l.b16 %v457
    %v1840 = vunpack.c.h.b16 %v457
    %v1841 = vunpack.c.l.b16 %v458
    %v1842 = vunpack.c.h.b16 %v458
    %v1843 = vunpack.c.l.b16 %v459
    %v1844 = vunpack.c.h.b16 %v459
    %v1845 = vunpack.c.l.b16 %v460
    %v1846 = vunpack.c.h.b16 %v460
    %v1847 = vunpack.c.l.b16 %v461
    %v1848 = vunpack.c.h.b16 %v461
    %v1849 = vunpack.c.l.b16 %v462
    %v1850 = vunpack.c.h.b16 %v462
    %v1851 = vunpack.c.l.b16 %v463
    %v1852 = vunpack.c.h.b16 %v463
    %v1853 = vunpack.c.l.b16 %v464
    %v1854 = vunpack.c.h.b16 %v464
    %v1855 = vunpack.c.l.b16 %v465
    %v1856 = vunpack.c.h.b16 %v465
    %v1857 = vunpack.c.l.b16 %v466
    %v1858 = vunpack.c.h.b16 %v466
    %v1859 = vunpack.c.l.b16 %v467
    %v1860 = vunpack.c.h.b16 %v467
    %v1861 = vunpack.c.l.b16 %v468
    %v1862 = vunpack.c.h.b16 %v468
    %v1863 = vunpack.c.l.b16 %v469
    %v1864 = vunpack.c.h.b16 %v469
    %v1865 = vunpack.c.l.b16 %v470
    %v1866 = vunpack.c.h.b16 %v470
    %v1867 = vunpack.c.l.b16 %v471
    %v1868 = vunpack.c.h.b16 %v471
    %v1869 = vunpack.c.l.b16 %v472
    %v1870 = vunpack.c.h.b16 %v472
    %v1871 = vunpack.c.l.b16 %v473
    %v1872 = vunpack.c.h.b16 %v473
    %v1873 = vunpack.c.l.b16 %v474
    %v1874 = vunpack.c.h.b16 %v474
    %v1875 = vunpack.c.l.b16 %v475
    %v1876 = vunpack.c.h.b16 %v475
    %v1877 = vunpack.c.l.b16 %v476
    %v1878 = vunpack.c.h.b16 %v476
    %v1879 = vunpack.c.l.b16 %v477
    %v1880 = vunpack.c.h.b16 %v477
    %v1881 = vunpack.c.l.b16 %v478
    %v1882 = vunpack.c.h.b16 %v478
    %v1883 = vunpack.c.l.b16 %v479
    %v1884 = vunpack.c.h.b16 %v479
    %v1885 = vunpack.c.l.b16 %v480
    %v1886 = vunpack.c.h.b16 %v480
    %v1887 = vunpack.c.l.b16 %v481
    %v1888 = vunpack.c.h.b16 %v481
    %v1889 = vunpack.c.l.b16 %v482
    %v1890 = vunpack.c.h.b16 %v482
    %v1891 = vunpack.c.l.b16 %v483
    %v1892 = vunpack.c.h.b16 %v483
    %v1893 = vunpack.c.l.b16 %v484
    %v1894 = vunpack.c.h.b16 %v484
    %v1895 = vunpack.c.l.b16 %v485
    %v1896 = vunpack.c.h.b16 %v485
    %v1897 = vunpack.c.l.b16 %v486
    %v1898 = vunpack.c.h.b16 %v486
    %v1899 = vunpack.c.l.b16 %v487
    %v1900 = vunpack.c.h.b16 %v487
    %v1901 = vunpack.c.l.b16 %v488
    %v1902 = vunpack.c.h.b16 %v488
    %v1903 = vunpack.c.l.b16 %v489
    %v1904 = vunpack.c.h.b16 %v489
    %v1905 = vunpack.c.l.b16 %v490
    %v1906 = vunpack.c.h.b16 %v490
    %v1907 = vunpack.c.l.b16 %v491
    %v1908 = vunpack.c.h.b16 %v491
    %v1909 = vunpack.c.l.b16 %v492
    %v1910 = vunpack.c.h.b16 %v492
    %v1911 = vunpack.c.l.b16 %v493
    %v1912 = vunpack.c.h.b16 %v493
    %v1913 = vunpack.c.l.b16 %v494
    %v1914 = vunpack.c.h.b16 %v494
    %v1915 = vunpack.c.l.b16 %v495
    %v1916 = vunpack.c.h.b16 %v495
    %v1917 = vunpack.c.l.b16 %v496
    %v1918 = vunpack.c.h.b16 %v496
    %v1919 = vunpack.c.l.b16 %v497
    %v1920 = vunpack.c.h.b16 %v497
    %v1921 = vunpack.c.l.b16 %v498
    %v1922 = vunpack.c.h.b16 %v498
    %v1923 = vunpack.c.l.b16 %v499
    %v1924 = vunpack.c.h.b16 %v499
    %v1925 = vunpack.c.l.b16 %v500
    %v1926 = vunpack.c.h.b16 %v500
    %v1927 = vunpack.c.l.b16 %v501
    %v1928 = vunpack.c.h.b16 %v501
    %v1929 = vunpack.c.l.b16 %v502
    %v1930 = vunpack.c.h.b16 %v502
    %v1931 = vunpack.c.l.b16 %v503
    %v1932 = vunpack.c.h.b16 %v503
    %v1933 = vunpack.c.l.b16 %v504
    %v1934 = vunpack.c.h.b16 %v504
    %v1935 = vunpack.c.l.b16 %v505
    %v1936 = vunpack.c.h.b16 %v505
    %v1937 = vunpack.c.l.b16 %v506
    %v1938 = vunpack.c.h.b16 %v506
    %v1939 = vunpack.c.l.b16 %v507
    %v1940 = vunpack.c.h.b16 %v507
    %v1941 = vunpack.c.l.b16 %v508
    %v1942 = vunpack.c.h.b16 %v508
    %v1943 = vunpack.c.l.b16 %v509
    %v1944 = vunpack.c.h.b16 %v509
    %v1945 = vunpack.c.l.b16 %v510
    %v1946 = vunpack.c.h.b16 %v510
    %v1947 = vunpack.c.l.b16 %v511
    %v1948 = vunpack.c.h.b16 %v511
    %v1949 = vunpack.c.l.b16 %v512
    %v1950 = vunpack.c.h.b16 %v512
    %v1951 = vunpack.c.l.b16 %v513
    %v1952 = vunpack.c.h.b16 %v513
    %v1953 = vunpack.c.l.b16 %v514
    %v1954 = vunpack.c.h.b16 %v514
    %v1955 = vunpack.c.l.b16 %v515
    %v1956 = vunpack.c.h.b16 %v515
    %v1957 = vunpack.c.l.b16 %v516
    %v1958 = vunpack.c.h.b16 %v516
    %v1959 = vunpack.c.l.b16 %v517
    %v1960 = vunpack.c.h.b16 %v517
    %v1961 = vunpack.c.l.b16 %v518
    %v1962 = vunpack.c.h.b16 %v518
    %v1963 = vunpack.c.l.b16 %v519
    %v1964 = vunpack.c.h.b16 %v519
    %v1965 = vunpack.c.l.b16 %v520
    %v1966 = vunpack.c.h.b16 %v520
    %v1967 = vunpack.c.l.b16 %v521
    %v1968 = vunpack.c.h.b16 %v521
    %v1969 = vunpack.c.l.b16 %v522
    %v1970 = vunpack.c.h.b16 %v522
    %v1971 = vunpack.c.l.b16 %v523
    %v1972 = vunpack.c.h.b16 %v523
    %v1973 = vunpack.c.l.b16 %v524
    %v1974 = vunpack.c.h.b16 %v524
    %v1975 = vunpack.c.l.b16 %v525
    %v1976 = vunpack.c.h.b16 %v525
    %v1977 = vunpack.c.l.b16 %v526
    %v1978 = vunpack.c.h.b16 %v526
    %v1979 = vunpack.c.l.b16 %v527
    %v1980 = vunpack.c.h.b16 %v527
    %v1981 = vunpack.c.l.b16 %v528
    %v1982 = vunpack.c.h.b16 %v528
    %v1983 = vunpack.c.l.b16 %v529
    %v1984 = vunpack.c.h.b16 %v529
    %v1985 = vunpack.c.l.b16 %v530
    %v1986 = vunpack.c.h.b16 %v530
    %v1987 = vunpack.c.l.b16 %v531
    %v1988 = vunpack.c.h.b16 %v531
    %v1989 = vunpack.c.l.b16 %v532
    %v1990 = vunpack.c.h.b16 %v532
    %v1991 = vunpack.c.l.b16 %v533
    %v1992 = vunpack.c.h.b16 %v533
    %v1993 = vunpack.c.l.b16 %v534
    %v1994 = vunpack.c.h.b16 %v534
    %v1995 = vunpack.c.l.b16 %v535
    %v1996 = vunpack.c.h.b16 %v535
    %v1997 = vunpack.c.l.b16 %v536
    %v1998 = vunpack.c.h.b16 %v536
    %v1999 = vunpack.c.l.b16 %v537
    %v2000 = vunpack.c.h.b16 %v537
    %v2001 = vunpack.c.l.b16 %v538
    %v2002 = vunpack.c.h.b16 %v538
    %v2003 = vunpack.c.l.b16 %v539
    %v2004 = vunpack.c.h.b16 %v539
    %v2005 = vunpack.c.l.b16 %v540
    %v2006 = vunpack.c.h.b16 %v540
    %v2007 = vunpack.c.l.b16 %v541
    %v2008 = vunpack.c.h.b16 %v541
    %v2009 = vunpack.c.l.b16 %v542
    %v2010 = vunpack.c.h.b16 %v542
    %v2011 = vunpack.c.l.b16 %v543
    %v2012 = vunpack.c.h.b16 %v543
    %v2013 = vunpack.c.l.b16 %v544
    %v2014 = vunpack.c.h.b16 %v544
    %v2015 = vunpack.c.l.b16 %v545
    %v2016 = vunpack.c.h.b16 %v545
    %v2017 = vunpack.c.l.b16 %v546
    %v2018 = vunpack.c.h.b16 %v546
    %v2019 = vunpack.c.l.b16 %v547
    %v2020 = vunpack.c.h.b16 %v547
    %v2021 = vunpack.c.l.b16 %v548
    %v2022 = vunpack.c.h.b16 %v548
    %v2023 = vunpack.c.l.b16 %v549
    %v2024 = vunpack.c.h.b16 %v549
    %v2025 = vunpack.c.l.b16 %v550
    %v2026 = vunpack.c.h.b16 %v550
    %v2027 = vunpack.c.l.b16 %v551
    %v2028 = vunpack.c.h.b16 %v551
    %v2029 = vunpack.c.l.b16 %v552
    %v2030 = vunpack.c.h.b16 %v552
    %v2031 = vunpack.c.l.b16 %v553
    %v2032 = vunpack.c.h.b16 %v553
    %v2033 = vunpack.c.l.b16 %v554
    %v2034 = vunpack.c.h.b16 %v554
    %v2035 = vunpack.c.l.b16 %v555
    %v2036 = vunpack.c.h.b16 %v555
    %v2037 = vunpack.c.l.b16 %v556
    %v2038 = vunpack.c.h.b16 %v556
    %v2039 = vunpack.c.l.b16 %v557
    %v2040 = vunpack.c.h.b16 %v557
    %v2041 = vunpack.c.l.b16 %v558
    %v2042 = vunpack.c.h.b16 %v558
    %v2043 = vunpack.c.l.b16 %v559
    %v2044 = vunpack.c.h.b16 %v559
    %v2045 = vunpack.c.l.b16 %v560
    %v2046 = vunpack.c.h.b16 %v560
    %v2047 = vunpack.c.l.b16 %v561
    %v2048 = vunpack.c.h.b16 %v561
    %v2049 = vunpack.c.l.b16 %v562
    %v2050 = vunpack.c.h.b16 %v562
    %v2051 = vunpack.c.l.b16 %v563
    %v2052 = vunpack.c.h.b16 %v563
    %v2053 = vunpack.c.l.b16 %v564
    %v2054 = vunpack.c.h.b16 %v564
    %v2055 = vunpack.c.l.b16 %v565
    %v2056 = vunpack.c.h.b16 %v565
    %v2057 = vunpack.c.l.b16 %v566
    %v2058 = vunpack.c.h.b16 %v566
    %v2059 = vunpack.c.l.b16 %v567
    %v2060 = vunpack.c.h.b16 %v567
    %v2061 = vunpack.c.l.b16 %v568
    %v2062 = vunpack.c.h.b16 %v568
    %v2063 = vunpack.c.l.b16 %v569
    %v2064 = vunpack.c.h.b16 %v569
    %v2065 = vunpack.c.l.b16 %v570
    %v2066 = vunpack.c.h.b16 %v570
    %v2067 = vunpack.c.l.b16 %v571
    %v2068 = vunpack.c.h.b16 %v571
    %v2069 = vunpack.c.l.b16 %v572
    %v2070 = vunpack.c.h.b16 %v572
    %v2071 = vunpack.c.l.b16 %v573
    %v2072 = vunpack.c.h.b16 %v573
    %v2073 = vunpack.c.l.b16 %v574
    %v2074 = vunpack.c.h.b16 %v574
    %v2075 = vunpack.c.l.b16 %v575
    %v2076 = vunpack.c.h.b16 %v575
    %v2077 = vunpack.c.l.b16 %v576
    %v2078 = vunpack.c.h.b16 %v576
    %v2079 = vunpack.c.l.b16 %v577
    %v2080 = vunpack.c.h.b16 %v577
    %v2081 = vunpack.c.l.b16 %v578
    %v2082 = vunpack.c.h.b16 %v578
    %v2083 = vunpack.c.l.b16 %v579
    %v2084 = vunpack.c.h.b16 %v579
    %v2085 = vunpack.c.l.b16 %v580
    %v2086 = vunpack.c.h.b16 %v580
    %v2087 = vunpack.c.l.b16 %v581
    %v2088 = vunpack.c.h.b16 %v581
    %v2089 = vunpack.c.l.b16 %v582
    %v2090 = vunpack.c.h.b16 %v582
    %v2091 = vunpack.c.l.b16 %v583
    %v2092 = vunpack.c.h.b16 %v583
    %v2093 = vunpack.c.l.b16 %v584
    %v2094 = vunpack.c.h.b16 %v584
    %v2095 = vunpack.c.l.b16 %v585
    %v2096 = vunpack.c.h.b16 %v585
    %v2097 = vunpack.c.l.b16 %v586
    %v2098 = vunpack.c.h.b16 %v586
    %v2099 = vunpack.c.l.b16 %v587
    %v2100 = vunpack.c.h.b16 %v587
    %v2101 = vunpack.c.l.b16 %v588
    %v2102 = vunpack.c.h.b16 %v588
    %v2103 = vunpack.c.l.b16 %v589
    %v2104 = vunpack.c.h.b16 %v589
    %v2105 = vunpack.c.l.b16 %v590
    %v2106 = vunpack.c.h.b16 %v590
    %v2107 = vunpack.c.l.b16 %v591
    %v2108 = vunpack.c.h.b16 %v591
    %v2109 = vunpack.c.l.b16 %v592
    %v2110 = vunpack.c.h.b16 %v592
    %v2111 = vunpack.c.l.b16 %v593
    %v2112 = vunpack.c.h.b16 %v593
    %v2113 = vunpack.c.l.b16 %v594
    %v2114 = vunpack.c.h.b16 %v594
    %v2115 = vunpack.c.l.b16 %v595
    %v2116 = vunpack.c.h.b16 %v595
    %v2117 = vunpack.c.l.b16 %v596
    %v2118 = vunpack.c.h.b16 %v596
    %v2119 = vunpack.c.l.b16 %v597
    %v2120 = vunpack.c.h.b16 %v597
    %v2121 = vunpack.c.l.b16 %v598
    %v2122 = vunpack.c.h.b16 %v598
    %v2123 = vunpack.c.l.b16 %v599
    %v2124 = vunpack.c.h.b16 %v599
    %v2125 = vunpack.c.l.b16 %v600
    %v2126 = vunpack.c.h.b16 %v600
    %v2127 = vunpack.c.l.b16 %v601
    %v2128 = vunpack.c.h.b16 %v601
    %v2129 = vunpack.c.l.b16 %v602
    %v2130 = vunpack.c.h.b16 %v602
    %v2131 = vunpack.c.l.b16 %v603
    %v2132 = vunpack.c.h.b16 %v603
    %v2133 = vunpack.c.l.b16 %v604
    %v2134 = vunpack.c.h.b16 %v604
    %v2135 = vunpack.c.l.b16 %v605
    %v2136 = vunpack.c.h.b16 %v605
    %v2137 = vunpack.c.l.b16 %v606
    %v2138 = vunpack.c.h.b16 %v606
    %v2139 = vunpack.c.l.b16 %v607
    %v2140 = vunpack.c.h.b16 %v607
    %v2141 = vunpack.c.l.b16 %v608
    %v2142 = vunpack.c.h.b16 %v608
    %v2143 = vunpack.c.l.b16 %v609
    %v2144 = vunpack.c.h.b16 %v609
    %v2145 = vunpack.c.l.b16 %v610
    %v2146 = vunpack.c.h.b16 %v610
    %v2147 = vunpack.c.l.b16 %v611
    %v2148 = vunpack.c.h.b16 %v611
    %v2149 = vunpack.c.l.b16 %v612
    %v2150 = vunpack.c.h.b16 %v612
    %v2151 = vunpack.c.l.b16 %v613
    %v2152 = vunpack.c.h.b16 %v613
    %v2153 = vunpack.c.l.b16 %v614
    %v2154 = vunpack.c.h.b16 %v614
    %v2155 = vunpack.c.l.b16 %v615
    %v2156 = vunpack.c.h.b16 %v615
    %v2157 = vunpack.c.l.b16 %v616
    %v2158 = vunpack.c.h.b16 %v616
    %v2159 = vunpack.c.l.b16 %v617
    %v2160 = vunpack.c.h.b16 %v617
    %v2161 = vunpack.c.l.b16 %v618
    %v2162 = vunpack.c.h.b16 %v618
    %v2163 = vunpack.c.l.b16 %v619
    %v2164 = vunpack.c.h.b16 %v619
    %v2165 = vunpack.c.l.b16 %v620
    %v2166 = vunpack.c.h.b16 %v620
    %v2167 = vunpack.c.l.b16 %v621
    %v2168 = vunpack.c.h.b16 %v621
    %v2169 = vunpack.c.l.b16 %v622
    %v2170 = vunpack.c.h.b16 %v622
    %v2171 = vunpack.c.l.b16 %v623
    %v2172 = vunpack.c.h.b16 %v623
    %v2173 = vunpack.c.l.b16 %v624
    %v2174 = vunpack.c.h.b16 %v624
    %v2175 = vunpack.c.l.b16 %v625
    %v2176 = vunpack.c.h.b16 %v625
    %v2177 = vunpack.c.l.b16 %v626
    %v2178 = vunpack.c.h.b16 %v626
    %v2179 = vunpack.c.l.b16 %v627
    %v2180 = vunpack.c.h.b16 %v627
    %v2181 = vunpack.c.l.b16 %v628
    %v2182 = vunpack.c.h.b16 %v628
    %v2183 = vunpack.c.l.b16 %v629
    %v2184 = vunpack.c.h.b16 %v629
    %v2185 = vunpack.c.l.b16 %v630
    %v2186 = vunpack.c.h.b16 %v630
    %v2187 = vunpack.c.l.b16 %v631
    %v2188 = vunpack.c.h.b16 %v631
    %v2189 = vunpack.c.l.b16 %v632
    %v2190 = vunpack.c.h.b16 %v632
    %v2191 = vunpack.c.l.b16 %v633
    %v2192 = vunpack.c.h.b16 %v633
    %v2193 = vunpack.c.l.b16 %v634
    %v2194 = vunpack.c.h.b16 %v634
    %v2195 = vunpack.c.l.b16 %v635
    %v2196 = vunpack.c.h.b16 %v635
    %v2197 = vunpack.c.l.b16 %v636
    %v2198 = vunpack.c.h.b16 %v636
    %v2199 = vunpack.c.l.b16 %v637
    %v2200 = vunpack.c.h.b16 %v637
    %v2201 = vunpack.c.l.b16 %v638
    %v2202 = vunpack.c.h.b16 %v638
    %v2203 = vunpack.c.l.b16 %v639
    %v2204 = vunpack.c.h.b16 %v639
    %v2205 = vunpack.c.l.b16 %v640
    %v2206 = vunpack.c.h.b16 %v640
    %v2207 = vunpack.c.l.b16 %v641
    %v2208 = vunpack.c.h.b16 %v641
    %v2209 = vunpack.c.l.b16 %v642
    %v2210 = vunpack.c.h.b16 %v642
    %v2211 = vunpack.c.l.b16 %v643
    %v2212 = vunpack.c.h.b16 %v643
    %v2213 = vunpack.c.l.b16 %v644
    %v2214 = vunpack.c.h.b16 %v644
    %v2215 = vunpack.c.l.b16 %v645
    %v2216 = vunpack.c.h.b16 %v645
    %v2217 = vunpack.c.l.b16 %v646
    %v2218 = vunpack.c.h.b16 %v646
    %v2219 = vunpack.c.l.b16 %v647
    %v2220 = vunpack.c.h.b16 %v647
    %v2221 = vunpack.c.l.b16 %v648
    %v2222 = vunpack.c.h.b16 %v648
    %v2223 = vunpack.c.l.b16 %v649
    %v2224 = vunpack.c.h.b16 %v649
    %v2225 = vunpack.c.l.b16 %v650
    %v2226 = vunpack.c.h.b16 %v650
    %v2227 = vunpack.c.l.b16 %v651
    %v2228 = vunpack.c.h.b16 %v651
    %v2229 = vunpack.c.l.b16 %v652
    %v2230 = vunpack.c.h.b16 %v652
    %v2231 = vunpack.c.l.b16 %v653
    %v2232 = vunpack.c.h.b16 %v653
    %v2233 = vunpack.c.l.b16 %v654
    %v2234 = vunpack.c.h.b16 %v654
    %v2235 = vunpack.c.l.b16 %v655
    %v2236 = vunpack.c.h.b16 %v655
    %v2237 = vunpack.c.l.b16 %v656
    %v2238 = vunpack.c.h.b16 %v656
    %v2239 = vunpack.c.l.b16 %v657
    %v2240 = vunpack.c.h.b16 %v657
    %v2241 = vunpack.c.l.b16 %v658
    %v2242 = vunpack.c.h.b16 %v658
    %v2243 = vunpack.c.l.b16 %v659
    %v2244 = vunpack.c.h.b16 %v659
    %v2245 = vunpack.c.l.b16 %v660
    %v2246 = vunpack.c.h.b16 %v660
    %v2247 = vunpack.c.l.b16 %v661
    %v2248 = vunpack.c.h.b16 %v661
    %v2249 = vunpack.c.l.b16 %v662
    %v2250 = vunpack.c.h.b16 %v662
    %v2251 = vunpack.c.l.b16 %v663
    %v2252 = vunpack.c.h.b16 %v663
    %v2253 = vunpack.c.l.b16 %v664
    %v2254 = vunpack.c.h.b16 %v664
    %v2255 = vunpack.c.l.b16 %v665
    %v2256 = vunpack.c.h.b16 %v665
    %v2257 = vunpack.c.l.b16 %v666
    %v2258 = vunpack.c.h.b16 %v666
    %v2259 = vunpack.c.l.b16 %v667
    %v2260 = vunpack.c.h.b16 %v667
    %v2261 = vunpack.c.l.b16 %v668
    %v2262 = vunpack.c.h.b16 %v668
    %v2263 = vunpack.c.l.b16 %v669
    %v2264 = vunpack.c.h.b16 %v669
    %v2265 = vunpack.c.l.b16 %v670
    %v2266 = vunpack.c.h.b16 %v670
    %v2267 = vunpack.c.l.b16 %v671
    %v2268 = vunpack.c.h.b16 %v671
    %v2269 = vunpack.c.l.b16 %v672
    %v2270 = vunpack.c.h.b16 %v672
    %v2271 = vunpack.c.l.b16 %v673
    %v2272 = vunpack.c.h.b16 %v673
    %v2273 = vunpack.c.l.b16 %v674
    %v2274 = vunpack.c.h.b16 %v674
    %v2275 = vunpack.c.l.b16 %v675
    %v2276 = vunpack.c.h.b16 %v675
    %v2277 = vunpack.c.l.b16 %v676
    %v2278 = vunpack.c.h.b16 %v676
    %v2279 = vunpack.c.l.b16 %v677
    %v2280 = vunpack.c.h.b16 %v677
    %v2281 = vunpack.c.l.b16 %v678
    %v2282 = vunpack.c.h.b16 %v678
    %v2283 = vunpack.c.l.b16 %v679
    %v2284 = vunpack.c.h.b16 %v679
    %v2285 = vunpack.c.l.b16 %v680
    %v2286 = vunpack.c.h.b16 %v680
    %v2287 = vpack.c.b16 %v1271, %v1263
    %v2288 = vpack.c.b16 %v1272, %v1264
    %v2289 = vpack.c.b16 %v1273, %v1265
    %v2290 = vpack.c.b16 %v1274, %v1266
    %v2291 = vpack.c.b16 %v1275, %v1267
    %v2292 = vpack.c.b16 %v1276, %v1268
    %v2293 = vpack.c.b16 %v1277, %v1269
    %v2294 = vpack.c.b16 %v1278, %v1270
    %v2295 = vpack.c.b16 %v1287, %v1279
    %v2296 = vpack.c.b16 %v1288, %v1280
    %v2297 = vpack.c.b16 %v1289, %v1281
    %v2298 = vpack.c.b16 %v1290, %v1282
    %v2299 = vpack.c.b16 %v1291, %v1283
    %v2300 = vpack.c.b16 %v1292, %v1284
    %v2301 = vpack.c.b16 %v1293, %v1285
    %v2302 = vpack.c.b16 %v1294, %v1286
    %v2303 = vpack.c.b16 %v1303, %v1295
    %v2304 = vpack.c.b16 %v1304, %v1296
    %v2305 = vpack.c.b16 %v1305, %v1297
    %v2306 = vpack.c.b16 %v1306, %v1298
    %v2307 = vpack.c.b16 %v1307, %v1299
    %v2308 = vpack.c.b16 %v1308, %v1300
    %v2309 = vpack.c.b16 %v1309, %v1301
    %v2310 = vpack.c.b16 %v1310, %v1302
    %v2311 = vpack.c.b16 %v1319, %v1311
    %v2312 = vpack.c.b16 %v1320, %v1312
    %v2313 = vpack.c.b16 %v1321, %v1313
    %v2314 = vpack.c.b16 %v1322, %v1314
    %v2315 = vpack.c.b16 %v1323, %v1315
    %v2316 = vpack.c.b16 %v1324, %v1316
    %v2317 = vpack.c.b16 %v1325, %v1317
    %v2318 = vpack.c.b16 %v1326, %v1318
    %v2319 = vpack.c.b16 %v1335, %v1327
    %v2320 = vpack.c.b16 %v1336, %v1328
    %v2321 = vpack.c.b16 %v1337, %v1329
    %v2322 = vpack.c.b16 %v1338, %v1330
    %v2323 = vpack.c.b16 %v1339, %v1331
    %v2324 = vpack.c.b16 %v1340, %v1332
    %v2325 = vpack.c.b16 %v1341, %v1333
    %v2326 = vpack.c.b16 %v1342, %v1334
    %v2327 = vpack.c.b16 %v1351, %v1343
    %v2328 = vpack.c.b16 %v1352, %v1344
    %v2329 = vpack.c.b16 %v1353, %v1345
    %v2330 = vpack.c.b16 %v1354, %v1346
    %v2331 = vpack.c.b16 %v1355, %v1347
    %v2332 = vpack.c.b16 %v1356, %v1348
    %v2333 = vpack.c.b16 %v1357, %v1349
    %v2334 = vpack.c.b16 %v1358, %v1350
    %v2335 = vpack.c.b16 %v1367, %v1359
    %v2336 = vpack.c.b16 %v1368, %v1360
    %v2337 = vpack.c.b16 %v1369, %v1361
    %v2338 = vpack.c.b16 %v1370, %v1362
    %v2339 = vpack.c.b16 %v1371, %v1363
    %v2340 = vpack.c.b16 %v1372, %v1364
    %v2341 = vpack.c.b16 %v1373, %v1365
    %v2342 = vpack.c.b16 %v1374, %v1366
    %v2343 = vpack.c.b16 %v1383, %v1375
    %v2344 = vpack.c.b16 %v1384, %v1376
    %v2345 = vpack.c.b16 %v1385, %v1377
    %v2346 = vpack.c.b16 %v1386, %v1378
    %v2347 = vpack.c.b16 %v1387, %v1379
    %v2348 = vpack.c.b16 %v1388, %v1380
    %v2349 = vpack.c.b16 %v1389, %v1381
    %v2350 = vpack.c.b16 %v1390, %v1382
    %v2351 = vpack.c.b16 %v1399, %v1391
    %v2352 = vpack.c.b16 %v1400, %v1392
    %v2353 = vpack.c.b16 %v1401, %v1393
    %v2354 = vpack.c.b16 %v1402, %v1394
    %v2355 = vpack.c.b16 %v1403, %v1395
    %v2356 = vpack.c.b16 %v1404, %v1396
    %v2357 = vpack.c.b16 %v1405, %v1397
    %v2358 = vpack.c.b16 %v1406, %v1398
    %v2359 = vpack.c.b16 %v1415, %v1407
    %v2360 = vpack.c.b16 %v1416, %v1408
    %v2361 = vpack.c.b16 %v1417, %v1409
    %v2362 = vpack.c.b16 %v1418, %v1410
    %v2363 = vpack.c.b16 %v1419, %v1411
    %v2364 = vpack.c.b16 %v1420, %v1412
    %v2365 = vpack.c.b16 %v1421, %v1413
    %v2366 = vpack.c.b16 %v1422, %v1414
    %v2367 = vpack.c.b16 %v1431, %v1423
    %v2368 = vpack.c.b16 %v1432, %v1424
    %v2369 = vpack.c.b16 %v1433, %v1425
    %v2370 = vpack.c.b16 %v1434, %v1426
    %v2371 = vpack.c.b16 %v1435, %v1427
    %v2372 = vpack.c.b16 %v1436, %v1428
    %v2373 = vpack.c.b16 %v1437, %v1429
    %v2374 = vpack.c.b16 %v1438, %v1430
    %v2375 = vpack.c.b16 %v1447, %v1439
    %v2376 = vpack.c.b16 %v1448, %v1440
    %v2377 = vpack.c.b16 %v1449, %v1441
    %v2378 = vpack.c.b16 %v1450, %v1442
    %v2379 = vpack.c.b16 %v1451, %v1443
    %v2380 = vpack.c.b16 %v1452, %v1444
    %v2381 = vpack.c.b16 %v1453, %v1445
    %v2382 = vpack.c.b16 %v1454, %v1446
    %v2383 = vpack.c.b16 %v1463, %v1455
    %v2384 = vpack.c.b16 %v1464, %v1456
    %v2385 = vpack.c.b16 %v1465, %v1457
    %v2386 = vpack.c.b16 %v1466, %v1458
    %v2387 = vpack.c.b16 %v1467, %v1459
    %v2388 = vpack.c.b16 %v1468, %v1460
    %v2389 = vpack.c.b16 %v1469, %v1461
    %v2390 = vpack.c.b16 %v1470, %v1462
    %v2391 = vpack.c.b16 %v1479, %v1471
    %v2392 = vpack.c.b16 %v1480, %v1472
    %v2393 = vpack.c.b16 %v1481, %v1473
    %v2394 = vpack.c.b16 %v1482, %v1474
    %v2395 = vpack.c.b16 %v1483, %v1475
    %v2396 = vpack.c.b16 %v1484, %v1476
    %v2397 = vpack.c.b16 %v1485, %v1477
    %v2398 = vpack.c.b16 %v1486, %v1478
    %v2399 = vpack.c.b16 %v1495, %v1487
    %v2400 = vpack.c.b16 %v1496, %v1488
    %v2401 = vpack.c.b16 %v1497, %v1489
    %v2402 = vpack.c.b16 %v1498, %v1490
    %v2403 = vpack.c.b16 %v1499, %v1491
    %v2404 = vpack.c.b16 %v1500, %v1492
    %v2405 = vpack.c.b16 %v1501, %v1493
    %v2406 = vpack.c.b16 %v1502, %v1494
    %v2407 = vpack.c.b16 %v1511, %v1503
    %v2408 = vpack.c.b16 %v1512, %v1504
    %v2409 = vpack.c.b16 %v1513, %v1505
    %v2410 = vpack.c.b16 %v1514, %v1506
    %v2411 = vpack.c.b16 %v1515, %v1507
    %v2412 = vpack.c.b16 %v1516, %v1508
    %v2413 = vpack.c.b16 %v1517, %v1509
    %v2414 = vpack.c.b16 %v1518, %v1510
    %v2415 = vpack.c.b16 %v1527, %v1519
    %v2416 = vpack.c.b16 %v1528, %v1520
    %v2417 = vpack.c.b16 %v1529, %v1521
    %v2418 = vpack.c.b16 %v1530, %v1522
    %v2419 = vpack.c.b16 %v1531, %v1523
    %v2420 = vpack.c.b16 %v1532, %v1524
    %v2421 = vpack.c.b16 %v1533, %v1525
    %v2422 = vpack.c.b16 %v1534, %v1526
    %v2423 = vpack.c.b16 %v1543, %v1535
    %v2424 = vpack.c.b16 %v1544, %v1536
    %v2425 = vpack.c.b16 %v1545, %v1537
    %v2426 = vpack.c.b16 %v1546, %v1538
    %v2427 = vpack.c.b16 %v1547, %v1539
    %v2428 = vpack.c.b16 %v1548, %v1540
    %v2429 = vpack.c.b16 %v1549, %v1541
    %v2430 = vpack.c.b16 %v1550, %v1542
    %v2431 = vpack.c.b16 %v1559, %v1551
    %v2432 = vpack.c.b16 %v1560, %v1552
    %v2433 = vpack.c.b16 %v1561, %v1553
    %v2434 = vpack.c.b16 %v1562, %v1554
    %v2435 = vpack.c.b16 %v1563, %v1555
    %v2436 = vpack.c.b16 %v1564, %v1556
    %v2437 = vpack.c.b16 %v1565, %v1557
    %v2438 = vpack.c.b16 %v1566, %v1558
    %v2439 = vpack.c.b16 %v1575, %v1567
    %v2440 = vpack.c.b16 %v1576, %v1568
    %v2441 = vpack.c.b16 %v1577, %v1569
    %v2442 = vpack.c.b16 %v1578, %v1570
    %v2443 = vpack.c.b16 %v1579, %v1571
    %v2444 = vpack.c.b16 %v1580, %v1572
    %v2445 = vpack.c.b16 %v1581, %v1573
    %v2446 = vpack.c.b16 %v1582, %v1574
    %v2447 = vpack.c.b16 %v1591, %v1583
    %v2448 = vpack.c.b16 %v1592, %v1584
    %v2449 = vpack.c.b16 %v1593, %v1585
    %v2450 = vpack.c.b16 %v1594, %v1586
    %v2451 = vpack.c.b16 %v1595, %v1587
    %v2452 = vpack.c.b16 %v1596, %v1588
    %v2453 = vpack.c.b16 %v1597, %v1589
    %v2454 = vpack.c.b16 %v1598, %v1590
    %v2455 = vpack.c.b16 %v1607, %v1599
    %v2456 = vpack.c.b16 %v1608, %v1600
    %v2457 = vpack.c.b16 %v1609, %v1601
    %v2458 = vpack.c.b16 %v1610, %v1602
    %v2459 = vpack.c.b16 %v1611, %v1603
    %v2460 = vpack.c.b16 %v1612, %v1604
    %v2461 = vpack.c.b16 %v1613, %v1605
    %v2462 = vpack.c.b16 %v1614, %v1606
    %v2463 = vpack.c.b16 %v1623, %v1615
    %v2464 = vpack.c.b16 %v1624, %v1616
    %v2465 = vpack.c.b16 %v1625, %v1617
    %v2466 = vpack.c.b16 %v1626, %v1618
    %v2467 = vpack.c.b16 %v1627, %v1619
    %v2468 = vpack.c.b16 %v1628, %v1620
    %v2469 = vpack.c.b16 %v1629, %v1621
    %v2470 = vpack.c.b16 %v1630, %v1622
    %v2471 = vpack.c.b16 %v1639, %v1631
    %v2472 = vpack.c.b16 %v1640, %v1632
    %v2473 = vpack.c.b16 %v1641, %v1633
    %v2474 = vpack.c.b16 %v1642, %v1634
    %v2475 = vpack.c.b16 %v1643, %v1635
    %v2476 = vpack.c.b16 %v1644, %v1636
    %v2477 = vpack.c.b16 %v1645, %v1637
    %v2478 = vpack.c.b16 %v1646, %v1638
    %v2479 = vpack.c.b16 %v1655, %v1647
    %v2480 = vpack.c.b16 %v1656, %v1648
    %v2481 = vpack.c.b16 %v1657, %v1649
    %v2482 = vpack.c.b16 %v1658, %v1650
    %v2483 = vpack.c.b16 %v1659, %v1651
    %v2484 = vpack.c.b16 %v1660, %v1652
    %v2485 = vpack.c.b16 %v1661, %v1653
    %v2486 = vpack.c.b16 %v1662, %v1654
    %v2487 = vpack.c.b16 %v1671, %v1663
    %v2488 = vpack.c.b16 %v1672, %v1664
    %v2489 = vpack.c.b16 %v1673, %v1665
    %v2490 = vpack.c.b16 %v1674, %v1666
    %v2491 = vpack.c.b16 %v1675, %v1667
    %v2492 = vpack.c.b16 %v1676, %v1668
    %v2493 = vpack.c.b16 %v1677, %v1669
    %v2494 = vpack.c.b16 %v1678, %v1670
    %v2495 = vpack.c.b16 %v1687, %v1679
    %v2496 = vpack.c.b16 %v1688, %v1680
    %v2497 = vpack.c.b16 %v1689, %v1681
    %v2498 = vpack.c.b16 %v1690, %v1682
    %v2499 = vpack.c.b16 %v1691, %v1683
    %v2500 = vpack.c.b16 %v1692, %v1684
    %v2501 = vpack.c.b16 %v1693, %v1685
    %v2502 = vpack.c.b16 %v1694, %v1686
    %v2503 = vpack.c.b16 %v1703, %v1695
    %v2504 = vpack.c.b16 %v1704, %v1696
    %v2505 = vpack.c.b16 %v1705, %v1697
    %v2506 = vpack.c.b16 %v1706, %v1698
    %v2507 = vpack.c.b16 %v1707, %v1699
    %v2508 = vpack.c.b16 %v1708, %v1700
    %v2509 = vpack.c.b16 %v1709, %v1701
    %v2510 = vpack.c.b16 %v1710, %v1702
    %v2511 = vpack.c.b16 %v1719, %v1711
    %v2512 = vpack.c.b16 %v1720, %v1712
    %v2513 = vpack.c.b16 %v1721, %v1713
    %v2514 = vpack.c.b16 %v1722, %v1714
    %v2515 = vpack.c.b16 %v1723, %v1715
    %v2516 = vpack.c.b16 %v1724, %v1716
    %v2517 = vpack.c.b16 %v1725, %v1717
    %v2518 = vpack.c.b16 %v1726, %v1718
    %v2519 = vpack.c.b16 %v1735, %v1727
    %v2520 = vpack.c.b16 %v1736, %v1728
    %v2521 = vpack.c.b16 %v1737, %v1729
    %v2522 = vpack.c.b16 %v1738, %v1730
    %v2523 = vpack.c.b16 %v1739, %v1731
    %v2524 = vpack.c.b16 %v1740, %v1732
    %v2525 = vpack.c.b16 %v1741, %v1733
    %v2526 = vpack.c.b16 %v1742, %v1734
    %v2527 = vpack.c.b16 %v1751, %v1743
    %v2528 = vpack.c.b16 %v1752, %v1744
    %v2529 = vpack.c.b16 %v1753, %v1745
    %v2530 = vpack.c.b16 %v1754, %v1746
    %v2531 = vpack.c.b16 %v1755, %v1747
    %v2532 = vpack.c.b16 %v1756, %v1748
    %v2533 = vpack.c.b16 %v1757, %v1749
    %v2534 = vpack.c.b16 %v1758, %v1750
    %v2535 = vpack.c.b16 %v1767, %v1759
    %v2536 = vpack.c.b16 %v1768, %v1760
    %v2537 = vpack.c.b16 %v1769, %v1761
    %v2538 = vpack.c.b16 %v1770, %v1762
    %v2539 = vpack.c.b16 %v1771, %v1763
    %v2540 = vpack.c.b16 %v1772, %v1764
    %v2541 = vpack.c.b16 %v1773, %v1765
    %v2542 = vpack.c.b16 %v1774, %v1766
    %v2543 = vpack.c.b16 %v1783, %v1775
    %v2544 = vpack.c.b16 %v1784, %v1776
    %v2545 = vpack.c.b16 %v1785, %v1777
    %v2546 = vpack.c.b16 %v1786, %v1778
    %v2547 = vpack.c.b16 %v1787, %v1779
    %v2548 = vpack.c.b16 %v1788, %v1780
    %v2549 = vpack.c.b16 %v1789, %v1781
    %v2550 = vpack.c.b16 %v1790, %v1782
    %v2551 = vpack.c.b16 %v1799, %v1791
    %v2552 = vpack.c.b16 %v1800, %v1792
    %v2553 = vpack.c.b16 %v1801, %v1793
    %v2554 = vpack.c.b16 %v1802, %v1794
    %v2555 = vpack.c.b16 %v1803, %v1795
    %v2556 = vpack.c.b16 %v1804, %v1796
    %v2557 = vpack.c.b16 %v1805, %v1797
    %v2558 = vpack.c.b16 %v1806, %v1798
    %v2559 = vpack.c.b16 %v1815, %v1807
    %v2560 = vpack.c.b16 %v1816, %v1808
    %v2561 = vpack.c.b16 %v1817, %v1809
    %v2562 = vpack.c.b16 %v1818, %v1810
    %v2563 = vpack.c.b16 %v1819, %v1811
    %v2564 = vpack.c.b16 %v1820, %v1812
    %v2565 = vpack.c.b16 %v1821, %v1813
    %v2566 = vpack.c.b16 %v1822, %v1814
    %v2567 = vpack.c.b16 %v1831, %v1823
    %v2568 = vpack.c.b16 %v1832, %v1824
    %v2569 = vpack.c.b16 %v1833, %v1825
    %v2570 = vpack.c.b16 %v1834, %v1826
    %v2571 = vpack.c.b16 %v1835, %v1827
    %v2572 = vpack.c.b16 %v1836, %v1828
    %v2573 = vpack.c.b16 %v1837, %v1829
    %v2574 = vpack.c.b16 %v1838, %v1830
    %v2575 = vpack.c.b16 %v1847, %v1839
    %v2576 = vpack.c.b16 %v1848, %v1840
    %v2577 = vpack.c.b16 %v1849, %v1841
    %v2578 = vpack.c.b16 %v1850, %v1842
    %v2579 = vpack.c.b16 %v1851, %v1843
    %v2580 = vpack.c.b16 %v1852, %v1844
    %v2581 = vpack.c.b16 %v1853, %v1845
    %v2582 = vpack.c.b16 %v1854, %v1846
    %v2583 = vpack.c.b16 %v1863, %v1855
    %v2584 = vpack.c.b16 %v1864, %v1856
    %v2585 = vpack.c.b16 %v1865, %v1857
    %v2586 = vpack.c.b16 %v1866, %v1858
    %v2587 = vpack.c.b16 %v1867, %v1859
    %v2588 = vpack.c.b16 %v1868, %v1860
    %v2589 = vpack.c.b16 %v1869, %v1861
    %v2590 = vpack.c.b16 %v1870, %v1862
    %v2591 = vpack.c.b16 %v1879, %v1871
    %v2592 = vpack.c.b16 %v1880, %v1872
    %v2593 = vpack.c.b16 %v1881, %v1873
    %v2594 = vpack.c.b16 %v1882, %v1874
    %v2595 = vpack.c.b16 %v1883, %v1875
    %v2596 = vpack.c.b16 %v1884, %v1876
    %v2597 = vpack.c.b16 %v1885, %v1877
    %v2598 = vpack.c.b16 %v1886, %v1878
    %v2599 = vpack.c.b16 %v1895, %v1887
    %v2600 = vpack.c.b16 %v1896, %v1888
    %v2601 = vpack.c.b16 %v1897, %v1889
    %v2602 = vpack.c.b16 %v1898, %v1890
    %v2603 = vpack.c.b16 %v1899, %v1891
    %v2604 = vpack.c.b16 %v1900, %v1892
    %v2605 = vpack.c.b16 %v1901, %v1893
    %v2606 = vpack.c.b16 %v1902, %v1894
    %v2607 = vpack.c.b16 %v1911, %v1903
    %v2608 = vpack.c.b16 %v1912, %v1904
    %v2609 = vpack.c.b16 %v1913, %v1905
    %v2610 = vpack.c.b16 %v1914, %v1906
    %v2611 = vpack.c.b16 %v1915, %v1907
    %v2612 = vpack.c.b16 %v1916, %v1908
    %v2613 = vpack.c.b16 %v1917, %v1909
    %v2614 = vpack.c.b16 %v1918, %v1910
    %v2615 = vpack.c.b16 %v1927, %v1919
    %v2616 = vpack.c.b16 %v1928, %v1920
    %v2617 = vpack.c.b16 %v1929, %v1921
    %v2618 = vpack.c.b16 %v1930, %v1922
    %v2619 = vpack.c.b16 %v1931, %v1923
    %v2620 = vpack.c.b16 %v1932, %v1924
    %v2621 = vpack.c.b16 %v1933, %v1925
    %v2622 = vpack.c.b16 %v1934, %v1926
    %v2623 = vpack.c.b16 %v1943, %v1935
    %v2624 = vpack.c.b16 %v1944, %v1936
    %v2625 = vpack.c.b16 %v1945, %v1937
    %v2626 = vpack.c.b16 %v1946, %v1938
    %v2627 = vpack.c.b16 %v1947, %v1939
    %v2628 = vpack.c.b16 %v1948, %v1940
    %v2629 = vpack.c.b16 %v1949, %v1941
    %v2630 = vpack.c.b16 %v1950, %v1942
    %v2631 = vpack.c.b16 %v1959, %v1951
    %v2632 = vpack.c.b16 %v1960, %v1952
    %v2633 = vpack.c.b16 %v1961, %v1953
    %v2634 = vpack.c.b16 %v1962, %v1954
    %v2635 = vpack.c.b16 %v1963, %v1955
    %v2636 = vpack.c.b16 %v1964, %v1956
    %v2637 = vpack.c.b16 %v1965, %v1957
    %v2638 = vpack.c.b16 %v1966, %v1958
    %v2639 = vpack.c.b16 %v1975, %v1967
    %v2640 = vpack.c.b16 %v1976, %v1968
    %v2641 = vpack.c.b16 %v1977, %v1969
    %v2642 = vpack.c.b16 %v1978, %v1970
    %v2643 = vpack.c.b16 %v1979, %v1971
    %v2644 = vpack.c.b16 %v1980, %v1972
    %v2645 = vpack.c.b16 %v1981, %v1973
    %v2646 = vpack.c.b16 %v1982, %v1974
    %v2647 = vpack.c.b16 %v1991, %v1983
    %v2648 = vpack.c.b16 %v1992, %v1984
    %v2649 = vpack.c.b16 %v1993, %v1985
    %v2650 = vpack.c.b16 %v1994, %v1986
    %v2651 = vpack.c.b16 %v1995, %v1987
    %v2652 = vpack.c.b16 %v1996, %v1988
    %v2653 = vpack.c.b16 %v1997, %v1989
    %v2654 = vpack.c.b16 %v1998, %v1990
    %v2655 = vpack.c.b16 %v2007, %v1999
    %v2656 = vpack.c.b16 %v2008, %v2000
    %v2657 = vpack.c.b16 %v2009, %v2001
    %v2658 = vpack.c.b16 %v2010, %v2002
    %v2659 = vpack.c.b16 %v2011, %v2003
    %v2660 = vpack.c.b16 %v2012, %v2004
    %v2661 = vpack.c.b16 %v2013, %v2005
    %v2662 = vpack.c.b16 %v2014, %v2006
    %v2663 = vpack.c.b16 %v2023, %v2015
    %v2664 = vpack.c.b16 %v2024, %v2016
    %v2665 = vpack.c.b16 %v2025, %v2017
    %v2666 = vpack.c.b16 %v2026, %v2018
    %v2667 = vpack.c.b16 %v2027, %v2019
    %v2668 = vpack.c.b16 %v2028, %v2020
    %v2669 = vpack.c.b16 %v2029, %v2021
    %v2670 = vpack.c.b16 %v2030, %v2022
    %v2671 = vpack.c.b16 %v2039, %v2031
    %v2672 = vpack.c.b16 %v2040, %v2032
    %v2673 = vpack.c.b16 %v2041, %v2033
    %v2674 = vpack.c.b16 %v2042, %v2034
    %v2675 = vpack.c.b16 %v2043, %v2035
    %v2676 = vpack.c.b16 %v2044, %v2036
    %v2677 = vpack.c.b16 %v2045, %v2037
    %v2678 = vpack.c.b16 %v2046, %v2038
    %v2679 = vpack.c.b16 %v2055, %v2047
    %v2680 = vpack.c.b16 %v2056, %v2048
    %v2681 = vpack.c.b16 %v2057, %v2049
    %v2682 = vpack.c.b16 %v2058, %v2050
    %v2683 = vpack.c.b16 %v2059, %v2051
    %v2684 = vpack.c.b16 %v2060, %v2052
    %v2685 = vpack.c.b16 %v2061, %v2053
    %v2686 = vpack.c.b16 %v2062, %v2054
    %v2687 = vpack.c.b16 %v2071, %v2063
    %v2688 = vpack.c.b16 %v2072, %v2064
    %v2689 = vpack.c.b16 %v2073, %v2065
    %v2690 = vpack.c.b16 %v2074, %v2066
    %v2691 = vpack.c.b16 %v2075, %v2067
    %v2692 = vpack.c.b16 %v2076, %v2068
    %v2693 = vpack.c.b16 %v2077, %v2069
    %v2694 = vpack.c.b16 %v2078, %v2070
    %v2695 = vpack.c.b16 %v2087, %v2079
    %v2696 = vpack.c.b16 %v2088, %v2080
    %v2697 = vpack.c.b16 %v2089, %v2081
    %v2698 = vpack.c.b16 %v2090, %v2082
    %v2699 = vpack.c.b16 %v2091, %v2083
    %v2700 = vpack.c.b16 %v2092, %v2084
    %v2701 = vpack.c.b16 %v2093, %v2085
    %v2702 = vpack.c.b16 %v2094, %v2086
    %v2703 = vpack.c.b16 %v2103, %v2095
    %v2704 = vpack.c.b16 %v2104, %v2096
    %v2705 = vpack.c.b16 %v2105, %v2097
    %v2706 = vpack.c.b16 %v2106, %v2098
    %v2707 = vpack.c.b16 %v2107, %v2099
    %v2708 = vpack.c.b16 %v2108, %v2100
    %v2709 = vpack.c.b16 %v2109, %v2101
    %v2710 = vpack.c.b16 %v2110, %v2102
    %v2711 = vpack.c.b16 %v2119, %v2111
    %v2712 = vpack.c.b16 %v2120, %v2112
    %v2713 = vpack.c.b16 %v2121, %v2113
    %v2714 = vpack.c.b16 %v2122, %v2114
    %v2715 = vpack.c.b16 %v2123, %v2115
    %v2716 = vpack.c.b16 %v2124, %v2116
    %v2717 = vpack.c.b16 %v2125, %v2117
    %v2718 = vpack.c.b16 %v2126, %v2118
    %v2719 = vpack.c.b16 %v2135, %v2127
    %v2720 = vpack.c.b16 %v2136, %v2128
    %v2721 = vpack.c.b16 %v2137, %v2129
    %v2722 = vpack.c.b16 %v2138, %v2130
    %v2723 = vpack.c.b16 %v2139, %v2131
    %v2724 = vpack.c.b16 %v2140, %v2132
    %v2725 = vpack.c.b16 %v2141, %v2133
    %v2726 = vpack.c.b16 %v2142, %v2134
    %v2727 = vpack.c.b16 %v2151, %v2143
    %v2728 = vpack.c.b16 %v2152, %v2144
    %v2729 = vpack.c.b16 %v2153, %v2145
    %v2730 = vpack.c.b16 %v2154, %v2146
    %v2731 = vpack.c.b16 %v2155, %v2147
    %v2732 = vpack.c.b16 %v2156, %v2148
    %v2733 = vpack.c.b16 %v2157, %v2149
    %v2734 = vpack.c.b16 %v2158, %v2150
    %v2735 = vpack.c.b16 %v2167, %v2159
    %v2736 = vpack.c.b16 %v2168, %v2160
    %v2737 = vpack.c.b16 %v2169, %v2161
    %v2738 = vpack.c.b16 %v2170, %v2162
    %v2739 = vpack.c.b16 %v2171, %v2163
    %v2740 = vpack.c.b16 %v2172, %v2164
    %v2741 = vpack.c.b16 %v2173, %v2165
    %v2742 = vpack.c.b16 %v2174, %v2166
    %v2743 = vpack.c.b16 %v2183, %v2175
    %v2744 = vpack.c.b16 %v2184, %v2176
    %v2745 = vpack.c.b16 %v2185, %v2177
    %v2746 = vpack.c.b16 %v2186, %v2178
    %v2747 = vpack.c.b16 %v2187, %v2179
    %v2748 = vpack.c.b16 %v2188, %v2180
    %v2749 = vpack.c.b16 %v2189, %v2181
    %v2750 = vpack.c.b16 %v2190, %v2182
    %v2751 = vpack.c.b16 %v2199, %v2191
    %v2752 = vpack.c.b16 %v2200, %v2192
    %v2753 = vpack.c.b16 %v2201, %v2193
    %v2754 = vpack.c.b16 %v2202, %v2194
    %v2755 = vpack.c.b16 %v2203, %v2195
    %v2756 = vpack.c.b16 %v2204, %v2196
    %v2757 = vpack.c.b16 %v2205, %v2197
    %v2758 = vpack.c.b16 %v2206, %v2198
    %v2759 = vpack.c.b16 %v2215, %v2207
    %v2760 = vpack.c.b16 %v2216, %v2208
    %v2761 = vpack.c.b16 %v2217, %v2209
    %v2762 = vpack.c.b16 %v2218, %v2210
    %v2763 = vpack.c.b16 %v2219, %v2211
    %v2764 = vpack.c.b16 %v2220, %v2212
    %v2765 = vpack.c.b16 %v2221, %v2213
    %v2766 = vpack.c.b16 %v2222, %v2214
    %v2767 = vpack.c.b16 %v2231, %v2223
    %v2768 = vpack.c.b16 %v2232, %v2224
    %v2769 = vpack.c.b16 %v2233, %v2225
    %v2770 = vpack.c.b16 %v2234, %v2226
    %v2771 = vpack.c.b16 %v2235, %v2227
    %v2772 = vpack.c.b16 %v2236, %v2228
    %v2773 = vpack.c.b16 %v2237, %v2229
    %v2774 = vpack.c.b16 %v2238, %v2230
    %v2775 = vpack.c.b16 %v2247, %v2239
    %v2776 = vpack.c.b16 %v2248, %v2240
    %v2777 = vpack.c.b16 %v2249, %v2241
    %v2778 = vpack.c.b16 %v2250, %v2242
    %v2779 = vpack.c.b16 %v2251, %v2243
    %v2780 = vpack.c.b16 %v2252, %v2244
    %v2781 = vpack.c.b16 %v2253, %v2245
    %v2782 = vpack.c.b16 %v2254, %v2246
    %v2783 = vpack.c.b16 %v2263, %v2255
    %v2784 = vpack.c.b16 %v2264, %v2256
    %v2785 = vpack.c.b16 %v2265, %v2257
    %v2786 = vpack.c.b16 %v2266, %v2258
    %v2787 = vpack.c.b16 %v2267, %v2259
    %v2788 = vpack.c.b16 %v2268, %v2260
    %v2789 = vpack.c.b16 %v2269, %v2261
    %v2790 = vpack.c.b16 %v2270, %v2262
    %v2791 = vpack.c.b16 %v2279, %v2271
    %v2792 = vpack.c.b16 %v2280, %v2272
    %v2793 = vpack.c.b16 %v2281, %v2273
    %v2794 = vpack.c.b16 %v2282, %v2274
    %v2795 = vpack.c.b16 %v2283, %v2275
    %v2796 = vpack.c.b16 %v2284, %v2276
    %v2797 = vpack.c.b16 %v2285, %v2277
    %v2798 = vpack.c.b16 %v2286, %v2278
    %3311 = vmatprep.subr.bf16.mxu0 %v2288
    %3312 = vmatpush1.bf16.msra.mxu0 %v2287
    %3313 = vmatprep.subr.bf16.mxu0 %v2296
    %3314 = vmatpush1.bf16.msra.mxu0 %v2295
    %3315 = vmatprep.subr.bf16.mxu0 %v2304
    %3316 = vmatpush1.bf16.msra.mxu0 %v2303
    %3317 = vmatprep.subr.bf16.mxu0 %v2312
    %3318 = vmatpush1.bf16.msra.mxu0 %v2311
    %3319 = vmatprep.subr.bf16.mxu0 %v2320
    %3320 = vmatpush1.bf16.msra.mxu0 %v2319
    %3321 = vmatprep.subr.bf16.mxu0 %v2328
    %3322 = vmatpush1.bf16.msra.mxu0 %v2327
    %3323 = vmatprep.subr.bf16.mxu0 %v2336
    %3324 = vmatpush1.bf16.msra.mxu0 %v2335
    %3325 = vmatprep.subr.bf16.mxu0 %v2344
    %3326 = vmatpush1.bf16.msra.mxu0 %v2343
    %3327 = vmatprep.subr.bf16.mxu0 %v2352
    %3328 = vmatpush1.bf16.msra.mxu0 %v2351
    %3329 = vmatprep.subr.bf16.mxu0 %v2360
    %3330 = vmatpush1.bf16.msra.mxu0 %v2359
    %3331 = vmatprep.subr.bf16.mxu0 %v2368
    %3332 = vmatpush1.bf16.msra.mxu0 %v2367
    %3333 = vmatprep.subr.bf16.mxu0 %v2376
    %3334 = vmatpush1.bf16.msra.mxu0 %v2375
    %3335 = vmatprep.subr.bf16.mxu0 %v2384
    %3336 = vmatpush1.bf16.msra.mxu0 %v2383
    %3337 = vmatprep.subr.bf16.mxu0 %v2392
    %3338 = vmatpush1.bf16.msra.mxu0 %v2391
    %3339 = vmatprep.subr.bf16.mxu0 %v2400
    %3340 = vmatpush1.bf16.msra.mxu0 %v2399
    %3341 = vmatprep.subr.bf16.mxu0 %v2408
    %3342 = vmatpush1.bf16.msra.mxu0 %v2407
    %3343 = vmatprep.mubr.bf16.mxu0 %v736
    %3344 = vmatmul.mubr.bf16.gmra.mrb[0].mxu0 %v735
    %v3345 = vpop.f32.mrb[0].mxu0
    %v3346 = vadd.f32 %v686, %v3345
    %v3347 = vpop.f32.mrb[0].mxu0
    %v3348 = vadd.f32 %v690, %v3347
    %v3349 = vpop.f32.mrb[0].mxu0
    %v3350 = vpop.f32.mrb[0].mxu0
    %3351 = vdwg.mxu0
    %3352 = vmatprep.subr.bf16.mxu0 %v2416
    %3353 = vmatpush1.bf16.msra.mxu0 %v2415
    %3354 = vmatprep.subr.bf16.mxu0 %v2424
    %3355 = vmatpush1.bf16.msra.mxu0 %v2423
    %3356 = vmatprep.subr.bf16.mxu0 %v2432
    %3357 = vmatpush1.bf16.msra.mxu0 %v2431
    %3358 = vmatprep.subr.bf16.mxu0 %v2440
    %3359 = vmatpush1.bf16.msra.mxu0 %v2439
    %3360 = vmatprep.subr.bf16.mxu0 %v2448
    %3361 = vmatpush1.bf16.msra.mxu0 %v2447
    %3362 = vmatprep.subr.bf16.mxu0 %v2456
    %3363 = vmatpush1.bf16.msra.mxu0 %v2455
    %3364 = vmatprep.subr.bf16.mxu0 %v2464
    %3365 = vmatpush1.bf16.msra.mxu0 %v2463
    %3366 = vmatprep.subr.bf16.mxu0 %v2472
    %3367 = vmatpush1.bf16.msra.mxu0 %v2471
    %3368 = vmatprep.subr.bf16.mxu0 %v2480
    %3369 = vmatpush1.bf16.msra.mxu0 %v2479
    %3370 = vmatprep.subr.bf16.mxu0 %v2488
    %3371 = vmatpush1.bf16.msra.mxu0 %v2487
    %3372 = vmatprep.subr.bf16.mxu0 %v2496
    %3373 = vmatpush1.bf16.msra.mxu0 %v2495
    %3374 = vmatprep.subr.bf16.mxu0 %v2504
    %3375 = vmatpush1.bf16.msra.mxu0 %v2503
    %3376 = vmatprep.subr.bf16.mxu0 %v2512
    %3377 = vmatpush1.bf16.msra.mxu0 %v2511
    %3378 = vmatprep.subr.bf16.mxu0 %v2520
    %3379 = vmatpush1.bf16.msra.mxu0 %v2519
    %3380 = vmatprep.subr.bf16.mxu0 %v2528
    %3381 = vmatpush1.bf16.msra.mxu0 %v2527
    %3382 = vmatprep.subr.bf16.mxu0 %v2536
    %3383 = vmatpush1.bf16.msra.mxu0 %v2535
    %3384 = vmatprep.mubr.bf16.mxu0 %v738
    %3385 = vmatmul.mubr.bf16.gmra.mrb[0].mxu0 %v737
    %v3386 = vpop.f32.mrb[0].mxu0
    %v3387 = vadd.f32 %v3346, %v3386
    %v3388 = vpop.f32.mrb[0].mxu0
    %v3389 = vadd.f32 %v3348, %v3388
    %v3390 = vpop.f32.mrb[0].mxu0
    %v3391 = vpop.f32.mrb[0].mxu0
    %3392 = vdwg.mxu0
    %3393 = vmatprep.subr.bf16.mxu0 %v2544
    %3394 = vmatpush1.bf16.msra.mxu0 %v2543
    %3395 = vmatprep.subr.bf16.mxu0 %v2552
    %3396 = vmatpush1.bf16.msra.mxu0 %v2551
    %3397 = vmatprep.subr.bf16.mxu0 %v2560
    %3398 = vmatpush1.bf16.msra.mxu0 %v2559
    %3399 = vmatprep.subr.bf16.mxu0 %v2568
    %3400 = vmatpush1.bf16.msra.mxu0 %v2567
    %3401 = vmatprep.subr.bf16.mxu0 %v2576
    %3402 = vmatpush1.bf16.msra.mxu0 %v2575
    %3403 = vmatprep.subr.bf16.mxu0 %v2584
    %3404 = vmatpush1.bf16.msra.mxu0 %v2583
    %3405 = vmatprep.subr.bf16.mxu0 %v2592
    %3406 = vmatpush1.bf16.msra.mxu0 %v2591
    %3407 = vmatprep.subr.bf16.mxu0 %v2600
    %3408 = vmatpush1.bf16.msra.mxu0 %v2599
    %3409 = vmatprep.subr.bf16.mxu0 %v2608
    %3410 = vmatpush1.bf16.msra.mxu0 %v2607
    %3411 = vmatprep.subr.bf16.mxu0 %v2616
    %3412 = vmatpush1.bf16.msra.mxu0 %v2615
    %3413 = vmatprep.subr.bf16.mxu0 %v2624
    %3414 = vmatpush1.bf16.msra.mxu0 %v2623
    %3415 = vmatprep.subr.bf16.mxu0 %v2632
    %3416 = vmatpush1.bf16.msra.mxu0 %v2631
    %3417 = vmatprep.subr.bf16.mxu0 %v2640
    %3418 = vmatpush1.bf16.msra.mxu0 %v2639
    %3419 = vmatprep.subr.bf16.mxu0 %v2648
    %3420 = vmatpush1.bf16.msra.mxu0 %v2647
    %3421 = vmatprep.subr.bf16.mxu0 %v2656
    %3422 = vmatpush1.bf16.msra.mxu0 %v2655
    %3423 = vmatprep.subr.bf16.mxu0 %v2664
    %3424 = vmatpush1.bf16.msra.mxu0 %v2663
    %3425 = vmatprep.mubr.bf16.mxu0 %v740
    %3426 = vmatmul.mubr.bf16.gmra.mrb[0].mxu0 %v739
    %v3427 = vpop.f32.mrb[0].mxu0
    %v3428 = vadd.f32 %v3387, %v3427
    %v3429 = vpop.f32.mrb[0].mxu0
    %v3430 = vadd.f32 %v3389, %v3429
    %v3431 = vpop.f32.mrb[0].mxu0
    %v3432 = vpop.f32.mrb[0].mxu0
    %3433 = vdwg.mxu0
    %3434 = vmatprep.subr.bf16.mxu0 %v2672
    %3435 = vmatpush1.bf16.msra.mxu0 %v2671
    %3436 = vmatprep.subr.bf16.mxu0 %v2680
    %3437 = vmatpush1.bf16.msra.mxu0 %v2679
    %3438 = vmatprep.subr.bf16.mxu0 %v2688
    %3439 = vmatpush1.bf16.msra.mxu0 %v2687
    %3440 = vmatprep.subr.bf16.mxu0 %v2696
    %3441 = vmatpush1.bf16.msra.mxu0 %v2695
    %3442 = vmatprep.subr.bf16.mxu0 %v2704
    %3443 = vmatpush1.bf16.msra.mxu0 %v2703
    %3444 = vmatprep.subr.bf16.mxu0 %v2712
    %3445 = vmatpush1.bf16.msra.mxu0 %v2711
    %3446 = vmatprep.subr.bf16.mxu0 %v2720
    %3447 = vmatpush1.bf16.msra.mxu0 %v2719
    %3448 = vmatprep.subr.bf16.mxu0 %v2728
    %3449 = vmatpush1.bf16.msra.mxu0 %v2727
    %3450 = vmatprep.subr.bf16.mxu0 %v2736
    %3451 = vmatpush1.bf16.msra.mxu0 %v2735
    %3452 = vmatprep.subr.bf16.mxu0 %v2744
    %3453 = vmatpush1.bf16.msra.mxu0 %v2743
    %3454 = vmatprep.subr.bf16.mxu0 %v2752
    %3455 = vmatpush1.bf16.msra.mxu0 %v2751
    %3456 = vmatprep.subr.bf16.mxu0 %v2760
    %3457 = vmatpush1.bf16.msra.mxu0 %v2759
    %3458 = vmatprep.subr.bf16.mxu0 %v2768
    %3459 = vmatpush1.bf16.msra.mxu0 %v2767
    %3460 = vmatprep.subr.bf16.mxu0 %v2776
    %3461 = vmatpush1.bf16.msra.mxu0 %v2775
    %3462 = vmatprep.subr.bf16.mxu0 %v2784
    %3463 = vmatpush1.bf16.msra.mxu0 %v2783
    %3464 = vmatprep.subr.bf16.mxu0 %v2792
    %3465 = vmatpush1.bf16.msra.mxu0 %v2791
    %3466 = vmatprep.mubr.bf16.mxu0 %v742
    %3467 = vmatmul.mubr.bf16.gmra.mrb[0].mxu0 %v741
    %v3468 = vpop.f32.mrb[0].mxu0
    %v3469 = vadd.f32 %v3428, %v3468
    %v3470 = vpop.f32.mrb[0].mxu0
    %v3471 = vadd.f32 %v3430, %v3470
    %v3472 = vpop.f32.mrb[0].mxu0
    %v3473 = vpop.f32.mrb[0].mxu0
    %3474 = vdwg.mxu0
    %3475 = vmatprep.subr.bf16.mxu0 %v2290
    %3476 = vmatpush1.bf16.msra.mxu0 %v2289
    %3477 = vmatprep.subr.bf16.mxu0 %v2298
    %3478 = vmatpush1.bf16.msra.mxu0 %v2297
    %3479 = vmatprep.subr.bf16.mxu0 %v2306
    %3480 = vmatpush1.bf16.msra.mxu0 %v2305
    %3481 = vmatprep.subr.bf16.mxu0 %v2314
    %3482 = vmatpush1.bf16.msra.mxu0 %v2313
    %3483 = vmatprep.subr.bf16.mxu0 %v2322
    %3484 = vmatpush1.bf16.msra.mxu0 %v2321
    %3485 = vmatprep.subr.bf16.mxu0 %v2330
    %3486 = vmatpush1.bf16.msra.mxu0 %v2329
    %3487 = vmatprep.subr.bf16.mxu0 %v2338
    %3488 = vmatpush1.bf16.msra.mxu0 %v2337
    %3489 = vmatprep.subr.bf16.mxu0 %v2346
    %3490 = vmatpush1.bf16.msra.mxu0 %v2345
    %3491 = vmatprep.subr.bf16.mxu0 %v2354
    %3492 = vmatpush1.bf16.msra.mxu0 %v2353
    %3493 = vmatprep.subr.bf16.mxu0 %v2362
    %3494 = vmatpush1.bf16.msra.mxu0 %v2361
    %3495 = vmatprep.subr.bf16.mxu0 %v2370
    %3496 = vmatpush1.bf16.msra.mxu0 %v2369
    %3497 = vmatprep.subr.bf16.mxu0 %v2378
    %3498 = vmatpush1.bf16.msra.mxu0 %v2377
    %3499 = vmatprep.subr.bf16.mxu0 %v2386
    %3500 = vmatpush1.bf16.msra.mxu0 %v2385
    %3501 = vmatprep.subr.bf16.mxu0 %v2394
    %3502 = vmatpush1.bf16.msra.mxu0 %v2393
    %3503 = vmatprep.subr.bf16.mxu0 %v2402
    %3504 = vmatpush1.bf16.msra.mxu0 %v2401
    %3505 = vmatprep.subr.bf16.mxu0 %v2410
    %3506 = vmatpush1.bf16.msra.mxu0 %v2409
    %3507 = vmatprep.mubr.bf16.mxu0 %v736
    %3508 = vmatmul.mubr.bf16.gmra.mrb[0].mxu0 %v735
    %v3509 = vpop.f32.mrb[0].mxu0
    %v3510 = vadd.f32 %v694, %v3509
    %v3511 = vpop.f32.mrb[0].mxu0
    %v3512 = vadd.f32 %v698, %v3511
    %v3513 = vpop.f32.mrb[0].mxu0
    %v3514 = vpop.f32.mrb[0].mxu0
    %3515 = vdwg.mxu0
    %3516 = vmatprep.subr.bf16.mxu0 %v2418
    %3517 = vmatpush1.bf16.msra.mxu0 %v2417
    %3518 = vmatprep.subr.bf16.mxu0 %v2426
    %3519 = vmatpush1.bf16.msra.mxu0 %v2425
    %3520 = vmatprep.subr.bf16.mxu0 %v2434
    %3521 = vmatpush1.bf16.msra.mxu0 %v2433
    %3522 = vmatprep.subr.bf16.mxu0 %v2442
    %3523 = vmatpush1.bf16.msra.mxu0 %v2441
    %3524 = vmatprep.subr.bf16.mxu0 %v2450
    %3525 = vmatpush1.bf16.msra.mxu0 %v2449
    %3526 = vmatprep.subr.bf16.mxu0 %v2458
    %3527 = vmatpush1.bf16.msra.mxu0 %v2457
    %3528 = vmatprep.subr.bf16.mxu0 %v2466
    %3529 = vmatpush1.bf16.msra.mxu0 %v2465
    %3530 = vmatprep.subr.bf16.mxu0 %v2474
    %3531 = vmatpush1.bf16.msra.mxu0 %v2473
    %3532 = vmatprep.subr.bf16.mxu0 %v2482
    %3533 = vmatpush1.bf16.msra.mxu0 %v2481
    %3534 = vmatprep.subr.bf16.mxu0 %v2490
    %3535 = vmatpush1.bf16.msra.mxu0 %v2489
    %3536 = vmatprep.subr.bf16.mxu0 %v2498
    %3537 = vmatpush1.bf16.msra.mxu0 %v2497
    %3538 = vmatprep.subr.bf16.mxu0 %v2506
    %3539 = vmatpush1.bf16.msra.mxu0 %v2505
    %3540 = vmatprep.subr.bf16.mxu0 %v2514
    %3541 = vmatpush1.bf16.msra.mxu0 %v2513
    %3542 = vmatprep.subr.bf16.mxu0 %v2522
    %3543 = vmatpush1.bf16.msra.mxu0 %v2521
    %3544 = vmatprep.subr.bf16.mxu0 %v2530
    %3545 = vmatpush1.bf16.msra.mxu0 %v2529
    %3546 = vmatprep.subr.bf16.mxu0 %v2538
    %3547 = vmatpush1.bf16.msra.mxu0 %v2537
    %3548 = vmatprep.mubr.bf16.mxu0 %v738
    %3549 = vmatmul.mubr.bf16.gmra.mrb[0].mxu0 %v737
    %v3550 = vpop.f32.mrb[0].mxu0
    %v3551 = vadd.f32 %v3510, %v3550
    %v3552 = vpop.f32.mrb[0].mxu0
    %v3553 = vadd.f32 %v3512, %v3552
    %v3554 = vpop.f32.mrb[0].mxu0
    %v3555 = vpop.f32.mrb[0].mxu0
    %3556 = vdwg.mxu0
    %3557 = vmatprep.subr.bf16.mxu0 %v2546
    %3558 = vmatpush1.bf16.msra.mxu0 %v2545
    %3559 = vmatprep.subr.bf16.mxu0 %v2554
    %3560 = vmatpush1.bf16.msra.mxu0 %v2553
    %3561 = vmatprep.subr.bf16.mxu0 %v2562
    %3562 = vmatpush1.bf16.msra.mxu0 %v2561
    %3563 = vmatprep.subr.bf16.mxu0 %v2570
    %3564 = vmatpush1.bf16.msra.mxu0 %v2569
    %3565 = vmatprep.subr.bf16.mxu0 %v2578
    %3566 = vmatpush1.bf16.msra.mxu0 %v2577
    %3567 = vmatprep.subr.bf16.mxu0 %v2586
    %3568 = vmatpush1.bf16.msra.mxu0 %v2585
    %3569 = vmatprep.subr.bf16.mxu0 %v2594
    %3570 = vmatpush1.bf16.msra.mxu0 %v2593
    %3571 = vmatprep.subr.bf16.mxu0 %v2602
    %3572 = vmatpush1.bf16.msra.mxu0 %v2601
    %3573 = vmatprep.subr.bf16.mxu0 %v2610
    %3574 = vmatpush1.bf16.msra.mxu0 %v2609
    %3575 = vmatprep.subr.bf16.mxu0 %v2618
    %3576 = vmatpush1.bf16.msra.mxu0 %v2617
    %3577 = vmatprep.subr.bf16.mxu0 %v2626
    %3578 = vmatpush1.bf16.msra.mxu0 %v2625
    %3579 = vmatprep.subr.bf16.mxu0 %v2634
    %3580 = vmatpush1.bf16.msra.mxu0 %v2633
    %3581 = vmatprep.subr.bf16.mxu0 %v2642
    %3582 = vmatpush1.bf16.msra.mxu0 %v2641
    %3583 = vmatprep.subr.bf16.mxu0 %v2650
    %3584 = vmatpush1.bf16.msra.mxu0 %v2649
    %3585 = vmatprep.subr.bf16.mxu0 %v2658
    %3586 = vmatpush1.bf16.msra.mxu0 %v2657
    %3587 = vmatprep.subr.bf16.mxu0 %v2666
    %3588 = vmatpush1.bf16.msra.mxu0 %v2665
    %3589 = vmatprep.mubr.bf16.mxu0 %v740
    %3590 = vmatmul.mubr.bf16.gmra.mrb[0].mxu0 %v739
    %v3591 = vpop.f32.mrb[0].mxu0
    %v3592 = vadd.f32 %v3551, %v3591
    %v3593 = vpop.f32.mrb[0].mxu0
    %v3594 = vadd.f32 %v3553, %v3593
    %v3595 = vpop.f32.mrb[0].mxu0
    %v3596 = vpop.f32.mrb[0].mxu0
    %3597 = vdwg.mxu0
    %3598 = vmatprep.subr.bf16.mxu0 %v2674
    %3599 = vmatpush1.bf16.msra.mxu0 %v2673
    %3600 = vmatprep.subr.bf16.mxu0 %v2682
    %3601 = vmatpush1.bf16.msra.mxu0 %v2681
    %3602 = vmatprep.subr.bf16.mxu0 %v2690
    %3603 = vmatpush1.bf16.msra.mxu0 %v2689
    %3604 = vmatprep.subr.bf16.mxu0 %v2698
    %3605 = vmatpush1.bf16.msra.mxu0 %v2697
    %3606 = vmatprep.subr.bf16.mxu0 %v2706
    %3607 = vmatpush1.bf16.msra.mxu0 %v2705
    %3608 = vmatprep.subr.bf16.mxu0 %v2714
    %3609 = vmatpush1.bf16.msra.mxu0 %v2713
    %3610 = vmatprep.subr.bf16.mxu0 %v2722
    %3611 = vmatpush1.bf16.msra.mxu0 %v2721
    %3612 = vmatprep.subr.bf16.mxu0 %v2730
    %3613 = vmatpush1.bf16.msra.mxu0 %v2729
    %3614 = vmatprep.subr.bf16.mxu0 %v2738
    %3615 = vmatpush1.bf16.msra.mxu0 %v2737
    %3616 = vmatprep.subr.bf16.mxu0 %v2746
    %3617 = vmatpush1.bf16.msra.mxu0 %v2745
    %3618 = vmatprep.subr.bf16.mxu0 %v2754
    %3619 = vmatpush1.bf16.msra.mxu0 %v2753
    %3620 = vmatprep.subr.bf16.mxu0 %v2762
    %3621 = vmatpush1.bf16.msra.mxu0 %v2761
    %3622 = vmatprep.subr.bf16.mxu0 %v2770
    %3623 = vmatpush1.bf16.msra.mxu0 %v2769
    %3624 = vmatprep.subr.bf16.mxu0 %v2778
    %3625 = vmatpush1.bf16.msra.mxu0 %v2777
    %3626 = vmatprep.subr.bf16.mxu0 %v2786
    %3627 = vmatpush1.bf16.msra.mxu0 %v2785
    %3628 = vmatprep.subr.bf16.mxu0 %v2794
    %3629 = vmatpush1.bf16.msra.mxu0 %v2793
    %3630 = vmatprep.mubr.bf16.mxu0 %v742
    %3631 = vmatmul.mubr.bf16.gmra.mrb[0].mxu0 %v741
    %v3632 = vpop.f32.mrb[0].mxu0
    %v3633 = vadd.f32 %v3592, %v3632
    %v3634 = vpop.f32.mrb[0].mxu0
    %v3635 = vadd.f32 %v3594, %v3634
    %v3636 = vpop.f32.mrb[0].mxu0
    %v3637 = vpop.f32.mrb[0].mxu0
    %3638 = vdwg.mxu0
    %3639 = vmatprep.subr.bf16.mxu0 %v2292
    %3640 = vmatpush1.bf16.msra.mxu0 %v2291
    %3641 = vmatprep.subr.bf16.mxu0 %v2300
    %3642 = vmatpush1.bf16.msra.mxu0 %v2299
    %3643 = vmatprep.subr.bf16.mxu0 %v2308
    %3644 = vmatpush1.bf16.msra.mxu0 %v2307
    %3645 = vmatprep.subr.bf16.mxu0 %v2316
    %3646 = vmatpush1.bf16.msra.mxu0 %v2315
    %3647 = vmatprep.subr.bf16.mxu0 %v2324
    %3648 = vmatpush1.bf16.msra.mxu0 %v2323
    %3649 = vmatprep.subr.bf16.mxu0 %v2332
    %3650 = vmatpush1.bf16.msra.mxu0 %v2331
    %3651 = vmatprep.subr.bf16.mxu0 %v2340
    %3652 = vmatpush1.bf16.msra.mxu0 %v2339
    %3653 = vmatprep.subr.bf16.mxu0 %v2348
    %3654 = vmatpush1.bf16.msra.mxu0 %v2347
    %3655 = vmatprep.subr.bf16.mxu0 %v2356
    %3656 = vmatpush1.bf16.msra.mxu0 %v2355
    %3657 = vmatprep.subr.bf16.mxu0 %v2364
    %3658 = vmatpush1.bf16.msra.mxu0 %v2363
    %3659 = vmatprep.subr.bf16.mxu0 %v2372
    %3660 = vmatpush1.bf16.msra.mxu0 %v2371
    %3661 = vmatprep.subr.bf16.mxu0 %v2380
    %3662 = vmatpush1.bf16.msra.mxu0 %v2379
    %3663 = vmatprep.subr.bf16.mxu0 %v2388
    %3664 = vmatpush1.bf16.msra.mxu0 %v2387
    %3665 = vmatprep.subr.bf16.mxu0 %v2396
    %3666 = vmatpush1.bf16.msra.mxu0 %v2395
    %3667 = vmatprep.subr.bf16.mxu0 %v2404
    %3668 = vmatpush1.bf16.msra.mxu0 %v2403
    %3669 = vmatprep.subr.bf16.mxu0 %v2412
    %3670 = vmatpush1.bf16.msra.mxu0 %v2411
    %3671 = vmatprep.mubr.bf16.mxu0 %v736
    %3672 = vmatmul.mubr.bf16.gmra.mrb[0].mxu0 %v735
    %v3673 = vpop.f32.mrb[0].mxu0
    %v3674 = vadd.f32 %v702, %v3673
    %v3675 = vpop.f32.mrb[0].mxu0
    %v3676 = vadd.f32 %v706, %v3675
    %v3677 = vpop.f32.mrb[0].mxu0
    %v3678 = vpop.f32.mrb[0].mxu0
    %3679 = vdwg.mxu0
    %3680 = vmatprep.subr.bf16.mxu0 %v2420
    %3681 = vmatpush1.bf16.msra.mxu0 %v2419
    %3682 = vmatprep.subr.bf16.mxu0 %v2428
    %3683 = vmatpush1.bf16.msra.mxu0 %v2427
    %3684 = vmatprep.subr.bf16.mxu0 %v2436
    %3685 = vmatpush1.bf16.msra.mxu0 %v2435
    %3686 = vmatprep.subr.bf16.mxu0 %v2444
    %3687 = vmatpush1.bf16.msra.mxu0 %v2443
    %3688 = vmatprep.subr.bf16.mxu0 %v2452
    %3689 = vmatpush1.bf16.msra.mxu0 %v2451
    %3690 = vmatprep.subr.bf16.mxu0 %v2460
    %3691 = vmatpush1.bf16.msra.mxu0 %v2459
    %3692 = vmatprep.subr.bf16.mxu0 %v2468
    %3693 = vmatpush1.bf16.msra.mxu0 %v2467
    %3694 = vmatprep.subr.bf16.mxu0 %v2476
    %3695 = vmatpush1.bf16.msra.mxu0 %v2475
    %3696 = vmatprep.subr.bf16.mxu0 %v2484
    %3697 = vmatpush1.bf16.msra.mxu0 %v2483
    %3698 = vmatprep.subr.bf16.mxu0 %v2492
    %3699 = vmatpush1.bf16.msra.mxu0 %v2491
    %3700 = vmatprep.subr.bf16.mxu0 %v2500
    %3701 = vmatpush1.bf16.msra.mxu0 %v2499
    %3702 = vmatprep.subr.bf16.mxu0 %v2508
    %3703 = vmatpush1.bf16.msra.mxu0 %v2507
    %3704 = vmatprep.subr.bf16.mxu0 %v2516
    %3705 = vmatpush1.bf16.msra.mxu0 %v2515
    %3706 = vmatprep.subr.bf16.mxu0 %v2524
    %3707 = vmatpush1.bf16.msra.mxu0 %v2523
    %3708 = vmatprep.subr.bf16.mxu0 %v2532
    %3709 = vmatpush1.bf16.msra.mxu0 %v2531
    %3710 = vmatprep.subr.bf16.mxu0 %v2540
    %3711 = vmatpush1.bf16.msra.mxu0 %v2539
    %3712 = vmatprep.mubr.bf16.mxu0 %v738
    %3713 = vmatmul.mubr.bf16.gmra.mrb[0].mxu0 %v737
    %v3714 = vpop.f32.mrb[0].mxu0
    %v3715 = vadd.f32 %v3674, %v3714
    %v3716 = vpop.f32.mrb[0].mxu0
    %v3717 = vadd.f32 %v3676, %v3716
    %v3718 = vpop.f32.mrb[0].mxu0
    %v3719 = vpop.f32.mrb[0].mxu0
    %3720 = vdwg.mxu0
    %3721 = vmatprep.subr.bf16.mxu0 %v2548
    %3722 = vmatpush1.bf16.msra.mxu0 %v2547
    %3723 = vmatprep.subr.bf16.mxu0 %v2556
    %3724 = vmatpush1.bf16.msra.mxu0 %v2555
    %3725 = vmatprep.subr.bf16.mxu0 %v2564
    %3726 = vmatpush1.bf16.msra.mxu0 %v2563
    %3727 = vmatprep.subr.bf16.mxu0 %v2572
    %3728 = vmatpush1.bf16.msra.mxu0 %v2571
    %3729 = vmatprep.subr.bf16.mxu0 %v2580
    %3730 = vmatpush1.bf16.msra.mxu0 %v2579
    %3731 = vmatprep.subr.bf16.mxu0 %v2588
    %3732 = vmatpush1.bf16.msra.mxu0 %v2587
    %3733 = vmatprep.subr.bf16.mxu0 %v2596
    %3734 = vmatpush1.bf16.msra.mxu0 %v2595
    %3735 = vmatprep.subr.bf16.mxu0 %v2604
    %3736 = vmatpush1.bf16.msra.mxu0 %v2603
    %3737 = vmatprep.subr.bf16.mxu0 %v2612
    %3738 = vmatpush1.bf16.msra.mxu0 %v2611
    %3739 = vmatprep.subr.bf16.mxu0 %v2620
    %3740 = vmatpush1.bf16.msra.mxu0 %v2619
    %3741 = vmatprep.subr.bf16.mxu0 %v2628
    %3742 = vmatpush1.bf16.msra.mxu0 %v2627
    %3743 = vmatprep.subr.bf16.mxu0 %v2636
    %3744 = vmatpush1.bf16.msra.mxu0 %v2635
    %3745 = vmatprep.subr.bf16.mxu0 %v2644
    %3746 = vmatpush1.bf16.msra.mxu0 %v2643
    %3747 = vmatprep.subr.bf16.mxu0 %v2652
    %3748 = vmatpush1.bf16.msra.mxu0 %v2651
    %3749 = vmatprep.subr.bf16.mxu0 %v2660
    %3750 = vmatpush1.bf16.msra.mxu0 %v2659
    %3751 = vmatprep.subr.bf16.mxu0 %v2668
    %3752 = vmatpush1.bf16.msra.mxu0 %v2667
    %3753 = vmatprep.mubr.bf16.mxu0 %v740
    %3754 = vmatmul.mubr.bf16.gmra.mrb[0].mxu0 %v739
    %v3755 = vpop.f32.mrb[0].mxu0
    %v3756 = vadd.f32 %v3715, %v3755
    %v3757 = vpop.f32.mrb[0].mxu0
    %v3758 = vadd.f32 %v3717, %v3757
    %v3759 = vpop.f32.mrb[0].mxu0
    %v3760 = vpop.f32.mrb[0].mxu0
    %3761 = vdwg.mxu0
    %3762 = vmatprep.subr.bf16.mxu0 %v2676
    %3763 = vmatpush1.bf16.msra.mxu0 %v2675
    %3764 = vmatprep.subr.bf16.mxu0 %v2684
    %3765 = vmatpush1.bf16.msra.mxu0 %v2683
    %3766 = vmatprep.subr.bf16.mxu0 %v2692
    %3767 = vmatpush1.bf16.msra.mxu0 %v2691
    %3768 = vmatprep.subr.bf16.mxu0 %v2700
    %3769 = vmatpush1.bf16.msra.mxu0 %v2699
    %3770 = vmatprep.subr.bf16.mxu0 %v2708
    %3771 = vmatpush1.bf16.msra.mxu0 %v2707
    %3772 = vmatprep.subr.bf16.mxu0 %v2716
    %3773 = vmatpush1.bf16.msra.mxu0 %v2715
    %3774 = vmatprep.subr.bf16.mxu0 %v2724
    %3775 = vmatpush1.bf16.msra.mxu0 %v2723
    %3776 = vmatprep.subr.bf16.mxu0 %v2732
    %3777 = vmatpush1.bf16.msra.mxu0 %v2731
    %3778 = vmatprep.subr.bf16.mxu0 %v2740
    %3779 = vmatpush1.bf16.msra.mxu0 %v2739
    %3780 = vmatprep.subr.bf16.mxu0 %v2748
    %3781 = vmatpush1.bf16.msra.mxu0 %v2747
    %3782 = vmatprep.subr.bf16.mxu0 %v2756
    %3783 = vmatpush1.bf16.msra.mxu0 %v2755
    %3784 = vmatprep.subr.bf16.mxu0 %v2764
    %3785 = vmatpush1.bf16.msra.mxu0 %v2763
    %3786 = vmatprep.subr.bf16.mxu0 %v2772
    %3787 = vmatpush1.bf16.msra.mxu0 %v2771
    %3788 = vmatprep.subr.bf16.mxu0 %v2780
    %3789 = vmatpush1.bf16.msra.mxu0 %v2779
    %3790 = vmatprep.subr.bf16.mxu0 %v2788
    %3791 = vmatpush1.bf16.msra.mxu0 %v2787
    %3792 = vmatprep.subr.bf16.mxu0 %v2796
    %3793 = vmatpush1.bf16.msra.mxu0 %v2795
    %3794 = vmatprep.mubr.bf16.mxu0 %v742
    %3795 = vmatmul.mubr.bf16.gmra.mrb[0].mxu0 %v741
    %v3796 = vpop.f32.mrb[0].mxu0
    %v3797 = vadd.f32 %v3756, %v3796
    %v3798 = vpop.f32.mrb[0].mxu0
    %v3799 = vadd.f32 %v3758, %v3798
    %v3800 = vpop.f32.mrb[0].mxu0
    %v3801 = vpop.f32.mrb[0].mxu0
    %3802 = vdwg.mxu0
    %3803 = vmatprep.subr.bf16.mxu0 %v2294
    %3804 = vmatpush1.bf16.msra.mxu0 %v2293
    %3805 = vmatprep.subr.bf16.mxu0 %v2302
    %3806 = vmatpush1.bf16.msra.mxu0 %v2301
    %3807 = vmatprep.subr.bf16.mxu0 %v2310
    %3808 = vmatpush1.bf16.msra.mxu0 %v2309
    %3809 = vmatprep.subr.bf16.mxu0 %v2318
    %3810 = vmatpush1.bf16.msra.mxu0 %v2317
    %3811 = vmatprep.subr.bf16.mxu0 %v2326
    %3812 = vmatpush1.bf16.msra.mxu0 %v2325
    %3813 = vmatprep.subr.bf16.mxu0 %v2334
    %3814 = vmatpush1.bf16.msra.mxu0 %v2333
    %3815 = vmatprep.subr.bf16.mxu0 %v2342
    %3816 = vmatpush1.bf16.msra.mxu0 %v2341
    %3817 = vmatprep.subr.bf16.mxu0 %v2350
    %3818 = vmatpush1.bf16.msra.mxu0 %v2349
    %3819 = vmatprep.subr.bf16.mxu0 %v2358
    %3820 = vmatpush1.bf16.msra.mxu0 %v2357
    %3821 = vmatprep.subr.bf16.mxu0 %v2366
    %3822 = vmatpush1.bf16.msra.mxu0 %v2365
    %3823 = vmatprep.subr.bf16.mxu0 %v2374
    %3824 = vmatpush1.bf16.msra.mxu0 %v2373
    %3825 = vmatprep.subr.bf16.mxu0 %v2382
    %3826 = vmatpush1.bf16.msra.mxu0 %v2381
    %3827 = vmatprep.subr.bf16.mxu0 %v2390
    %3828 = vmatpush1.bf16.msra.mxu0 %v2389
    %3829 = vmatprep.subr.bf16.mxu0 %v2398
    %3830 = vmatpush1.bf16.msra.mxu0 %v2397
    %3831 = vmatprep.subr.bf16.mxu0 %v2406
    %3832 = vmatpush1.bf16.msra.mxu0 %v2405
    %3833 = vmatprep.subr.bf16.mxu0 %v2414
    %3834 = vmatpush1.bf16.msra.mxu0 %v2413
    %3835 = vmatprep.mubr.bf16.mxu0 %v736
    %3836 = vmatmul.mubr.bf16.gmra.mrb[0].mxu0 %v735
    %v3837 = vpop.f32.mrb[0].mxu0
    %v3838 = vadd.f32 %v710, %v3837
    %v3839 = vpop.f32.mrb[0].mxu0
    %v3840 = vadd.f32 %v714, %v3839
    %v3841 = vpop.f32.mrb[0].mxu0
    %v3842 = vpop.f32.mrb[0].mxu0
    %3843 = vdwg.mxu0
    %3844 = vmatprep.subr.bf16.mxu0 %v2422
    %3845 = vmatpush1.bf16.msra.mxu0 %v2421
    %3846 = vmatprep.subr.bf16.mxu0 %v2430
    %3847 = vmatpush1.bf16.msra.mxu0 %v2429
    %3848 = vmatprep.subr.bf16.mxu0 %v2438
    %3849 = vmatpush1.bf16.msra.mxu0 %v2437
    %3850 = vmatprep.subr.bf16.mxu0 %v2446
    %3851 = vmatpush1.bf16.msra.mxu0 %v2445
    %3852 = vmatprep.subr.bf16.mxu0 %v2454
    %3853 = vmatpush1.bf16.msra.mxu0 %v2453
    %3854 = vmatprep.subr.bf16.mxu0 %v2462
    %3855 = vmatpush1.bf16.msra.mxu0 %v2461
    %3856 = vmatprep.subr.bf16.mxu0 %v2470
    %3857 = vmatpush1.bf16.msra.mxu0 %v2469
    %3858 = vmatprep.subr.bf16.mxu0 %v2478
    %3859 = vmatpush1.bf16.msra.mxu0 %v2477
    %3860 = vmatprep.subr.bf16.mxu0 %v2486
    %3861 = vmatpush1.bf16.msra.mxu0 %v2485
    %3862 = vmatprep.subr.bf16.mxu0 %v2494
    %3863 = vmatpush1.bf16.msra.mxu0 %v2493
    %3864 = vmatprep.subr.bf16.mxu0 %v2502
    %3865 = vmatpush1.bf16.msra.mxu0 %v2501
    %3866 = vmatprep.subr.bf16.mxu0 %v2510
    %3867 = vmatpush1.bf16.msra.mxu0 %v2509
    %3868 = vmatprep.subr.bf16.mxu0 %v2518
    %3869 = vmatpush1.bf16.msra.mxu0 %v2517
    %3870 = vmatprep.subr.bf16.mxu0 %v2526
    %3871 = vmatpush1.bf16.msra.mxu0 %v2525
    %3872 = vmatprep.subr.bf16.mxu0 %v2534
    %3873 = vmatpush1.bf16.msra.mxu0 %v2533
    %3874 = vmatprep.subr.bf16.mxu0 %v2542
    %3875 = vmatpush1.bf16.msra.mxu0 %v2541
    %3876 = vmatprep.mubr.bf16.mxu0 %v738
    %3877 = vmatmul.mubr.bf16.gmra.mrb[0].mxu0 %v737
    %v3878 = vpop.f32.mrb[0].mxu0
    %v3879 = vadd.f32 %v3838, %v3878
    %v3880 = vpop.f32.mrb[0].mxu0
    %v3881 = vadd.f32 %v3840, %v3880
    %v3882 = vpop.f32.mrb[0].mxu0
    %v3883 = vpop.f32.mrb[0].mxu0
    %3884 = vdwg.mxu0
    %3885 = vmatprep.subr.bf16.mxu0 %v2550
    %3886 = vmatpush1.bf16.msra.mxu0 %v2549
    %3887 = vmatprep.subr.bf16.mxu0 %v2558
    %3888 = vmatpush1.bf16.msra.mxu0 %v2557
    %3889 = vmatprep.subr.bf16.mxu0 %v2566
    %3890 = vmatpush1.bf16.msra.mxu0 %v2565
    %3891 = vmatprep.subr.bf16.mxu0 %v2574
    %3892 = vmatpush1.bf16.msra.mxu0 %v2573
    %3893 = vmatprep.subr.bf16.mxu0 %v2582
    %3894 = vmatpush1.bf16.msra.mxu0 %v2581
    %3895 = vmatprep.subr.bf16.mxu0 %v2590
    %3896 = vmatpush1.bf16.msra.mxu0 %v2589
    %3897 = vmatprep.subr.bf16.mxu0 %v2598
    %3898 = vmatpush1.bf16.msra.mxu0 %v2597
    %3899 = vmatprep.subr.bf16.mxu0 %v2606
    %3900 = vmatpush1.bf16.msra.mxu0 %v2605
    %3901 = vmatprep.subr.bf16.mxu0 %v2614
    %3902 = vmatpush1.bf16.msra.mxu0 %v2613
    %3903 = vmatprep.subr.bf16.mxu0 %v2622
    %3904 = vmatpush1.bf16.msra.mxu0 %v2621
    %3905 = vmatprep.subr.bf16.mxu0 %v2630
    %3906 = vmatpush1.bf16.msra.mxu0 %v2629
    %3907 = vmatprep.subr.bf16.mxu0 %v2638
    %3908 = vmatpush1.bf16.msra.mxu0 %v2637
    %3909 = vmatprep.subr.bf16.mxu0 %v2646
    %3910 = vmatpush1.bf16.msra.mxu0 %v2645
    %3911 = vmatprep.subr.bf16.mxu0 %v2654
    %3912 = vmatpush1.bf16.msra.mxu0 %v2653
    %3913 = vmatprep.subr.bf16.mxu0 %v2662
    %3914 = vmatpush1.bf16.msra.mxu0 %v2661
    %3915 = vmatprep.subr.bf16.mxu0 %v2670
    %3916 = vmatpush1.bf16.msra.mxu0 %v2669
    %3917 = vmatprep.mubr.bf16.mxu0 %v740
    %3918 = vmatmul.mubr.bf16.gmra.mrb[0].mxu0 %v739
    %v3919 = vpop.f32.mrb[0].mxu0
    %v3920 = vadd.f32 %v3879, %v3919
    %v3921 = vpop.f32.mrb[0].mxu0
    %v3922 = vadd.f32 %v3881, %v3921
    %v3923 = vpop.f32.mrb[0].mxu0
    %v3924 = vpop.f32.mrb[0].mxu0
    %3925 = vdwg.mxu0
    %3926 = vmatprep.subr.bf16.mxu0 %v2678
    %3927 = vmatpush1.bf16.msra.mxu0 %v2677
    %3928 = vmatprep.subr.bf16.mxu0 %v2686
    %3929 = vmatpush1.bf16.msra.mxu0 %v2685
    %3930 = vmatprep.subr.bf16.mxu0 %v2694
    %3931 = vmatpush1.bf16.msra.mxu0 %v2693
    %3932 = vmatprep.subr.bf16.mxu0 %v2702
    %3933 = vmatpush1.bf16.msra.mxu0 %v2701
    %3934 = vmatprep.subr.bf16.mxu0 %v2710
    %3935 = vmatpush1.bf16.msra.mxu0 %v2709
    %3936 = vmatprep.subr.bf16.mxu0 %v2718
    %3937 = vmatpush1.bf16.msra.mxu0 %v2717
    %3938 = vmatprep.subr.bf16.mxu0 %v2726
    %3939 = vmatpush1.bf16.msra.mxu0 %v2725
    %3940 = vmatprep.subr.bf16.mxu0 %v2734
    %3941 = vmatpush1.bf16.msra.mxu0 %v2733
    %3942 = vmatprep.subr.bf16.mxu0 %v2742
    %3943 = vmatpush1.bf16.msra.mxu0 %v2741
    %3944 = vmatprep.subr.bf16.mxu0 %v2750
    %3945 = vmatpush1.bf16.msra.mxu0 %v2749
    %3946 = vmatprep.subr.bf16.mxu0 %v2758
    %3947 = vmatpush1.bf16.msra.mxu0 %v2757
    %3948 = vmatprep.subr.bf16.mxu0 %v2766
    %3949 = vmatpush1.bf16.msra.mxu0 %v2765
    %3950 = vmatprep.subr.bf16.mxu0 %v2774
    %3951 = vmatpush1.bf16.msra.mxu0 %v2773
    %3952 = vmatprep.subr.bf16.mxu0 %v2782
    %3953 = vmatpush1.bf16.msra.mxu0 %v2781
    %3954 = vmatprep.subr.bf16.mxu0 %v2790
    %3955 = vmatpush1.bf16.msra.mxu0 %v2789
    %3956 = vmatprep.subr.bf16.mxu0 %v2798
    %3957 = vmatpush1.bf16.msra.mxu0 %v2797
    %3958 = vmatprep.mubr.bf16.mxu0 %v742
    %3959 = vmatmul.mubr.bf16.gmra.mrb[0].mxu0 %v741
    %v3960 = vpop.f32.mrb[0].mxu0
    %v3961 = vadd.f32 %v3920, %v3960
    %v3962 = vpop.f32.mrb[0].mxu0
    %v3963 = vadd.f32 %v3922, %v3962
    %v3964 = vpop.f32.mrb[0].mxu0
    %v3965 = vpop.f32.mrb[0].mxu0
    %3966 = vdwg.mxu0
    %vm3967 = vcmp.gt.f32.partialorder %v3469, 0.0
    %vm3968 = vcmp.gt.f32.partialorder %v3471, 0.0
    %vm3969 = vcmp.gt.f32.partialorder %v3633, 0.0
    %vm3970 = vcmp.gt.f32.partialorder %v3635, 0.0
    %vm3971 = vcmp.gt.f32.partialorder %v3797, 0.0
    %vm3972 = vcmp.gt.f32.partialorder %v3799, 0.0
    %vm3973 = vcmp.gt.f32.partialorder %v3961, 0.0
    %vm3974 = vcmp.gt.f32.partialorder %v3963, 0.0
    %v3975 = vmul.f32 %v3469, 0.2
    %v3976 = vmul.f32 %v3471, 0.2
    %v3977 = vmul.f32 %v3633, 0.2
    %v3978 = vmul.f32 %v3635, 0.2
    %v3979 = vmul.f32 %v3797, 0.2
    %v3980 = vmul.f32 %v3799, 0.2
    %v3981 = vmul.f32 %v3961, 0.2
    %v3982 = vmul.f32 %v3963, 0.2
    %v3983 = vsel %vm3967, %v3469, %v3975
    %v3984 = vsel %vm3968, %v3471, %v3976
    %v3985 = vsel %vm3969, %v3633, %v3977
    %v3986 = vsel %vm3970, %v3635, %v3978
    %v3987 = vsel %vm3971, %v3797, %v3979
    %v3988 = vsel %vm3972, %v3799, %v3980
    %v3989 = vsel %vm3973, %v3961, %v3981
    %v3990 = vsel %vm3974, %v3963, %v3982
    %v3991 = vpack.c.bf16 %v3983, %v3983
    %v3992 = vpack.c.bf16 %v3984, %v3984
    %v3993 = vpack.c.bf16 %v3985, %v3985
    %v3994 = vpack.c.bf16 %v3986, %v3986
    %v3995 = vpack.c.bf16 %v3987, %v3987
    %v3996 = vpack.c.bf16 %v3988, %v3988
    %v3997 = vpack.c.bf16 %v3989, %v3989
    %v3998 = vpack.c.bf16 %v3990, %v3990
    %v3999 = vld [vmem:[#allocation6] sm:$0xff]
    %v4000 = vld [vmem:[#allocation6 + $0x8] sm:$0xff]
    %v4001 = vld [vmem:[#allocation6 + $0x10] sm:$0xff]
    %v4002 = vld [vmem:[#allocation6 + $0x18] sm:$0xff]
    %v4003 = vld [vmem:[#allocation6 + $0x20] sm:$0xff]
    %v4004 = vld [vmem:[#allocation6 + $0x28] sm:$0xff]
    %v4005 = vld [vmem:[#allocation6 + $0x30] sm:$0xff]
    %v4006 = vld [vmem:[#allocation6 + $0x38] sm:$0xff]
    %v4007 = vld [vmem:[#allocation6 + $0x40] sm:$0xff]
    %v4008 = vld [vmem:[#allocation6 + $0x48] sm:$0xff]
    %v4009 = vld [vmem:[#allocation6 + $0x50] sm:$0xff]
    %v4010 = vld [vmem:[#allocation6 + $0x58] sm:$0xff]
    %v4011 = vld [vmem:[#allocation6 + $0x60] sm:$0xff]
    %v4012 = vld [vmem:[#allocation6 + $0x68] sm:$0xff]
    %v4013 = vld [vmem:[#allocation6 + $0x70] sm:$0xff]
    %v4014 = vld [vmem:[#allocation6 + $0x78] sm:$0xff]
    %v4015 = vld [vmem:[#allocation6 + $0x80] sm:$0xff]
    %v4016 = vld [vmem:[#allocation6 + $0x88] sm:$0xff]
    %v4017 = vld [vmem:[#allocation6 + $0x90] sm:$0xff]
    %v4018 = vld [vmem:[#allocation6 + $0x98] sm:$0xff]
    %v4019 = vld [vmem:[#allocation6 + $0xa0] sm:$0xff]
    %v4020 = vld [vmem:[#allocation6 + $0xa8] sm:$0xff]
    %v4021 = vld [vmem:[#allocation6 + $0xb0] sm:$0xff]
    %v4022 = vld [vmem:[#allocation6 + $0xb8] sm:$0xff]
    %v4023 = vld [vmem:[#allocation6 + $0xc0] sm:$0xff]
    %v4024 = vld [vmem:[#allocation6 + $0xc8] sm:$0xff]
    %v4025 = vld [vmem:[#allocation6 + $0xd0] sm:$0xff]
    %v4026 = vld [vmem:[#allocation6 + $0xd8] sm:$0xff]
    %v4027 = vld [vmem:[#allocation6 + $0xe0] sm:$0xff]
    %v4028 = vld [vmem:[#allocation6 + $0xe8] sm:$0xff]
    %v4029 = vld [vmem:[#allocation6 + $0xf0] sm:$0xff]
    %v4030 = vld [vmem:[#allocation6 + $0xf8] sm:$0xff]
    %v4031 = vld [vmem:[#allocation6 + $0x100] sm:$0xff]
    %v4032 = vld [vmem:[#allocation6 + $0x108] sm:$0xff]
    %v4033 = vld [vmem:[#allocation6 + $0x110] sm:$0xff]
    %v4034 = vld [vmem:[#allocation6 + $0x118] sm:$0xff]
    %v4035 = vld [vmem:[#allocation6 + $0x120] sm:$0xff]
    %v4036 = vld [vmem:[#allocation6 + $0x128] sm:$0xff]
    %v4037 = vld [vmem:[#allocation6 + $0x130] sm:$0xff]
    %v4038 = vld [vmem:[#allocation6 + $0x138] sm:$0xff]
    %v4039 = vld [vmem:[#allocation6 + $0x140] sm:$0xff]
    %v4040 = vld [vmem:[#allocation6 + $0x148] sm:$0xff]
    %v4041 = vld [vmem:[#allocation6 + $0x150] sm:$0xff]
    %v4042 = vld [vmem:[#allocation6 + $0x158] sm:$0xff]
    %v4043 = vld [vmem:[#allocation6 + $0x160] sm:$0xff]
    %v4044 = vld [vmem:[#allocation6 + $0x168] sm:$0xff]
    %v4045 = vld [vmem:[#allocation6 + $0x170] sm:$0xff]
    %v4046 = vld [vmem:[#allocation6 + $0x178] sm:$0xff]
    %v4047 = vld [vmem:[#allocation6 + $0x180] sm:$0xff]
    %v4048 = vld [vmem:[#allocation6 + $0x188] sm:$0xff]
    %v4049 = vld [vmem:[#allocation6 + $0x190] sm:$0xff]
    %v4050 = vld [vmem:[#allocation6 + $0x198] sm:$0xff]
    %v4051 = vld [vmem:[#allocation6 + $0x1a0] sm:$0xff]
    %v4052 = vld [vmem:[#allocation6 + $0x1a8] sm:$0xff]
    %v4053 = vld [vmem:[#allocation6 + $0x1b0] sm:$0xff]
    %v4054 = vld [vmem:[#allocation6 + $0x1b8] sm:$0xff]
    %v4055 = vld [vmem:[#allocation6 + $0x1c0] sm:$0xff]
    %v4056 = vld [vmem:[#allocation6 + $0x1c8] sm:$0xff]
    %v4057 = vld [vmem:[#allocation6 + $0x1d0] sm:$0xff]
    %v4058 = vld [vmem:[#allocation6 + $0x1d8] sm:$0xff]
    %v4059 = vld [vmem:[#allocation6 + $0x1e0] sm:$0xff]
    %v4060 = vld [vmem:[#allocation6 + $0x1e8] sm:$0xff]
    %v4061 = vld [vmem:[#allocation6 + $0x1f0] sm:$0xff]
    %v4062 = vld [vmem:[#allocation6 + $0x1f8] sm:$0xff]
    %v4063 = vld [vmem:[#allocation6 + $0x200] sm:$0xff]
    %v4064 = vld [vmem:[#allocation6 + $0x208] sm:$0xff]
    %v4065 = vld [vmem:[#allocation6 + $0x210] sm:$0xff]
    %v4066 = vld [vmem:[#allocation6 + $0x218] sm:$0xff]
    %v4067 = vld [vmem:[#allocation6 + $0x220] sm:$0xff]
    %v4068 = vld [vmem:[#allocation6 + $0x228] sm:$0xff]
    %v4069 = vld [vmem:[#allocation6 + $0x230] sm:$0xff]
    %v4070 = vld [vmem:[#allocation6 + $0x238] sm:$0xff]
    %v4071 = vld [vmem:[#allocation6 + $0x240] sm:$0xff]
    %v4072 = vld [vmem:[#allocation6 + $0x248] sm:$0xff]
    %v4073 = vld [vmem:[#allocation6 + $0x250] sm:$0xff]
    %v4074 = vld [vmem:[#allocation6 + $0x258] sm:$0xff]
    %v4075 = vld [vmem:[#allocation6 + $0x260] sm:$0xff]
    %v4076 = vld [vmem:[#allocation6 + $0x268] sm:$0xff]
    %v4077 = vld [vmem:[#allocation6 + $0x270] sm:$0xff]
    %v4078 = vld [vmem:[#allocation6 + $0x278] sm:$0xff]
    %v4079 = vld [vmem:[#allocation6 + $0x280] sm:$0xff]
    %v4080 = vld [vmem:[#allocation6 + $0x288] sm:$0xff]
    %v4081 = vld [vmem:[#allocation6 + $0x290] sm:$0xff]
    %v4082 = vld [vmem:[#allocation6 + $0x298] sm:$0xff]
    %v4083 = vld [vmem:[#allocation6 + $0x2a0] sm:$0xff]
    %v4084 = vld [vmem:[#allocation6 + $0x2a8] sm:$0xff]
    %v4085 = vld [vmem:[#allocation6 + $0x2b0] sm:$0xff]
    %v4086 = vld [vmem:[#allocation6 + $0x2b8] sm:$0xff]
    %v4087 = vld [vmem:[#allocation6 + $0x2c0] sm:$0xff]
    %v4088 = vld [vmem:[#allocation6 + $0x2c8] sm:$0xff]
    %v4089 = vld [vmem:[#allocation6 + $0x2d0] sm:$0xff]
    %v4090 = vld [vmem:[#allocation6 + $0x2d8] sm:$0xff]
    %v4091 = vld [vmem:[#allocation6 + $0x2e0] sm:$0xff]
    %v4092 = vld [vmem:[#allocation6 + $0x2e8] sm:$0xff]
    %v4093 = vld [vmem:[#allocation6 + $0x2f0] sm:$0xff]
    %v4094 = vld [vmem:[#allocation6 + $0x2f8] sm:$0xff]
    %v4095 = vld [vmem:[#allocation6 + $0x300] sm:$0xff]
    %v4096 = vld [vmem:[#allocation6 + $0x308] sm:$0xff]
    %v4097 = vld [vmem:[#allocation6 + $0x310] sm:$0xff]
    %v4098 = vld [vmem:[#allocation6 + $0x318] sm:$0xff]
    %v4099 = vld [vmem:[#allocation6 + $0x320] sm:$0xff]
    %v4100 = vld [vmem:[#allocation6 + $0x328] sm:$0xff]
    %v4101 = vld [vmem:[#allocation6 + $0x330] sm:$0xff]
    %v4102 = vld [vmem:[#allocation6 + $0x338] sm:$0xff]
    %v4103 = vld [vmem:[#allocation6 + $0x340] sm:$0xff]
    %v4104 = vld [vmem:[#allocation6 + $0x348] sm:$0xff]
    %v4105 = vld [vmem:[#allocation6 + $0x350] sm:$0xff]
    %v4106 = vld [vmem:[#allocation6 + $0x358] sm:$0xff]
    %v4107 = vld [vmem:[#allocation6 + $0x360] sm:$0xff]
    %v4108 = vld [vmem:[#allocation6 + $0x368] sm:$0xff]
    %v4109 = vld [vmem:[#allocation6 + $0x370] sm:$0xff]
    %v4110 = vld [vmem:[#allocation6 + $0x378] sm:$0xff]
    %v4111 = vld [vmem:[#allocation6 + $0x380] sm:$0xff]
    %v4112 = vld [vmem:[#allocation6 + $0x388] sm:$0xff]
    %v4113 = vld [vmem:[#allocation6 + $0x390] sm:$0xff]
    %v4114 = vld [vmem:[#allocation6 + $0x398] sm:$0xff]
    %v4115 = vld [vmem:[#allocation6 + $0x3a0] sm:$0xff]
    %v4116 = vld [vmem:[#allocation6 + $0x3a8] sm:$0xff]
    %v4117 = vld [vmem:[#allocation6 + $0x3b0] sm:$0xff]
    %v4118 = vld [vmem:[#allocation6 + $0x3b8] sm:$0xff]
    %v4119 = vld [vmem:[#allocation6 + $0x3c0] sm:$0xff]
    %v4120 = vld [vmem:[#allocation6 + $0x3c8] sm:$0xff]
    %v4121 = vld [vmem:[#allocation6 + $0x3d0] sm:$0xff]
    %v4122 = vld [vmem:[#allocation6 + $0x3d8] sm:$0xff]
    %v4123 = vld [vmem:[#allocation6 + $0x3e0] sm:$0xff]
    %v4124 = vld [vmem:[#allocation6 + $0x3e8] sm:$0xff]
    %v4125 = vld [vmem:[#allocation6 + $0x3f0] sm:$0xff]
    %v4126 = vld [vmem:[#allocation6 + $0x3f8] sm:$0xff]
    %v4127 = vld [vmem:[#allocation6 + $0x400] sm:$0xff]
    %v4128 = vld [vmem:[#allocation6 + $0x408] sm:$0xff]
    %v4129 = vld [vmem:[#allocation6 + $0x410] sm:$0xff]
    %v4130 = vld [vmem:[#allocation6 + $0x418] sm:$0xff]
    %v4131 = vld [vmem:[#allocation6 + $0x420] sm:$0xff]
    %v4132 = vld [vmem:[#allocation6 + $0x428] sm:$0xff]
    %v4133 = vld [vmem:[#allocation6 + $0x430] sm:$0xff]
    %v4134 = vld [vmem:[#allocation6 + $0x438] sm:$0xff]
    %v4135 = vld [vmem:[#allocation6 + $0x440] sm:$0xff]
    %v4136 = vld [vmem:[#allocation6 + $0x448] sm:$0xff]
    %v4137 = vld [vmem:[#allocation6 + $0x450] sm:$0xff]
    %v4138 = vld [vmem:[#allocation6 + $0x458] sm:$0xff]
    %v4139 = vld [vmem:[#allocation6 + $0x460] sm:$0xff]
    %v4140 = vld [vmem:[#allocation6 + $0x468] sm:$0xff]
    %v4141 = vld [vmem:[#allocation6 + $0x470] sm:$0xff]
    %v4142 = vld [vmem:[#allocation6 + $0x478] sm:$0xff]
    %v4143 = vld [vmem:[#allocation6 + $0x480] sm:$0xff]
    %v4144 = vld [vmem:[#allocation6 + $0x488] sm:$0xff]
    %v4145 = vld [vmem:[#allocation6 + $0x490] sm:$0xff]
    %v4146 = vld [vmem:[#allocation6 + $0x498] sm:$0xff]
    %v4147 = vld [vmem:[#allocation6 + $0x4a0] sm:$0xff]
    %v4148 = vld [vmem:[#allocation6 + $0x4a8] sm:$0xff]
    %v4149 = vld [vmem:[#allocation6 + $0x4b0] sm:$0xff]
    %v4150 = vld [vmem:[#allocation6 + $0x4b8] sm:$0xff]
    %v4151 = vld [vmem:[#allocation6 + $0x4c0] sm:$0xff]
    %v4152 = vld [vmem:[#allocation6 + $0x4c8] sm:$0xff]
    %v4153 = vld [vmem:[#allocation6 + $0x4d0] sm:$0xff]
    %v4154 = vld [vmem:[#allocation6 + $0x4d8] sm:$0xff]
    %v4155 = vld [vmem:[#allocation6 + $0x4e0] sm:$0xff]
    %v4156 = vld [vmem:[#allocation6 + $0x4e8] sm:$0xff]
    %v4157 = vld [vmem:[#allocation6 + $0x4f0] sm:$0xff]
    %v4158 = vld [vmem:[#allocation6 + $0x4f8] sm:$0xff]
    %v4159 = vld [vmem:[#allocation6 + $0x500] sm:$0xff]
    %v4160 = vld [vmem:[#allocation6 + $0x508] sm:$0xff]
    %v4161 = vld [vmem:[#allocation6 + $0x510] sm:$0xff]
    %v4162 = vld [vmem:[#allocation6 + $0x518] sm:$0xff]
    %v4163 = vld [vmem:[#allocation6 + $0x520] sm:$0xff]
    %v4164 = vld [vmem:[#allocation6 + $0x528] sm:$0xff]
    %v4165 = vld [vmem:[#allocation6 + $0x530] sm:$0xff]
    %v4166 = vld [vmem:[#allocation6 + $0x538] sm:$0xff]
    %v4167 = vld [vmem:[#allocation6 + $0x540] sm:$0xff]
    %v4168 = vld [vmem:[#allocation6 + $0x548] sm:$0xff]
    %v4169 = vld [vmem:[#allocation6 + $0x550] sm:$0xff]
    %v4170 = vld [vmem:[#allocation6 + $0x558] sm:$0xff]
    %v4171 = vld [vmem:[#allocation6 + $0x560] sm:$0xff]
    %v4172 = vld [vmem:[#allocation6 + $0x568] sm:$0xff]
    %v4173 = vld [vmem:[#allocation6 + $0x570] sm:$0xff]
    %v4174 = vld [vmem:[#allocation6 + $0x578] sm:$0xff]
    %v4175 = vld [vmem:[#allocation6 + $0x580] sm:$0xff]
    %v4176 = vld [vmem:[#allocation6 + $0x588] sm:$0xff]
    %v4177 = vld [vmem:[#allocation6 + $0x590] sm:$0xff]
    %v4178 = vld [vmem:[#allocation6 + $0x598] sm:$0xff]
    %v4179 = vld [vmem:[#allocation6 + $0x5a0] sm:$0xff]
    %v4180 = vld [vmem:[#allocation6 + $0x5a8] sm:$0xff]
    %v4181 = vld [vmem:[#allocation6 + $0x5b0] sm:$0xff]
    %v4182 = vld [vmem:[#allocation6 + $0x5b8] sm:$0xff]
    %v4183 = vld [vmem:[#allocation6 + $0x5c0] sm:$0xff]
    %v4184 = vld [vmem:[#allocation6 + $0x5c8] sm:$0xff]
    %v4185 = vld [vmem:[#allocation6 + $0x5d0] sm:$0xff]
    %v4186 = vld [vmem:[#allocation6 + $0x5d8] sm:$0xff]
    %v4187 = vld [vmem:[#allocation6 + $0x5e0] sm:$0xff]
    %v4188 = vld [vmem:[#allocation6 + $0x5e8] sm:$0xff]
    %v4189 = vld [vmem:[#allocation6 + $0x5f0] sm:$0xff]
    %v4190 = vld [vmem:[#allocation6 + $0x5f8] sm:$0xff]
    %v4191 = vld [vmem:[#allocation6 + $0x600] sm:$0xff]
    %v4192 = vld [vmem:[#allocation6 + $0x608] sm:$0xff]
    %v4193 = vld [vmem:[#allocation6 + $0x610] sm:$0xff]
    %v4194 = vld [vmem:[#allocation6 + $0x618] sm:$0xff]
    %v4195 = vld [vmem:[#allocation6 + $0x620] sm:$0xff]
    %v4196 = vld [vmem:[#allocation6 + $0x628] sm:$0xff]
    %v4197 = vld [vmem:[#allocation6 + $0x630] sm:$0xff]
    %v4198 = vld [vmem:[#allocation6 + $0x638] sm:$0xff]
    %v4199 = vld [vmem:[#allocation6 + $0x640] sm:$0xff]
    %v4200 = vld [vmem:[#allocation6 + $0x648] sm:$0xff]
    %v4201 = vld [vmem:[#allocation6 + $0x650] sm:$0xff]
    %v4202 = vld [vmem:[#allocation6 + $0x658] sm:$0xff]
    %v4203 = vld [vmem:[#allocation6 + $0x660] sm:$0xff]
    %v4204 = vld [vmem:[#allocation6 + $0x668] sm:$0xff]
    %v4205 = vld [vmem:[#allocation6 + $0x670] sm:$0xff]
    %v4206 = vld [vmem:[#allocation6 + $0x678] sm:$0xff]
    %v4207 = vld [vmem:[#allocation6 + $0x680] sm:$0xff]
    %v4208 = vld [vmem:[#allocation6 + $0x688] sm:$0xff]
    %v4209 = vld [vmem:[#allocation6 + $0x690] sm:$0xff]
    %v4210 = vld [vmem:[#allocation6 + $0x698] sm:$0xff]
    %v4211 = vld [vmem:[#allocation6 + $0x6a0] sm:$0xff]
    %v4212 = vld [vmem:[#allocation6 + $0x6a8] sm:$0xff]
    %v4213 = vld [vmem:[#allocation6 + $0x6b0] sm:$0xff]
    %v4214 = vld [vmem:[#allocation6 + $0x6b8] sm:$0xff]
    %v4215 = vld [vmem:[#allocation6 + $0x6c0] sm:$0xff]
    %v4216 = vld [vmem:[#allocation6 + $0x6c8] sm:$0xff]
    %v4217 = vld [vmem:[#allocation6 + $0x6d0] sm:$0xff]
    %v4218 = vld [vmem:[#allocation6 + $0x6d8] sm:$0xff]
    %v4219 = vld [vmem:[#allocation6 + $0x6e0] sm:$0xff]
    %v4220 = vld [vmem:[#allocation6 + $0x6e8] sm:$0xff]
    %v4221 = vld [vmem:[#allocation6 + $0x6f0] sm:$0xff]
    %v4222 = vld [vmem:[#allocation6 + $0x6f8] sm:$0xff]
    %v4223 = vld [vmem:[#allocation6 + $0x700] sm:$0xff]
    %v4224 = vld [vmem:[#allocation6 + $0x708] sm:$0xff]
    %v4225 = vld [vmem:[#allocation6 + $0x710] sm:$0xff]
    %v4226 = vld [vmem:[#allocation6 + $0x718] sm:$0xff]
    %v4227 = vld [vmem:[#allocation6 + $0x720] sm:$0xff]
    %v4228 = vld [vmem:[#allocation6 + $0x728] sm:$0xff]
    %v4229 = vld [vmem:[#allocation6 + $0x730] sm:$0xff]
    %v4230 = vld [vmem:[#allocation6 + $0x738] sm:$0xff]
    %v4231 = vld [vmem:[#allocation6 + $0x740] sm:$0xff]
    %v4232 = vld [vmem:[#allocation6 + $0x748] sm:$0xff]
    %v4233 = vld [vmem:[#allocation6 + $0x750] sm:$0xff]
    %v4234 = vld [vmem:[#allocation6 + $0x758] sm:$0xff]
    %v4235 = vld [vmem:[#allocation6 + $0x760] sm:$0xff]
    %v4236 = vld [vmem:[#allocation6 + $0x768] sm:$0xff]
    %v4237 = vld [vmem:[#allocation6 + $0x770] sm:$0xff]
    %v4238 = vld [vmem:[#allocation6 + $0x778] sm:$0xff]
    %v4239 = vld [vmem:[#allocation6 + $0x780] sm:$0xff]
    %v4240 = vld [vmem:[#allocation6 + $0x788] sm:$0xff]
    %v4241 = vld [vmem:[#allocation6 + $0x790] sm:$0xff]
    %v4242 = vld [vmem:[#allocation6 + $0x798] sm:$0xff]
    %v4243 = vld [vmem:[#allocation6 + $0x7a0] sm:$0xff]
    %v4244 = vld [vmem:[#allocation6 + $0x7a8] sm:$0xff]
    %v4245 = vld [vmem:[#allocation6 + $0x7b0] sm:$0xff]
    %v4246 = vld [vmem:[#allocation6 + $0x7b8] sm:$0xff]
    %v4247 = vld [vmem:[#allocation6 + $0x7c0] sm:$0xff]
    %v4248 = vld [vmem:[#allocation6 + $0x7c8] sm:$0xff]
    %v4249 = vld [vmem:[#allocation6 + $0x7d0] sm:$0xff]
    %v4250 = vld [vmem:[#allocation6 + $0x7d8] sm:$0xff]
    %v4251 = vld [vmem:[#allocation6 + $0x7e0] sm:$0xff]
    %v4252 = vld [vmem:[#allocation6 + $0x7e8] sm:$0xff]
    %v4253 = vld [vmem:[#allocation6 + $0x7f0] sm:$0xff]
    %v4254 = vld [vmem:[#allocation6 + $0x7f8] sm:$0xff]
    %v4255 = vld [vmem:[#allocation7] sm:$0xf]
    %v4257 = vlaneseq
    %v4258 = vshrl.u32 %v4257, 7
    %v4259 = vsub.s32 0, %v4258
    %v4260 = vrot.slane %v4255, %v4259
    %v4261 = vlaneseq
    %v4262 = vshrl.u32 %v4261, 7
    %v4263 = vsub.s32 1, %v4262
    %v4264 = vrot.slane %v4255, %v4263
    %v4265 = vlaneseq
    %v4266 = vshrl.u32 %v4265, 7
    %v4267 = vsub.s32 2, %v4266
    %v4268 = vrot.slane %v4255, %v4267
    %v4269 = vlaneseq
    %v4270 = vshrl.u32 %v4269, 7
    %v4271 = vsub.s32 3, %v4270
    %v4272 = vrot.slane %v4255, %v4271
    %v4533 = vunpack.c.l.b16 %v3999
    %v4534 = vunpack.c.h.b16 %v3999
    %v4535 = vunpack.c.l.b16 %v4000
    %v4536 = vunpack.c.h.b16 %v4000
    %v4537 = vunpack.c.l.b16 %v4001
    %v4538 = vunpack.c.h.b16 %v4001
    %v4539 = vunpack.c.l.b16 %v4002
    %v4540 = vunpack.c.h.b16 %v4002
    %v4541 = vunpack.c.l.b16 %v4003
    %v4542 = vunpack.c.h.b16 %v4003
    %v4543 = vunpack.c.l.b16 %v4004
    %v4544 = vunpack.c.h.b16 %v4004
    %v4545 = vunpack.c.l.b16 %v4005
    %v4546 = vunpack.c.h.b16 %v4005
    %v4547 = vunpack.c.l.b16 %v4006
    %v4548 = vunpack.c.h.b16 %v4006
    %v4549 = vunpack.c.l.b16 %v4007
    %v4550 = vunpack.c.h.b16 %v4007
    %v4551 = vunpack.c.l.b16 %v4008
    %v4552 = vunpack.c.h.b16 %v4008
    %v4553 = vunpack.c.l.b16 %v4009
    %v4554 = vunpack.c.h.b16 %v4009
    %v4555 = vunpack.c.l.b16 %v4010
    %v4556 = vunpack.c.h.b16 %v4010
    %v4557 = vunpack.c.l.b16 %v4011
    %v4558 = vunpack.c.h.b16 %v4011
    %v4559 = vunpack.c.l.b16 %v4012
    %v4560 = vunpack.c.h.b16 %v4012
    %v4561 = vunpack.c.l.b16 %v4013
    %v4562 = vunpack.c.h.b16 %v4013
    %v4563 = vunpack.c.l.b16 %v4014
    %v4564 = vunpack.c.h.b16 %v4014
    %v4565 = vunpack.c.l.b16 %v4015
    %v4566 = vunpack.c.h.b16 %v4015
    %v4567 = vunpack.c.l.b16 %v4016
    %v4568 = vunpack.c.h.b16 %v4016
    %v4569 = vunpack.c.l.b16 %v4017
    %v4570 = vunpack.c.h.b16 %v4017
    %v4571 = vunpack.c.l.b16 %v4018
    %v4572 = vunpack.c.h.b16 %v4018
    %v4573 = vunpack.c.l.b16 %v4019
    %v4574 = vunpack.c.h.b16 %v4019
    %v4575 = vunpack.c.l.b16 %v4020
    %v4576 = vunpack.c.h.b16 %v4020
    %v4577 = vunpack.c.l.b16 %v4021
    %v4578 = vunpack.c.h.b16 %v4021
    %v4579 = vunpack.c.l.b16 %v4022
    %v4580 = vunpack.c.h.b16 %v4022
    %v4581 = vunpack.c.l.b16 %v4023
    %v4582 = vunpack.c.h.b16 %v4023
    %v4583 = vunpack.c.l.b16 %v4024
    %v4584 = vunpack.c.h.b16 %v4024
    %v4585 = vunpack.c.l.b16 %v4025
    %v4586 = vunpack.c.h.b16 %v4025
    %v4587 = vunpack.c.l.b16 %v4026
    %v4588 = vunpack.c.h.b16 %v4026
    %v4589 = vunpack.c.l.b16 %v4027
    %v4590 = vunpack.c.h.b16 %v4027
    %v4591 = vunpack.c.l.b16 %v4028
    %v4592 = vunpack.c.h.b16 %v4028
    %v4593 = vunpack.c.l.b16 %v4029
    %v4594 = vunpack.c.h.b16 %v4029
    %v4595 = vunpack.c.l.b16 %v4030
    %v4596 = vunpack.c.h.b16 %v4030
    %v4597 = vunpack.c.l.b16 %v4031
    %v4598 = vunpack.c.h.b16 %v4031
    %v4599 = vunpack.c.l.b16 %v4032
    %v4600 = vunpack.c.h.b16 %v4032
    %v4601 = vunpack.c.l.b16 %v4033
    %v4602 = vunpack.c.h.b16 %v4033
    %v4603 = vunpack.c.l.b16 %v4034
    %v4604 = vunpack.c.h.b16 %v4034
    %v4605 = vunpack.c.l.b16 %v4035
    %v4606 = vunpack.c.h.b16 %v4035
    %v4607 = vunpack.c.l.b16 %v4036
    %v4608 = vunpack.c.h.b16 %v4036
    %v4609 = vunpack.c.l.b16 %v4037
    %v4610 = vunpack.c.h.b16 %v4037
    %v4611 = vunpack.c.l.b16 %v4038
    %v4612 = vunpack.c.h.b16 %v4038
    %v4613 = vunpack.c.l.b16 %v4039
    %v4614 = vunpack.c.h.b16 %v4039
    %v4615 = vunpack.c.l.b16 %v4040
    %v4616 = vunpack.c.h.b16 %v4040
    %v4617 = vunpack.c.l.b16 %v4041
    %v4618 = vunpack.c.h.b16 %v4041
    %v4619 = vunpack.c.l.b16 %v4042
    %v4620 = vunpack.c.h.b16 %v4042
    %v4621 = vunpack.c.l.b16 %v4043
    %v4622 = vunpack.c.h.b16 %v4043
    %v4623 = vunpack.c.l.b16 %v4044
    %v4624 = vunpack.c.h.b16 %v4044
    %v4625 = vunpack.c.l.b16 %v4045
    %v4626 = vunpack.c.h.b16 %v4045
    %v4627 = vunpack.c.l.b16 %v4046
    %v4628 = vunpack.c.h.b16 %v4046
    %v4629 = vunpack.c.l.b16 %v4047
    %v4630 = vunpack.c.h.b16 %v4047
    %v4631 = vunpack.c.l.b16 %v4048
    %v4632 = vunpack.c.h.b16 %v4048
    %v4633 = vunpack.c.l.b16 %v4049
    %v4634 = vunpack.c.h.b16 %v4049
    %v4635 = vunpack.c.l.b16 %v4050
    %v4636 = vunpack.c.h.b16 %v4050
    %v4637 = vunpack.c.l.b16 %v4051
    %v4638 = vunpack.c.h.b16 %v4051
    %v4639 = vunpack.c.l.b16 %v4052
    %v4640 = vunpack.c.h.b16 %v4052
    %v4641 = vunpack.c.l.b16 %v4053
    %v4642 = vunpack.c.h.b16 %v4053
    %v4643 = vunpack.c.l.b16 %v4054
    %v4644 = vunpack.c.h.b16 %v4054
    %v4645 = vunpack.c.l.b16 %v4055
    %v4646 = vunpack.c.h.b16 %v4055
    %v4647 = vunpack.c.l.b16 %v4056
    %v4648 = vunpack.c.h.b16 %v4056
    %v4649 = vunpack.c.l.b16 %v4057
    %v4650 = vunpack.c.h.b16 %v4057
    %v4651 = vunpack.c.l.b16 %v4058
    %v4652 = vunpack.c.h.b16 %v4058
    %v4653 = vunpack.c.l.b16 %v4059
    %v4654 = vunpack.c.h.b16 %v4059
    %v4655 = vunpack.c.l.b16 %v4060
    %v4656 = vunpack.c.h.b16 %v4060
    %v4657 = vunpack.c.l.b16 %v4061
    %v4658 = vunpack.c.h.b16 %v4061
    %v4659 = vunpack.c.l.b16 %v4062
    %v4660 = vunpack.c.h.b16 %v4062
    %v4661 = vunpack.c.l.b16 %v4063
    %v4662 = vunpack.c.h.b16 %v4063
    %v4663 = vunpack.c.l.b16 %v4064
    %v4664 = vunpack.c.h.b16 %v4064
    %v4665 = vunpack.c.l.b16 %v4065
    %v4666 = vunpack.c.h.b16 %v4065
    %v4667 = vunpack.c.l.b16 %v4066
    %v4668 = vunpack.c.h.b16 %v4066
    %v4669 = vunpack.c.l.b16 %v4067
    %v4670 = vunpack.c.h.b16 %v4067
    %v4671 = vunpack.c.l.b16 %v4068
    %v4672 = vunpack.c.h.b16 %v4068
    %v4673 = vunpack.c.l.b16 %v4069
    %v4674 = vunpack.c.h.b16 %v4069
    %v4675 = vunpack.c.l.b16 %v4070
    %v4676 = vunpack.c.h.b16 %v4070
    %v4677 = vunpack.c.l.b16 %v4071
    %v4678 = vunpack.c.h.b16 %v4071
    %v4679 = vunpack.c.l.b16 %v4072
    %v4680 = vunpack.c.h.b16 %v4072
    %v4681 = vunpack.c.l.b16 %v4073
    %v4682 = vunpack.c.h.b16 %v4073
    %v4683 = vunpack.c.l.b16 %v4074
    %v4684 = vunpack.c.h.b16 %v4074
    %v4685 = vunpack.c.l.b16 %v4075
    %v4686 = vunpack.c.h.b16 %v4075
    %v4687 = vunpack.c.l.b16 %v4076
    %v4688 = vunpack.c.h.b16 %v4076
    %v4689 = vunpack.c.l.b16 %v4077
    %v4690 = vunpack.c.h.b16 %v4077
    %v4691 = vunpack.c.l.b16 %v4078
    %v4692 = vunpack.c.h.b16 %v4078
    %v4693 = vunpack.c.l.b16 %v4079
    %v4694 = vunpack.c.h.b16 %v4079
    %v4695 = vunpack.c.l.b16 %v4080
    %v4696 = vunpack.c.h.b16 %v4080
    %v4697 = vunpack.c.l.b16 %v4081
    %v4698 = vunpack.c.h.b16 %v4081
    %v4699 = vunpack.c.l.b16 %v4082
    %v4700 = vunpack.c.h.b16 %v4082
    %v4701 = vunpack.c.l.b16 %v4083
    %v4702 = vunpack.c.h.b16 %v4083
    %v4703 = vunpack.c.l.b16 %v4084
    %v4704 = vunpack.c.h.b16 %v4084
    %v4705 = vunpack.c.l.b16 %v4085
    %v4706 = vunpack.c.h.b16 %v4085
    %v4707 = vunpack.c.l.b16 %v4086
    %v4708 = vunpack.c.h.b16 %v4086
    %v4709 = vunpack.c.l.b16 %v4087
    %v4710 = vunpack.c.h.b16 %v4087
    %v4711 = vunpack.c.l.b16 %v4088
    %v4712 = vunpack.c.h.b16 %v4088
    %v4713 = vunpack.c.l.b16 %v4089
    %v4714 = vunpack.c.h.b16 %v4089
    %v4715 = vunpack.c.l.b16 %v4090
    %v4716 = vunpack.c.h.b16 %v4090
    %v4717 = vunpack.c.l.b16 %v4091
    %v4718 = vunpack.c.h.b16 %v4091
    %v4719 = vunpack.c.l.b16 %v4092
    %v4720 = vunpack.c.h.b16 %v4092
    %v4721 = vunpack.c.l.b16 %v4093
    %v4722 = vunpack.c.h.b16 %v4093
    %v4723 = vunpack.c.l.b16 %v4094
    %v4724 = vunpack.c.h.b16 %v4094
    %v4725 = vunpack.c.l.b16 %v4095
    %v4726 = vunpack.c.h.b16 %v4095
    %v4727 = vunpack.c.l.b16 %v4096
    %v4728 = vunpack.c.h.b16 %v4096
    %v4729 = vunpack.c.l.b16 %v4097
    %v4730 = vunpack.c.h.b16 %v4097
    %v4731 = vunpack.c.l.b16 %v4098
    %v4732 = vunpack.c.h.b16 %v4098
    %v4733 = vunpack.c.l.b16 %v4099
    %v4734 = vunpack.c.h.b16 %v4099
    %v4735 = vunpack.c.l.b16 %v4100
    %v4736 = vunpack.c.h.b16 %v4100
    %v4737 = vunpack.c.l.b16 %v4101
    %v4738 = vunpack.c.h.b16 %v4101
    %v4739 = vunpack.c.l.b16 %v4102
    %v4740 = vunpack.c.h.b16 %v4102
    %v4741 = vunpack.c.l.b16 %v4103
    %v4742 = vunpack.c.h.b16 %v4103
    %v4743 = vunpack.c.l.b16 %v4104
    %v4744 = vunpack.c.h.b16 %v4104
    %v4745 = vunpack.c.l.b16 %v4105
    %v4746 = vunpack.c.h.b16 %v4105
    %v4747 = vunpack.c.l.b16 %v4106
    %v4748 = vunpack.c.h.b16 %v4106
    %v4749 = vunpack.c.l.b16 %v4107
    %v4750 = vunpack.c.h.b16 %v4107
    %v4751 = vunpack.c.l.b16 %v4108
    %v4752 = vunpack.c.h.b16 %v4108
    %v4753 = vunpack.c.l.b16 %v4109
    %v4754 = vunpack.c.h.b16 %v4109
    %v4755 = vunpack.c.l.b16 %v4110
    %v4756 = vunpack.c.h.b16 %v4110
    %v4757 = vunpack.c.l.b16 %v4111
    %v4758 = vunpack.c.h.b16 %v4111
    %v4759 = vunpack.c.l.b16 %v4112
    %v4760 = vunpack.c.h.b16 %v4112
    %v4761 = vunpack.c.l.b16 %v4113
    %v4762 = vunpack.c.h.b16 %v4113
    %v4763 = vunpack.c.l.b16 %v4114
    %v4764 = vunpack.c.h.b16 %v4114
    %v4765 = vunpack.c.l.b16 %v4115
    %v4766 = vunpack.c.h.b16 %v4115
    %v4767 = vunpack.c.l.b16 %v4116
    %v4768 = vunpack.c.h.b16 %v4116
    %v4769 = vunpack.c.l.b16 %v4117
    %v4770 = vunpack.c.h.b16 %v4117
    %v4771 = vunpack.c.l.b16 %v4118
    %v4772 = vunpack.c.h.b16 %v4118
    %v4773 = vunpack.c.l.b16 %v4119
    %v4774 = vunpack.c.h.b16 %v4119
    %v4775 = vunpack.c.l.b16 %v4120
    %v4776 = vunpack.c.h.b16 %v4120
    %v4777 = vunpack.c.l.b16 %v4121
    %v4778 = vunpack.c.h.b16 %v4121
    %v4779 = vunpack.c.l.b16 %v4122
    %v4780 = vunpack.c.h.b16 %v4122
    %v4781 = vunpack.c.l.b16 %v4123
    %v4782 = vunpack.c.h.b16 %v4123
    %v4783 = vunpack.c.l.b16 %v4124
    %v4784 = vunpack.c.h.b16 %v4124
    %v4785 = vunpack.c.l.b16 %v4125
    %v4786 = vunpack.c.h.b16 %v4125
    %v4787 = vunpack.c.l.b16 %v4126
    %v4788 = vunpack.c.h.b16 %v4126
    %v4789 = vunpack.c.l.b16 %v4127
    %v4790 = vunpack.c.h.b16 %v4127
    %v4791 = vunpack.c.l.b16 %v4128
    %v4792 = vunpack.c.h.b16 %v4128
    %v4793 = vunpack.c.l.b16 %v4129
    %v4794 = vunpack.c.h.b16 %v4129
    %v4795 = vunpack.c.l.b16 %v4130
    %v4796 = vunpack.c.h.b16 %v4130
    %v4797 = vunpack.c.l.b16 %v4131
    %v4798 = vunpack.c.h.b16 %v4131
    %v4799 = vunpack.c.l.b16 %v4132
    %v4800 = vunpack.c.h.b16 %v4132
    %v4801 = vunpack.c.l.b16 %v4133
    %v4802 = vunpack.c.h.b16 %v4133
    %v4803 = vunpack.c.l.b16 %v4134
    %v4804 = vunpack.c.h.b16 %v4134
    %v4805 = vunpack.c.l.b16 %v4135
    %v4806 = vunpack.c.h.b16 %v4135
    %v4807 = vunpack.c.l.b16 %v4136
    %v4808 = vunpack.c.h.b16 %v4136
    %v4809 = vunpack.c.l.b16 %v4137
    %v4810 = vunpack.c.h.b16 %v4137
    %v4811 = vunpack.c.l.b16 %v4138
    %v4812 = vunpack.c.h.b16 %v4138
    %v4813 = vunpack.c.l.b16 %v4139
    %v4814 = vunpack.c.h.b16 %v4139
    %v4815 = vunpack.c.l.b16 %v4140
    %v4816 = vunpack.c.h.b16 %v4140
    %v4817 = vunpack.c.l.b16 %v4141
    %v4818 = vunpack.c.h.b16 %v4141
    %v4819 = vunpack.c.l.b16 %v4142
    %v4820 = vunpack.c.h.b16 %v4142
    %v4821 = vunpack.c.l.b16 %v4143
    %v4822 = vunpack.c.h.b16 %v4143
    %v4823 = vunpack.c.l.b16 %v4144
    %v4824 = vunpack.c.h.b16 %v4144
    %v4825 = vunpack.c.l.b16 %v4145
    %v4826 = vunpack.c.h.b16 %v4145
    %v4827 = vunpack.c.l.b16 %v4146
    %v4828 = vunpack.c.h.b16 %v4146
    %v4829 = vunpack.c.l.b16 %v4147
    %v4830 = vunpack.c.h.b16 %v4147
    %v4831 = vunpack.c.l.b16 %v4148
    %v4832 = vunpack.c.h.b16 %v4148
    %v4833 = vunpack.c.l.b16 %v4149
    %v4834 = vunpack.c.h.b16 %v4149
    %v4835 = vunpack.c.l.b16 %v4150
    %v4836 = vunpack.c.h.b16 %v4150
    %v4837 = vunpack.c.l.b16 %v4151
    %v4838 = vunpack.c.h.b16 %v4151
    %v4839 = vunpack.c.l.b16 %v4152
    %v4840 = vunpack.c.h.b16 %v4152
    %v4841 = vunpack.c.l.b16 %v4153
    %v4842 = vunpack.c.h.b16 %v4153
    %v4843 = vunpack.c.l.b16 %v4154
    %v4844 = vunpack.c.h.b16 %v4154
    %v4845 = vunpack.c.l.b16 %v4155
    %v4846 = vunpack.c.h.b16 %v4155
    %v4847 = vunpack.c.l.b16 %v4156
    %v4848 = vunpack.c.h.b16 %v4156
    %v4849 = vunpack.c.l.b16 %v4157
    %v4850 = vunpack.c.h.b16 %v4157
    %v4851 = vunpack.c.l.b16 %v4158
    %v4852 = vunpack.c.h.b16 %v4158
    %v4853 = vunpack.c.l.b16 %v4159
    %v4854 = vunpack.c.h.b16 %v4159
    %v4855 = vunpack.c.l.b16 %v4160
    %v4856 = vunpack.c.h.b16 %v4160
    %v4857 = vunpack.c.l.b16 %v4161
    %v4858 = vunpack.c.h.b16 %v4161
    %v4859 = vunpack.c.l.b16 %v4162
    %v4860 = vunpack.c.h.b16 %v4162
    %v4861 = vunpack.c.l.b16 %v4163
    %v4862 = vunpack.c.h.b16 %v4163
    %v4863 = vunpack.c.l.b16 %v4164
    %v4864 = vunpack.c.h.b16 %v4164
    %v4865 = vunpack.c.l.b16 %v4165
    %v4866 = vunpack.c.h.b16 %v4165
    %v4867 = vunpack.c.l.b16 %v4166
    %v4868 = vunpack.c.h.b16 %v4166
    %v4869 = vunpack.c.l.b16 %v4167
    %v4870 = vunpack.c.h.b16 %v4167
    %v4871 = vunpack.c.l.b16 %v4168
    %v4872 = vunpack.c.h.b16 %v4168
    %v4873 = vunpack.c.l.b16 %v4169
    %v4874 = vunpack.c.h.b16 %v4169
    %v4875 = vunpack.c.l.b16 %v4170
    %v4876 = vunpack.c.h.b16 %v4170
    %v4877 = vunpack.c.l.b16 %v4171
    %v4878 = vunpack.c.h.b16 %v4171
    %v4879 = vunpack.c.l.b16 %v4172
    %v4880 = vunpack.c.h.b16 %v4172
    %v4881 = vunpack.c.l.b16 %v4173
    %v4882 = vunpack.c.h.b16 %v4173
    %v4883 = vunpack.c.l.b16 %v4174
    %v4884 = vunpack.c.h.b16 %v4174
    %v4885 = vunpack.c.l.b16 %v4175
    %v4886 = vunpack.c.h.b16 %v4175
    %v4887 = vunpack.c.l.b16 %v4176
    %v4888 = vunpack.c.h.b16 %v4176
    %v4889 = vunpack.c.l.b16 %v4177
    %v4890 = vunpack.c.h.b16 %v4177
    %v4891 = vunpack.c.l.b16 %v4178
    %v4892 = vunpack.c.h.b16 %v4178
    %v4893 = vunpack.c.l.b16 %v4179
    %v4894 = vunpack.c.h.b16 %v4179
    %v4895 = vunpack.c.l.b16 %v4180
    %v4896 = vunpack.c.h.b16 %v4180
    %v4897 = vunpack.c.l.b16 %v4181
    %v4898 = vunpack.c.h.b16 %v4181
    %v4899 = vunpack.c.l.b16 %v4182
    %v4900 = vunpack.c.h.b16 %v4182
    %v4901 = vunpack.c.l.b16 %v4183
    %v4902 = vunpack.c.h.b16 %v4183
    %v4903 = vunpack.c.l.b16 %v4184
    %v4904 = vunpack.c.h.b16 %v4184
    %v4905 = vunpack.c.l.b16 %v4185
    %v4906 = vunpack.c.h.b16 %v4185
    %v4907 = vunpack.c.l.b16 %v4186
    %v4908 = vunpack.c.h.b16 %v4186
    %v4909 = vunpack.c.l.b16 %v4187
    %v4910 = vunpack.c.h.b16 %v4187
    %v4911 = vunpack.c.l.b16 %v4188
    %v4912 = vunpack.c.h.b16 %v4188
    %v4913 = vunpack.c.l.b16 %v4189
    %v4914 = vunpack.c.h.b16 %v4189
    %v4915 = vunpack.c.l.b16 %v4190
    %v4916 = vunpack.c.h.b16 %v4190
    %v4917 = vunpack.c.l.b16 %v4191
    %v4918 = vunpack.c.h.b16 %v4191
    %v4919 = vunpack.c.l.b16 %v4192
    %v4920 = vunpack.c.h.b16 %v4192
    %v4921 = vunpack.c.l.b16 %v4193
    %v4922 = vunpack.c.h.b16 %v4193
    %v4923 = vunpack.c.l.b16 %v4194
    %v4924 = vunpack.c.h.b16 %v4194
    %v4925 = vunpack.c.l.b16 %v4195
    %v4926 = vunpack.c.h.b16 %v4195
    %v4927 = vunpack.c.l.b16 %v4196
    %v4928 = vunpack.c.h.b16 %v4196
    %v4929 = vunpack.c.l.b16 %v4197
    %v4930 = vunpack.c.h.b16 %v4197
    %v4931 = vunpack.c.l.b16 %v4198
    %v4932 = vunpack.c.h.b16 %v4198
    %v4933 = vunpack.c.l.b16 %v4199
    %v4934 = vunpack.c.h.b16 %v4199
    %v4935 = vunpack.c.l.b16 %v4200
    %v4936 = vunpack.c.h.b16 %v4200
    %v4937 = vunpack.c.l.b16 %v4201
    %v4938 = vunpack.c.h.b16 %v4201
    %v4939 = vunpack.c.l.b16 %v4202
    %v4940 = vunpack.c.h.b16 %v4202
    %v4941 = vunpack.c.l.b16 %v4203
    %v4942 = vunpack.c.h.b16 %v4203
    %v4943 = vunpack.c.l.b16 %v4204
    %v4944 = vunpack.c.h.b16 %v4204
    %v4945 = vunpack.c.l.b16 %v4205
    %v4946 = vunpack.c.h.b16 %v4205
    %v4947 = vunpack.c.l.b16 %v4206
    %v4948 = vunpack.c.h.b16 %v4206
    %v4949 = vunpack.c.l.b16 %v4207
    %v4950 = vunpack.c.h.b16 %v4207
    %v4951 = vunpack.c.l.b16 %v4208
    %v4952 = vunpack.c.h.b16 %v4208
    %v4953 = vunpack.c.l.b16 %v4209
    %v4954 = vunpack.c.h.b16 %v4209
    %v4955 = vunpack.c.l.b16 %v4210
    %v4956 = vunpack.c.h.b16 %v4210
    %v4957 = vunpack.c.l.b16 %v4211
    %v4958 = vunpack.c.h.b16 %v4211
    %v4959 = vunpack.c.l.b16 %v4212
    %v4960 = vunpack.c.h.b16 %v4212
    %v4961 = vunpack.c.l.b16 %v4213
    %v4962 = vunpack.c.h.b16 %v4213
    %v4963 = vunpack.c.l.b16 %v4214
    %v4964 = vunpack.c.h.b16 %v4214
    %v4965 = vunpack.c.l.b16 %v4215
    %v4966 = vunpack.c.h.b16 %v4215
    %v4967 = vunpack.c.l.b16 %v4216
    %v4968 = vunpack.c.h.b16 %v4216
    %v4969 = vunpack.c.l.b16 %v4217
    %v4970 = vunpack.c.h.b16 %v4217
    %v4971 = vunpack.c.l.b16 %v4218
    %v4972 = vunpack.c.h.b16 %v4218
    %v4973 = vunpack.c.l.b16 %v4219
    %v4974 = vunpack.c.h.b16 %v4219
    %v4975 = vunpack.c.l.b16 %v4220
    %v4976 = vunpack.c.h.b16 %v4220
    %v4977 = vunpack.c.l.b16 %v4221
    %v4978 = vunpack.c.h.b16 %v4221
    %v4979 = vunpack.c.l.b16 %v4222
    %v4980 = vunpack.c.h.b16 %v4222
    %v4981 = vunpack.c.l.b16 %v4223
    %v4982 = vunpack.c.h.b16 %v4223
    %v4983 = vunpack.c.l.b16 %v4224
    %v4984 = vunpack.c.h.b16 %v4224
    %v4985 = vunpack.c.l.b16 %v4225
    %v4986 = vunpack.c.h.b16 %v4225
    %v4987 = vunpack.c.l.b16 %v4226
    %v4988 = vunpack.c.h.b16 %v4226
    %v4989 = vunpack.c.l.b16 %v4227
    %v4990 = vunpack.c.h.b16 %v4227
    %v4991 = vunpack.c.l.b16 %v4228
    %v4992 = vunpack.c.h.b16 %v4228
    %v4993 = vunpack.c.l.b16 %v4229
    %v4994 = vunpack.c.h.b16 %v4229
    %v4995 = vunpack.c.l.b16 %v4230
    %v4996 = vunpack.c.h.b16 %v4230
    %v4997 = vunpack.c.l.b16 %v4231
    %v4998 = vunpack.c.h.b16 %v4231
    %v4999 = vunpack.c.l.b16 %v4232
    %v5000 = vunpack.c.h.b16 %v4232
    %v5001 = vunpack.c.l.b16 %v4233
    %v5002 = vunpack.c.h.b16 %v4233
    %v5003 = vunpack.c.l.b16 %v4234
    %v5004 = vunpack.c.h.b16 %v4234
    %v5005 = vunpack.c.l.b16 %v4235
    %v5006 = vunpack.c.h.b16 %v4235
    %v5007 = vunpack.c.l.b16 %v4236
    %v5008 = vunpack.c.h.b16 %v4236
    %v5009 = vunpack.c.l.b16 %v4237
    %v5010 = vunpack.c.h.b16 %v4237
    %v5011 = vunpack.c.l.b16 %v4238
    %v5012 = vunpack.c.h.b16 %v4238
    %v5013 = vunpack.c.l.b16 %v4239
    %v5014 = vunpack.c.h.b16 %v4239
    %v5015 = vunpack.c.l.b16 %v4240
    %v5016 = vunpack.c.h.b16 %v4240
    %v5017 = vunpack.c.l.b16 %v4241
    %v5018 = vunpack.c.h.b16 %v4241
    %v5019 = vunpack.c.l.b16 %v4242
    %v5020 = vunpack.c.h.b16 %v4242
    %v5021 = vunpack.c.l.b16 %v4243
    %v5022 = vunpack.c.h.b16 %v4243
    %v5023 = vunpack.c.l.b16 %v4244
    %v5024 = vunpack.c.h.b16 %v4244
    %v5025 = vunpack.c.l.b16 %v4245
    %v5026 = vunpack.c.h.b16 %v4245
    %v5027 = vunpack.c.l.b16 %v4246
    %v5028 = vunpack.c.h.b16 %v4246
    %v5029 = vunpack.c.l.b16 %v4247
    %v5030 = vunpack.c.h.b16 %v4247
    %v5031 = vunpack.c.l.b16 %v4248
    %v5032 = vunpack.c.h.b16 %v4248
    %v5033 = vunpack.c.l.b16 %v4249
    %v5034 = vunpack.c.h.b16 %v4249
    %v5035 = vunpack.c.l.b16 %v4250
    %v5036 = vunpack.c.h.b16 %v4250
    %v5037 = vunpack.c.l.b16 %v4251
    %v5038 = vunpack.c.h.b16 %v4251
    %v5039 = vunpack.c.l.b16 %v4252
    %v5040 = vunpack.c.h.b16 %v4252
    %v5041 = vunpack.c.l.b16 %v4253
    %v5042 = vunpack.c.h.b16 %v4253
    %v5043 = vunpack.c.l.b16 %v4254
    %v5044 = vunpack.c.h.b16 %v4254
    %v5045 = vpack.c.b16 %v4537, %v4533
    %v5046 = vpack.c.b16 %v4538, %v4534
    %v5047 = vpack.c.b16 %v4539, %v4535
    %v5048 = vpack.c.b16 %v4540, %v4536
    %v5049 = vpack.c.b16 %v4545, %v4541
    %v5050 = vpack.c.b16 %v4546, %v4542
    %v5051 = vpack.c.b16 %v4547, %v4543
    %v5052 = vpack.c.b16 %v4548, %v4544
    %v5053 = vpack.c.b16 %v4553, %v4549
    %v5054 = vpack.c.b16 %v4554, %v4550
    %v5055 = vpack.c.b16 %v4555, %v4551
    %v5056 = vpack.c.b16 %v4556, %v4552
    %v5057 = vpack.c.b16 %v4561, %v4557
    %v5058 = vpack.c.b16 %v4562, %v4558
    %v5059 = vpack.c.b16 %v4563, %v4559
    %v5060 = vpack.c.b16 %v4564, %v4560
    %v5061 = vpack.c.b16 %v4569, %v4565
    %v5062 = vpack.c.b16 %v4570, %v4566
    %v5063 = vpack.c.b16 %v4571, %v4567
    %v5064 = vpack.c.b16 %v4572, %v4568
    %v5065 = vpack.c.b16 %v4577, %v4573
    %v5066 = vpack.c.b16 %v4578, %v4574
    %v5067 = vpack.c.b16 %v4579, %v4575
    %v5068 = vpack.c.b16 %v4580, %v4576
    %v5069 = vpack.c.b16 %v4585, %v4581
    %v5070 = vpack.c.b16 %v4586, %v4582
    %v5071 = vpack.c.b16 %v4587, %v4583
    %v5072 = vpack.c.b16 %v4588, %v4584
    %v5073 = vpack.c.b16 %v4593, %v4589
    %v5074 = vpack.c.b16 %v4594, %v4590
    %v5075 = vpack.c.b16 %v4595, %v4591
    %v5076 = vpack.c.b16 %v4596, %v4592
    %v5077 = vpack.c.b16 %v4601, %v4597
    %v5078 = vpack.c.b16 %v4602, %v4598
    %v5079 = vpack.c.b16 %v4603, %v4599
    %v5080 = vpack.c.b16 %v4604, %v4600
    %v5081 = vpack.c.b16 %v4609, %v4605
    %v5082 = vpack.c.b16 %v4610, %v4606
    %v5083 = vpack.c.b16 %v4611, %v4607
    %v5084 = vpack.c.b16 %v4612, %v4608
    %v5085 = vpack.c.b16 %v4617, %v4613
    %v5086 = vpack.c.b16 %v4618, %v4614
    %v5087 = vpack.c.b16 %v4619, %v4615
    %v5088 = vpack.c.b16 %v4620, %v4616
    %v5089 = vpack.c.b16 %v4625, %v4621
    %v5090 = vpack.c.b16 %v4626, %v4622
    %v5091 = vpack.c.b16 %v4627, %v4623
    %v5092 = vpack.c.b16 %v4628, %v4624
    %v5093 = vpack.c.b16 %v4633, %v4629
    %v5094 = vpack.c.b16 %v4634, %v4630
    %v5095 = vpack.c.b16 %v4635, %v4631
    %v5096 = vpack.c.b16 %v4636, %v4632
    %v5097 = vpack.c.b16 %v4641, %v4637
    %v5098 = vpack.c.b16 %v4642, %v4638
    %v5099 = vpack.c.b16 %v4643, %v4639
    %v5100 = vpack.c.b16 %v4644, %v4640
    %v5101 = vpack.c.b16 %v4649, %v4645
    %v5102 = vpack.c.b16 %v4650, %v4646
    %v5103 = vpack.c.b16 %v4651, %v4647
    %v5104 = vpack.c.b16 %v4652, %v4648
    %v5105 = vpack.c.b16 %v4657, %v4653
    %v5106 = vpack.c.b16 %v4658, %v4654
    %v5107 = vpack.c.b16 %v4659, %v4655
    %v5108 = vpack.c.b16 %v4660, %v4656
    %v5109 = vpack.c.b16 %v4665, %v4661
    %v5110 = vpack.c.b16 %v4666, %v4662
    %v5111 = vpack.c.b16 %v4667, %v4663
    %v5112 = vpack.c.b16 %v4668, %v4664
    %v5113 = vpack.c.b16 %v4673, %v4669
    %v5114 = vpack.c.b16 %v4674, %v4670
    %v5115 = vpack.c.b16 %v4675, %v4671
    %v5116 = vpack.c.b16 %v4676, %v4672
    %v5117 = vpack.c.b16 %v4681, %v4677
    %v5118 = vpack.c.b16 %v4682, %v4678
    %v5119 = vpack.c.b16 %v4683, %v4679
    %v5120 = vpack.c.b16 %v4684, %v4680
    %v5121 = vpack.c.b16 %v4689, %v4685
    %v5122 = vpack.c.b16 %v4690, %v4686
    %v5123 = vpack.c.b16 %v4691, %v4687
    %v5124 = vpack.c.b16 %v4692, %v4688
    %v5125 = vpack.c.b16 %v4697, %v4693
    %v5126 = vpack.c.b16 %v4698, %v4694
    %v5127 = vpack.c.b16 %v4699, %v4695
    %v5128 = vpack.c.b16 %v4700, %v4696
    %v5129 = vpack.c.b16 %v4705, %v4701
    %v5130 = vpack.c.b16 %v4706, %v4702
    %v5131 = vpack.c.b16 %v4707, %v4703
    %v5132 = vpack.c.b16 %v4708, %v4704
    %v5133 = vpack.c.b16 %v4713, %v4709
    %v5134 = vpack.c.b16 %v4714, %v4710
    %v5135 = vpack.c.b16 %v4715, %v4711
    %v5136 = vpack.c.b16 %v4716, %v4712
    %v5137 = vpack.c.b16 %v4721, %v4717
    %v5138 = vpack.c.b16 %v4722, %v4718
    %v5139 = vpack.c.b16 %v4723, %v4719
    %v5140 = vpack.c.b16 %v4724, %v4720
    %v5141 = vpack.c.b16 %v4729, %v4725
    %v5142 = vpack.c.b16 %v4730, %v4726
    %v5143 = vpack.c.b16 %v4731, %v4727
    %v5144 = vpack.c.b16 %v4732, %v4728
    %v5145 = vpack.c.b16 %v4737, %v4733
    %v5146 = vpack.c.b16 %v4738, %v4734
    %v5147 = vpack.c.b16 %v4739, %v4735
    %v5148 = vpack.c.b16 %v4740, %v4736
    %v5149 = vpack.c.b16 %v4745, %v4741
    %v5150 = vpack.c.b16 %v4746, %v4742
    %v5151 = vpack.c.b16 %v4747, %v4743
    %v5152 = vpack.c.b16 %v4748, %v4744
    %v5153 = vpack.c.b16 %v4753, %v4749
    %v5154 = vpack.c.b16 %v4754, %v4750
    %v5155 = vpack.c.b16 %v4755, %v4751
    %v5156 = vpack.c.b16 %v4756, %v4752
    %v5157 = vpack.c.b16 %v4761, %v4757
    %v5158 = vpack.c.b16 %v4762, %v4758
    %v5159 = vpack.c.b16 %v4763, %v4759
    %v5160 = vpack.c.b16 %v4764, %v4760
    %v5161 = vpack.c.b16 %v4769, %v4765
    %v5162 = vpack.c.b16 %v4770, %v4766
    %v5163 = vpack.c.b16 %v4771, %v4767
    %v5164 = vpack.c.b16 %v4772, %v4768
    %v5165 = vpack.c.b16 %v4777, %v4773
    %v5166 = vpack.c.b16 %v4778, %v4774
    %v5167 = vpack.c.b16 %v4779, %v4775
    %v5168 = vpack.c.b16 %v4780, %v4776
    %v5169 = vpack.c.b16 %v4785, %v4781
    %v5170 = vpack.c.b16 %v4786, %v4782
    %v5171 = vpack.c.b16 %v4787, %v4783
    %v5172 = vpack.c.b16 %v4788, %v4784
    %v5173 = vpack.c.b16 %v4793, %v4789
    %v5174 = vpack.c.b16 %v4794, %v4790
    %v5175 = vpack.c.b16 %v4795, %v4791
    %v5176 = vpack.c.b16 %v4796, %v4792
    %v5177 = vpack.c.b16 %v4801, %v4797
    %v5178 = vpack.c.b16 %v4802, %v4798
    %v5179 = vpack.c.b16 %v4803, %v4799
    %v5180 = vpack.c.b16 %v4804, %v4800
    %v5181 = vpack.c.b16 %v4809, %v4805
    %v5182 = vpack.c.b16 %v4810, %v4806
    %v5183 = vpack.c.b16 %v4811, %v4807
    %v5184 = vpack.c.b16 %v4812, %v4808
    %v5185 = vpack.c.b16 %v4817, %v4813
    %v5186 = vpack.c.b16 %v4818, %v4814
    %v5187 = vpack.c.b16 %v4819, %v4815
    %v5188 = vpack.c.b16 %v4820, %v4816
    %v5189 = vpack.c.b16 %v4825, %v4821
    %v5190 = vpack.c.b16 %v4826, %v4822
    %v5191 = vpack.c.b16 %v4827, %v4823
    %v5192 = vpack.c.b16 %v4828, %v4824
    %v5193 = vpack.c.b16 %v4833, %v4829
    %v5194 = vpack.c.b16 %v4834, %v4830
    %v5195 = vpack.c.b16 %v4835, %v4831
    %v5196 = vpack.c.b16 %v4836, %v4832
    %v5197 = vpack.c.b16 %v4841, %v4837
    %v5198 = vpack.c.b16 %v4842, %v4838
    %v5199 = vpack.c.b16 %v4843, %v4839
    %v5200 = vpack.c.b16 %v4844, %v4840
    %v5201 = vpack.c.b16 %v4849, %v4845
    %v5202 = vpack.c.b16 %v4850, %v4846
    %v5203 = vpack.c.b16 %v4851, %v4847
    %v5204 = vpack.c.b16 %v4852, %v4848
    %v5205 = vpack.c.b16 %v4857, %v4853
    %v5206 = vpack.c.b16 %v4858, %v4854
    %v5207 = vpack.c.b16 %v4859, %v4855
    %v5208 = vpack.c.b16 %v4860, %v4856
    %v5209 = vpack.c.b16 %v4865, %v4861
    %v5210 = vpack.c.b16 %v4866, %v4862
    %v5211 = vpack.c.b16 %v4867, %v4863
    %v5212 = vpack.c.b16 %v4868, %v4864
    %v5213 = vpack.c.b16 %v4873, %v4869
    %v5214 = vpack.c.b16 %v4874, %v4870
    %v5215 = vpack.c.b16 %v4875, %v4871
    %v5216 = vpack.c.b16 %v4876, %v4872
    %v5217 = vpack.c.b16 %v4881, %v4877
    %v5218 = vpack.c.b16 %v4882, %v4878
    %v5219 = vpack.c.b16 %v4883, %v4879
    %v5220 = vpack.c.b16 %v4884, %v4880
    %v5221 = vpack.c.b16 %v4889, %v4885
    %v5222 = vpack.c.b16 %v4890, %v4886
    %v5223 = vpack.c.b16 %v4891, %v4887
    %v5224 = vpack.c.b16 %v4892, %v4888
    %v5225 = vpack.c.b16 %v4897, %v4893
    %v5226 = vpack.c.b16 %v4898, %v4894
    %v5227 = vpack.c.b16 %v4899, %v4895
    %v5228 = vpack.c.b16 %v4900, %v4896
    %v5229 = vpack.c.b16 %v4905, %v4901
    %v5230 = vpack.c.b16 %v4906, %v4902
    %v5231 = vpack.c.b16 %v4907, %v4903
    %v5232 = vpack.c.b16 %v4908, %v4904
    %v5233 = vpack.c.b16 %v4913, %v4909
    %v5234 = vpack.c.b16 %v4914, %v4910
    %v5235 = vpack.c.b16 %v4915, %v4911
    %v5236 = vpack.c.b16 %v4916, %v4912
    %v5237 = vpack.c.b16 %v4921, %v4917
    %v5238 = vpack.c.b16 %v4922, %v4918
    %v5239 = vpack.c.b16 %v4923, %v4919
    %v5240 = vpack.c.b16 %v4924, %v4920
    %v5241 = vpack.c.b16 %v4929, %v4925
    %v5242 = vpack.c.b16 %v4930, %v4926
    %v5243 = vpack.c.b16 %v4931, %v4927
    %v5244 = vpack.c.b16 %v4932, %v4928
    %v5245 = vpack.c.b16 %v4937, %v4933
    %v5246 = vpack.c.b16 %v4938, %v4934
    %v5247 = vpack.c.b16 %v4939, %v4935
    %v5248 = vpack.c.b16 %v4940, %v4936
    %v5249 = vpack.c.b16 %v4945, %v4941
    %v5250 = vpack.c.b16 %v4946, %v4942
    %v5251 = vpack.c.b16 %v4947, %v4943
    %v5252 = vpack.c.b16 %v4948, %v4944
    %v5253 = vpack.c.b16 %v4953, %v4949
    %v5254 = vpack.c.b16 %v4954, %v4950
    %v5255 = vpack.c.b16 %v4955, %v4951
    %v5256 = vpack.c.b16 %v4956, %v4952
    %v5257 = vpack.c.b16 %v4961, %v4957
    %v5258 = vpack.c.b16 %v4962, %v4958
    %v5259 = vpack.c.b16 %v4963, %v4959
    %v5260 = vpack.c.b16 %v4964, %v4960
    %v5261 = vpack.c.b16 %v4969, %v4965
    %v5262 = vpack.c.b16 %v4970, %v4966
    %v5263 = vpack.c.b16 %v4971, %v4967
    %v5264 = vpack.c.b16 %v4972, %v4968
    %v5265 = vpack.c.b16 %v4977, %v4973
    %v5266 = vpack.c.b16 %v4978, %v4974
    %v5267 = vpack.c.b16 %v4979, %v4975
    %v5268 = vpack.c.b16 %v4980, %v4976
    %v5269 = vpack.c.b16 %v4985, %v4981
    %v5270 = vpack.c.b16 %v4986, %v4982
    %v5271 = vpack.c.b16 %v4987, %v4983
    %v5272 = vpack.c.b16 %v4988, %v4984
    %v5273 = vpack.c.b16 %v4993, %v4989
    %v5274 = vpack.c.b16 %v4994, %v4990
    %v5275 = vpack.c.b16 %v4995, %v4991
    %v5276 = vpack.c.b16 %v4996, %v4992
    %v5277 = vpack.c.b16 %v5001, %v4997
    %v5278 = vpack.c.b16 %v5002, %v4998
    %v5279 = vpack.c.b16 %v5003, %v4999
    %v5280 = vpack.c.b16 %v5004, %v5000
    %v5281 = vpack.c.b16 %v5009, %v5005
    %v5282 = vpack.c.b16 %v5010, %v5006
    %v5283 = vpack.c.b16 %v5011, %v5007
    %v5284 = vpack.c.b16 %v5012, %v5008
    %v5285 = vpack.c.b16 %v5017, %v5013
    %v5286 = vpack.c.b16 %v5018, %v5014
    %v5287 = vpack.c.b16 %v5019, %v5015
    %v5288 = vpack.c.b16 %v5020, %v5016
    %v5289 = vpack.c.b16 %v5025, %v5021
    %v5290 = vpack.c.b16 %v5026, %v5022
    %v5291 = vpack.c.b16 %v5027, %v5023
    %v5292 = vpack.c.b16 %v5028, %v5024
    %v5293 = vpack.c.b16 %v5033, %v5029
    %v5294 = vpack.c.b16 %v5034, %v5030
    %v5295 = vpack.c.b16 %v5035, %v5031
    %v5296 = vpack.c.b16 %v5036, %v5032
    %v5297 = vpack.c.b16 %v5041, %v5037
    %v5298 = vpack.c.b16 %v5042, %v5038
    %v5299 = vpack.c.b16 %v5043, %v5039
    %v5300 = vpack.c.b16 %v5044, %v5040
    %5557 = vmatprep.subr.bf16.mxu0 %v5046
    %5558 = vmatpush1.bf16.msra.mxu0 %v5045
    %5559 = vmatprep.subr.bf16.mxu0 %v5050
    %5560 = vmatpush1.bf16.msra.mxu0 %v5049
    %5561 = vmatprep.subr.bf16.mxu0 %v5054
    %5562 = vmatpush1.bf16.msra.mxu0 %v5053
    %5563 = vmatprep.subr.bf16.mxu0 %v5058
    %5564 = vmatpush1.bf16.msra.mxu0 %v5057
    %5565 = vmatprep.subr.bf16.mxu0 %v5062
    %5566 = vmatpush1.bf16.msra.mxu0 %v5061
    %5567 = vmatprep.subr.bf16.mxu0 %v5066
    %5568 = vmatpush1.bf16.msra.mxu0 %v5065
    %5569 = vmatprep.subr.bf16.mxu0 %v5070
    %5570 = vmatpush1.bf16.msra.mxu0 %v5069
    %5571 = vmatprep.subr.bf16.mxu0 %v5074
    %5572 = vmatpush1.bf16.msra.mxu0 %v5073
    %5573 = vmatprep.subr.bf16.mxu0 %v5078
    %5574 = vmatpush1.bf16.msra.mxu0 %v5077
    %5575 = vmatprep.subr.bf16.mxu0 %v5082
    %5576 = vmatpush1.bf16.msra.mxu0 %v5081
    %5577 = vmatprep.subr.bf16.mxu0 %v5086
    %5578 = vmatpush1.bf16.msra.mxu0 %v5085
    %5579 = vmatprep.subr.bf16.mxu0 %v5090
    %5580 = vmatpush1.bf16.msra.mxu0 %v5089
    %5581 = vmatprep.subr.bf16.mxu0 %v5094
    %5582 = vmatpush1.bf16.msra.mxu0 %v5093
    %5583 = vmatprep.subr.bf16.mxu0 %v5098
    %5584 = vmatpush1.bf16.msra.mxu0 %v5097
    %5585 = vmatprep.subr.bf16.mxu0 %v5102
    %5586 = vmatpush1.bf16.msra.mxu0 %v5101
    %5587 = vmatprep.subr.bf16.mxu0 %v5106
    %5588 = vmatpush1.bf16.msra.mxu0 %v5105
    %5589 = vmatprep.mubr.bf16.mxu0 %v3992
    %5590 = vmatmul.mubr.bf16.gmra.mrb[0].mxu0 %v3991
    %v5591 = vpop.f32.mrb[0].mxu0
    %v5592 = vadd.f32 %v4260, %v5591
    %v5593 = vpop.f32.mrb[0].mxu0
    %v5594 = vadd.f32 %v4264, %v5593
    %v5595 = vpop.f32.mrb[0].mxu0
    %v5596 = vpop.f32.mrb[0].mxu0
    %5597 = vdwg.mxu0
    %5598 = vmatprep.subr.bf16.mxu0 %v5110
    %5599 = vmatpush1.bf16.msra.mxu0 %v5109
    %5600 = vmatprep.subr.bf16.mxu0 %v5114
    %5601 = vmatpush1.bf16.msra.mxu0 %v5113
    %5602 = vmatprep.subr.bf16.mxu0 %v5118
    %5603 = vmatpush1.bf16.msra.mxu0 %v5117
    %5604 = vmatprep.subr.bf16.mxu0 %v5122
    %5605 = vmatpush1.bf16.msra.mxu0 %v5121
    %5606 = vmatprep.subr.bf16.mxu0 %v5126
    %5607 = vmatpush1.bf16.msra.mxu0 %v5125
    %5608 = vmatprep.subr.bf16.mxu0 %v5130
    %5609 = vmatpush1.bf16.msra.mxu0 %v5129
    %5610 = vmatprep.subr.bf16.mxu0 %v5134
    %5611 = vmatpush1.bf16.msra.mxu0 %v5133
    %5612 = vmatprep.subr.bf16.mxu0 %v5138
    %5613 = vmatpush1.bf16.msra.mxu0 %v5137
    %5614 = vmatprep.subr.bf16.mxu0 %v5142
    %5615 = vmatpush1.bf16.msra.mxu0 %v5141
    %5616 = vmatprep.subr.bf16.mxu0 %v5146
    %5617 = vmatpush1.bf16.msra.mxu0 %v5145
    %5618 = vmatprep.subr.bf16.mxu0 %v5150
    %5619 = vmatpush1.bf16.msra.mxu0 %v5149
    %5620 = vmatprep.subr.bf16.mxu0 %v5154
    %5621 = vmatpush1.bf16.msra.mxu0 %v5153
    %5622 = vmatprep.subr.bf16.mxu0 %v5158
    %5623 = vmatpush1.bf16.msra.mxu0 %v5157
    %5624 = vmatprep.subr.bf16.mxu0 %v5162
    %5625 = vmatpush1.bf16.msra.mxu0 %v5161
    %5626 = vmatprep.subr.bf16.mxu0 %v5166
    %5627 = vmatpush1.bf16.msra.mxu0 %v5165
    %5628 = vmatprep.subr.bf16.mxu0 %v5170
    %5629 = vmatpush1.bf16.msra.mxu0 %v5169
    %5630 = vmatprep.mubr.bf16.mxu0 %v3994
    %5631 = vmatmul.mubr.bf16.gmra.mrb[0].mxu0 %v3993
    %v5632 = vpop.f32.mrb[0].mxu0
    %v5633 = vadd.f32 %v5592, %v5632
    %v5634 = vpop.f32.mrb[0].mxu0
    %v5635 = vadd.f32 %v5594, %v5634
    %v5636 = vpop.f32.mrb[0].mxu0
    %v5637 = vpop.f32.mrb[0].mxu0
    %5638 = vdwg.mxu0
    %5639 = vmatprep.subr.bf16.mxu0 %v5174
    %5640 = vmatpush1.bf16.msra.mxu0 %v5173
    %5641 = vmatprep.subr.bf16.mxu0 %v5178
    %5642 = vmatpush1.bf16.msra.mxu0 %v5177
    %5643 = vmatprep.subr.bf16.mxu0 %v5182
    %5644 = vmatpush1.bf16.msra.mxu0 %v5181
    %5645 = vmatprep.subr.bf16.mxu0 %v5186
    %5646 = vmatpush1.bf16.msra.mxu0 %v5185
    %5647 = vmatprep.subr.bf16.mxu0 %v5190
    %5648 = vmatpush1.bf16.msra.mxu0 %v5189
    %5649 = vmatprep.subr.bf16.mxu0 %v5194
    %5650 = vmatpush1.bf16.msra.mxu0 %v5193
    %5651 = vmatprep.subr.bf16.mxu0 %v5198
    %5652 = vmatpush1.bf16.msra.mxu0 %v5197
    %5653 = vmatprep.subr.bf16.mxu0 %v5202
    %5654 = vmatpush1.bf16.msra.mxu0 %v5201
    %5655 = vmatprep.subr.bf16.mxu0 %v5206
    %5656 = vmatpush1.bf16.msra.mxu0 %v5205
    %5657 = vmatprep.subr.bf16.mxu0 %v5210
    %5658 = vmatpush1.bf16.msra.mxu0 %v5209
    %5659 = vmatprep.subr.bf16.mxu0 %v5214
    %5660 = vmatpush1.bf16.msra.mxu0 %v5213
    %5661 = vmatprep.subr.bf16.mxu0 %v5218
    %5662 = vmatpush1.bf16.msra.mxu0 %v5217
    %5663 = vmatprep.subr.bf16.mxu0 %v5222
    %5664 = vmatpush1.bf16.msra.mxu0 %v5221
    %5665 = vmatprep.subr.bf16.mxu0 %v5226
    %5666 = vmatpush1.bf16.msra.mxu0 %v5225
    %5667 = vmatprep.subr.bf16.mxu0 %v5230
    %5668 = vmatpush1.bf16.msra.mxu0 %v5229
    %5669 = vmatprep.subr.bf16.mxu0 %v5234
    %5670 = vmatpush1.bf16.msra.mxu0 %v5233
    %5671 = vmatprep.mubr.bf16.mxu0 %v3996
    %5672 = vmatmul.mubr.bf16.gmra.mrb[0].mxu0 %v3995
    %v5673 = vpop.f32.mrb[0].mxu0
    %v5674 = vadd.f32 %v5633, %v5673
    %v5675 = vpop.f32.mrb[0].mxu0
    %v5676 = vadd.f32 %v5635, %v5675
    %v5677 = vpop.f32.mrb[0].mxu0
    %v5678 = vpop.f32.mrb[0].mxu0
    %5679 = vdwg.mxu0
    %5680 = vmatprep.subr.bf16.mxu0 %v5238
    %5681 = vmatpush1.bf16.msra.mxu0 %v5237
    %5682 = vmatprep.subr.bf16.mxu0 %v5242
    %5683 = vmatpush1.bf16.msra.mxu0 %v5241
    %5684 = vmatprep.subr.bf16.mxu0 %v5246
    %5685 = vmatpush1.bf16.msra.mxu0 %v5245
    %5686 = vmatprep.subr.bf16.mxu0 %v5250
    %5687 = vmatpush1.bf16.msra.mxu0 %v5249
    %5688 = vmatprep.subr.bf16.mxu0 %v5254
    %5689 = vmatpush1.bf16.msra.mxu0 %v5253
    %5690 = vmatprep.subr.bf16.mxu0 %v5258
    %5691 = vmatpush1.bf16.msra.mxu0 %v5257
    %5692 = vmatprep.subr.bf16.mxu0 %v5262
    %5693 = vmatpush1.bf16.msra.mxu0 %v5261
    %5694 = vmatprep.subr.bf16.mxu0 %v5266
    %5695 = vmatpush1.bf16.msra.mxu0 %v5265
    %5696 = vmatprep.subr.bf16.mxu0 %v5270
    %5697 = vmatpush1.bf16.msra.mxu0 %v5269
    %5698 = vmatprep.subr.bf16.mxu0 %v5274
    %5699 = vmatpush1.bf16.msra.mxu0 %v5273
    %5700 = vmatprep.subr.bf16.mxu0 %v5278
    %5701 = vmatpush1.bf16.msra.mxu0 %v5277
    %5702 = vmatprep.subr.bf16.mxu0 %v5282
    %5703 = vmatpush1.bf16.msra.mxu0 %v5281
    %5704 = vmatprep.subr.bf16.mxu0 %v5286
    %5705 = vmatpush1.bf16.msra.mxu0 %v5285
    %5706 = vmatprep.subr.bf16.mxu0 %v5290
    %5707 = vmatpush1.bf16.msra.mxu0 %v5289
    %5708 = vmatprep.subr.bf16.mxu0 %v5294
    %5709 = vmatpush1.bf16.msra.mxu0 %v5293
    %5710 = vmatprep.subr.bf16.mxu0 %v5298
    %5711 = vmatpush1.bf16.msra.mxu0 %v5297
    %5712 = vmatprep.mubr.bf16.mxu0 %v3998
    %5713 = vmatmul.mubr.bf16.gmra.mrb[0].mxu0 %v3997
    %v5714 = vpop.f32.mrb[0].mxu0
    %v5715 = vadd.f32 %v5674, %v5714
    %v5716 = vpop.f32.mrb[0].mxu0
    %v5717 = vadd.f32 %v5676, %v5716
    %v5718 = vpop.f32.mrb[0].mxu0
    %v5719 = vpop.f32.mrb[0].mxu0
    %5720 = vdwg.mxu0
    %5721 = vmatprep.subr.bf16.mxu0 %v5048
    %5722 = vmatpush1.bf16.msra.mxu0 %v5047
    %5723 = vmatprep.subr.bf16.mxu0 %v5052
    %5724 = vmatpush1.bf16.msra.mxu0 %v5051
    %5725 = vmatprep.subr.bf16.mxu0 %v5056
    %5726 = vmatpush1.bf16.msra.mxu0 %v5055
    %5727 = vmatprep.subr.bf16.mxu0 %v5060
    %5728 = vmatpush1.bf16.msra.mxu0 %v5059
    %5729 = vmatprep.subr.bf16.mxu0 %v5064
    %5730 = vmatpush1.bf16.msra.mxu0 %v5063
    %5731 = vmatprep.subr.bf16.mxu0 %v5068
    %5732 = vmatpush1.bf16.msra.mxu0 %v5067
    %5733 = vmatprep.subr.bf16.mxu0 %v5072
    %5734 = vmatpush1.bf16.msra.mxu0 %v5071
    %5735 = vmatprep.subr.bf16.mxu0 %v5076
    %5736 = vmatpush1.bf16.msra.mxu0 %v5075
    %5737 = vmatprep.subr.bf16.mxu0 %v5080
    %5738 = vmatpush1.bf16.msra.mxu0 %v5079
    %5739 = vmatprep.subr.bf16.mxu0 %v5084
    %5740 = vmatpush1.bf16.msra.mxu0 %v5083
    %5741 = vmatprep.subr.bf16.mxu0 %v5088
    %5742 = vmatpush1.bf16.msra.mxu0 %v5087
    %5743 = vmatprep.subr.bf16.mxu0 %v5092
    %5744 = vmatpush1.bf16.msra.mxu0 %v5091
    %5745 = vmatprep.subr.bf16.mxu0 %v5096
    %5746 = vmatpush1.bf16.msra.mxu0 %v5095
    %5747 = vmatprep.subr.bf16.mxu0 %v5100
    %5748 = vmatpush1.bf16.msra.mxu0 %v5099
    %5749 = vmatprep.subr.bf16.mxu0 %v5104
    %5750 = vmatpush1.bf16.msra.mxu0 %v5103
    %5751 = vmatprep.subr.bf16.mxu0 %v5108
    %5752 = vmatpush1.bf16.msra.mxu0 %v5107
    %5753 = vmatprep.mubr.bf16.mxu0 %v3992
    %5754 = vmatmul.mubr.bf16.gmra.mrb[0].mxu0 %v3991
    %v5755 = vpop.f32.mrb[0].mxu0
    %v5756 = vadd.f32 %v4268, %v5755
    %v5757 = vpop.f32.mrb[0].mxu0
    %v5758 = vadd.f32 %v4272, %v5757
    %v5759 = vpop.f32.mrb[0].mxu0
    %v5760 = vpop.f32.mrb[0].mxu0
    %5761 = vdwg.mxu0
    %5762 = vmatprep.subr.bf16.mxu0 %v5112
    %5763 = vmatpush1.bf16.msra.mxu0 %v5111
    %5764 = vmatprep.subr.bf16.mxu0 %v5116
    %5765 = vmatpush1.bf16.msra.mxu0 %v5115
    %5766 = vmatprep.subr.bf16.mxu0 %v5120
    %5767 = vmatpush1.bf16.msra.mxu0 %v5119
    %5768 = vmatprep.subr.bf16.mxu0 %v5124
    %5769 = vmatpush1.bf16.msra.mxu0 %v5123
    %5770 = vmatprep.subr.bf16.mxu0 %v5128
    %5771 = vmatpush1.bf16.msra.mxu0 %v5127
    %5772 = vmatprep.subr.bf16.mxu0 %v5132
    %5773 = vmatpush1.bf16.msra.mxu0 %v5131
    %5774 = vmatprep.subr.bf16.mxu0 %v5136
    %5775 = vmatpush1.bf16.msra.mxu0 %v5135
    %5776 = vmatprep.subr.bf16.mxu0 %v5140
    %5777 = vmatpush1.bf16.msra.mxu0 %v5139
    %5778 = vmatprep.subr.bf16.mxu0 %v5144
    %5779 = vmatpush1.bf16.msra.mxu0 %v5143
    %5780 = vmatprep.subr.bf16.mxu0 %v5148
    %5781 = vmatpush1.bf16.msra.mxu0 %v5147
    %5782 = vmatprep.subr.bf16.mxu0 %v5152
    %5783 = vmatpush1.bf16.msra.mxu0 %v5151
    %5784 = vmatprep.subr.bf16.mxu0 %v5156
    %5785 = vmatpush1.bf16.msra.mxu0 %v5155
    %5786 = vmatprep.subr.bf16.mxu0 %v5160
    %5787 = vmatpush1.bf16.msra.mxu0 %v5159
    %5788 = vmatprep.subr.bf16.mxu0 %v5164
    %5789 = vmatpush1.bf16.msra.mxu0 %v5163
    %5790 = vmatprep.subr.bf16.mxu0 %v5168
    %5791 = vmatpush1.bf16.msra.mxu0 %v5167
    %5792 = vmatprep.subr.bf16.mxu0 %v5172
    %5793 = vmatpush1.bf16.msra.mxu0 %v5171
    %5794 = vmatprep.mubr.bf16.mxu0 %v3994
    %5795 = vmatmul.mubr.bf16.gmra.mrb[0].mxu0 %v3993
    %v5796 = vpop.f32.mrb[0].mxu0
    %v5797 = vadd.f32 %v5756, %v5796
    %v5798 = vpop.f32.mrb[0].mxu0
    %v5799 = vadd.f32 %v5758, %v5798
    %v5800 = vpop.f32.mrb[0].mxu0
    %v5801 = vpop.f32.mrb[0].mxu0
    %5802 = vdwg.mxu0
    %5803 = vmatprep.subr.bf16.mxu0 %v5176
    %5804 = vmatpush1.bf16.msra.mxu0 %v5175
    %5805 = vmatprep.subr.bf16.mxu0 %v5180
    %5806 = vmatpush1.bf16.msra.mxu0 %v5179
    %5807 = vmatprep.subr.bf16.mxu0 %v5184
    %5808 = vmatpush1.bf16.msra.mxu0 %v5183
    %5809 = vmatprep.subr.bf16.mxu0 %v5188
    %5810 = vmatpush1.bf16.msra.mxu0 %v5187
    %5811 = vmatprep.subr.bf16.mxu0 %v5192
    %5812 = vmatpush1.bf16.msra.mxu0 %v5191
    %5813 = vmatprep.subr.bf16.mxu0 %v5196
    %5814 = vmatpush1.bf16.msra.mxu0 %v5195
    %5815 = vmatprep.subr.bf16.mxu0 %v5200
    %5816 = vmatpush1.bf16.msra.mxu0 %v5199
    %5817 = vmatprep.subr.bf16.mxu0 %v5204
    %5818 = vmatpush1.bf16.msra.mxu0 %v5203
    %5819 = vmatprep.subr.bf16.mxu0 %v5208
    %5820 = vmatpush1.bf16.msra.mxu0 %v5207
    %5821 = vmatprep.subr.bf16.mxu0 %v5212
    %5822 = vmatpush1.bf16.msra.mxu0 %v5211
    %5823 = vmatprep.subr.bf16.mxu0 %v5216
    %5824 = vmatpush1.bf16.msra.mxu0 %v5215
    %5825 = vmatprep.subr.bf16.mxu0 %v5220
    %5826 = vmatpush1.bf16.msra.mxu0 %v5219
    %5827 = vmatprep.subr.bf16.mxu0 %v5224
    %5828 = vmatpush1.bf16.msra.mxu0 %v5223
    %5829 = vmatprep.subr.bf16.mxu0 %v5228
    %5830 = vmatpush1.bf16.msra.mxu0 %v5227
    %5831 = vmatprep.subr.bf16.mxu0 %v5232
    %5832 = vmatpush1.bf16.msra.mxu0 %v5231
    %5833 = vmatprep.subr.bf16.mxu0 %v5236
    %5834 = vmatpush1.bf16.msra.mxu0 %v5235
    %5835 = vmatprep.mubr.bf16.mxu0 %v3996
    %5836 = vmatmul.mubr.bf16.gmra.mrb[0].mxu0 %v3995
    %v5837 = vpop.f32.mrb[0].mxu0
    %v5838 = vadd.f32 %v5797, %v5837
    %v5839 = vpop.f32.mrb[0].mxu0
    %v5840 = vadd.f32 %v5799, %v5839
    %v5841 = vpop.f32.mrb[0].mxu0
    %v5842 = vpop.f32.mrb[0].mxu0
    %5843 = vdwg.mxu0
    %5844 = vmatprep.subr.bf16.mxu0 %v5240
    %5845 = vmatpush1.bf16.msra.mxu0 %v5239
    %5846 = vmatprep.subr.bf16.mxu0 %v5244
    %5847 = vmatpush1.bf16.msra.mxu0 %v5243
    %5848 = vmatprep.subr.bf16.mxu0 %v5248
    %5849 = vmatpush1.bf16.msra.mxu0 %v5247
    %5850 = vmatprep.subr.bf16.mxu0 %v5252
    %5851 = vmatpush1.bf16.msra.mxu0 %v5251
    %5852 = vmatprep.subr.bf16.mxu0 %v5256
    %5853 = vmatpush1.bf16.msra.mxu0 %v5255
    %5854 = vmatprep.subr.bf16.mxu0 %v5260
    %5855 = vmatpush1.bf16.msra.mxu0 %v5259
    %5856 = vmatprep.subr.bf16.mxu0 %v5264
    %5857 = vmatpush1.bf16.msra.mxu0 %v5263
    %5858 = vmatprep.subr.bf16.mxu0 %v5268
    %5859 = vmatpush1.bf16.msra.mxu0 %v5267
    %5860 = vmatprep.subr.bf16.mxu0 %v5272
    %5861 = vmatpush1.bf16.msra.mxu0 %v5271
    %5862 = vmatprep.subr.bf16.mxu0 %v5276
    %5863 = vmatpush1.bf16.msra.mxu0 %v5275
    %5864 = vmatprep.subr.bf16.mxu0 %v5280
    %5865 = vmatpush1.bf16.msra.mxu0 %v5279
    %5866 = vmatprep.subr.bf16.mxu0 %v5284
    %5867 = vmatpush1.bf16.msra.mxu0 %v5283
    %5868 = vmatprep.subr.bf16.mxu0 %v5288
    %5869 = vmatpush1.bf16.msra.mxu0 %v5287
    %5870 = vmatprep.subr.bf16.mxu0 %v5292
    %5871 = vmatpush1.bf16.msra.mxu0 %v5291
    %5872 = vmatprep.subr.bf16.mxu0 %v5296
    %5873 = vmatpush1.bf16.msra.mxu0 %v5295
    %5874 = vmatprep.subr.bf16.mxu0 %v5300
    %5875 = vmatpush1.bf16.msra.mxu0 %v5299
    %5876 = vmatprep.mubr.bf16.mxu0 %v3998
    %5877 = vmatmul.mubr.bf16.gmra.mrb[0].mxu0 %v3997
    %v5878 = vpop.f32.mrb[0].mxu0
    %v5879 = vadd.f32 %v5838, %v5878
    %v5880 = vpop.f32.mrb[0].mxu0
    %v5881 = vadd.f32 %v5840, %v5880
    %v5882 = vpop.f32.mrb[0].mxu0
    %v5883 = vpop.f32.mrb[0].mxu0
    %5884 = vdwg.mxu0
    %vm5885 = vcmp.gt.f32.partialorder %v5715, 0.0
    %vm5886 = vcmp.gt.f32.partialorder %v5717, 0.0
    %vm5887 = vcmp.gt.f32.partialorder %v5879, 0.0
    %vm5888 = vcmp.gt.f32.partialorder %v5881, 0.0
    %v5889 = vmul.f32 %v5715, 0.2
    %v5890 = vmul.f32 %v5717, 0.2
    %v5891 = vmul.f32 %v5879, 0.2
    %v5892 = vmul.f32 %v5881, 0.2
    %v5893 = vsel %vm5885, %v5715, %v5889
    %v5894 = vsel %vm5886, %v5717, %v5890
    %v5895 = vsel %vm5887, %v5879, %v5891
    %v5896 = vsel %vm5888, %v5881, %v5892
    %v5897 = vpack.c.bf16 %v5893, %v5893
    %v5898 = vpack.c.bf16 %v5894, %v5894
    %v5899 = vpack.c.bf16 %v5895, %v5895
    %v5900 = vpack.c.bf16 %v5896, %v5896
    %v5901 = vld [vmem:[#allocation9] sm:$0xff]
    %v5902 = vld [vmem:[#allocation9 + $0x8] sm:$0xff]
    %v5903 = vld [vmem:[#allocation9 + $0x10] sm:$0xff]
    %v5904 = vld [vmem:[#allocation9 + $0x18] sm:$0xff]
    %v5905 = vld [vmem:[#allocation9 + $0x20] sm:$0xff]
    %v5906 = vld [vmem:[#allocation9 + $0x28] sm:$0xff]
    %v5907 = vld [vmem:[#allocation9 + $0x30] sm:$0xff]
    %v5908 = vld [vmem:[#allocation9 + $0x38] sm:$0xff]
    %v5909 = vld [vmem:[#allocation9 + $0x40] sm:$0xff]
    %v5910 = vld [vmem:[#allocation9 + $0x48] sm:$0xff]
    %v5911 = vld [vmem:[#allocation9 + $0x50] sm:$0xff]
    %v5912 = vld [vmem:[#allocation9 + $0x58] sm:$0xff]
    %v5913 = vld [vmem:[#allocation9 + $0x60] sm:$0xff]
    %v5914 = vld [vmem:[#allocation9 + $0x68] sm:$0xff]
    %v5915 = vld [vmem:[#allocation9 + $0x70] sm:$0xff]
    %v5916 = vld [vmem:[#allocation9 + $0x78] sm:$0xff]
    %v5917 = vld [vmem:[#allocation9 + $0x80] sm:$0xff]
    %v5918 = vld [vmem:[#allocation9 + $0x88] sm:$0xff]
    %v5919 = vld [vmem:[#allocation9 + $0x90] sm:$0xff]
    %v5920 = vld [vmem:[#allocation9 + $0x98] sm:$0xff]
    %v5921 = vld [vmem:[#allocation9 + $0xa0] sm:$0xff]
    %v5922 = vld [vmem:[#allocation9 + $0xa8] sm:$0xff]
    %v5923 = vld [vmem:[#allocation9 + $0xb0] sm:$0xff]
    %v5924 = vld [vmem:[#allocation9 + $0xb8] sm:$0xff]
    %v5925 = vld [vmem:[#allocation9 + $0xc0] sm:$0xff]
    %v5926 = vld [vmem:[#allocation9 + $0xc8] sm:$0xff]
    %v5927 = vld [vmem:[#allocation9 + $0xd0] sm:$0xff]
    %v5928 = vld [vmem:[#allocation9 + $0xd8] sm:$0xff]
    %v5929 = vld [vmem:[#allocation9 + $0xe0] sm:$0xff]
    %v5930 = vld [vmem:[#allocation9 + $0xe8] sm:$0xff]
    %v5931 = vld [vmem:[#allocation9 + $0xf0] sm:$0xff]
    %v5932 = vld [vmem:[#allocation9 + $0xf8] sm:$0xff]
    %v5933 = vld [vmem:[#allocation9 + $0x100] sm:$0xff]
    %v5934 = vld [vmem:[#allocation9 + $0x108] sm:$0xff]
    %v5935 = vld [vmem:[#allocation9 + $0x110] sm:$0xff]
    %v5936 = vld [vmem:[#allocation9 + $0x118] sm:$0xff]
    %v5937 = vld [vmem:[#allocation9 + $0x120] sm:$0xff]
    %v5938 = vld [vmem:[#allocation9 + $0x128] sm:$0xff]
    %v5939 = vld [vmem:[#allocation9 + $0x130] sm:$0xff]
    %v5940 = vld [vmem:[#allocation9 + $0x138] sm:$0xff]
    %v5941 = vld [vmem:[#allocation9 + $0x140] sm:$0xff]
    %v5942 = vld [vmem:[#allocation9 + $0x148] sm:$0xff]
    %v5943 = vld [vmem:[#allocation9 + $0x150] sm:$0xff]
    %v5944 = vld [vmem:[#allocation9 + $0x158] sm:$0xff]
    %v5945 = vld [vmem:[#allocation9 + $0x160] sm:$0xff]
    %v5946 = vld [vmem:[#allocation9 + $0x168] sm:$0xff]
    %v5947 = vld [vmem:[#allocation9 + $0x170] sm:$0xff]
    %v5948 = vld [vmem:[#allocation9 + $0x178] sm:$0xff]
    %v5949 = vld [vmem:[#allocation9 + $0x180] sm:$0xff]
    %v5950 = vld [vmem:[#allocation9 + $0x188] sm:$0xff]
    %v5951 = vld [vmem:[#allocation9 + $0x190] sm:$0xff]
    %v5952 = vld [vmem:[#allocation9 + $0x198] sm:$0xff]
    %v5953 = vld [vmem:[#allocation9 + $0x1a0] sm:$0xff]
    %v5954 = vld [vmem:[#allocation9 + $0x1a8] sm:$0xff]
    %v5955 = vld [vmem:[#allocation9 + $0x1b0] sm:$0xff]
    %v5956 = vld [vmem:[#allocation9 + $0x1b8] sm:$0xff]
    %v5957 = vld [vmem:[#allocation9 + $0x1c0] sm:$0xff]
    %v5958 = vld [vmem:[#allocation9 + $0x1c8] sm:$0xff]
    %v5959 = vld [vmem:[#allocation9 + $0x1d0] sm:$0xff]
    %v5960 = vld [vmem:[#allocation9 + $0x1d8] sm:$0xff]
    %v5961 = vld [vmem:[#allocation9 + $0x1e0] sm:$0xff]
    %v5962 = vld [vmem:[#allocation9 + $0x1e8] sm:$0xff]
    %v5963 = vld [vmem:[#allocation9 + $0x1f0] sm:$0xff]
    %v5964 = vld [vmem:[#allocation9 + $0x1f8] sm:$0xff]
    %v5965 = vld [vmem:[#allocation10] sm:$0x3]
    %v5967 = vlaneseq
    %v5968 = vshrl.u32 %v5967, 7
    %v5969 = vsub.s32 0, %v5968
    %v5970 = vrot.slane %v5965, %v5969
    %v5971 = vlaneseq
    %v5972 = vshrl.u32 %v5971, 7
    %v5973 = vsub.s32 1, %v5972
    %v5974 = vrot.slane %v5965, %v5973
    %v6041 = vunpack.c.l.b16 %v5901
    %v6042 = vunpack.c.h.b16 %v5901
    %v6043 = vunpack.c.l.b16 %v5902
    %v6044 = vunpack.c.h.b16 %v5902
    %v6045 = vunpack.c.l.b16 %v5903
    %v6046 = vunpack.c.h.b16 %v5903
    %v6047 = vunpack.c.l.b16 %v5904
    %v6048 = vunpack.c.h.b16 %v5904
    %v6049 = vunpack.c.l.b16 %v5905
    %v6050 = vunpack.c.h.b16 %v5905
    %v6051 = vunpack.c.l.b16 %v5906
    %v6052 = vunpack.c.h.b16 %v5906
    %v6053 = vunpack.c.l.b16 %v5907
    %v6054 = vunpack.c.h.b16 %v5907
    %v6055 = vunpack.c.l.b16 %v5908
    %v6056 = vunpack.c.h.b16 %v5908
    %v6057 = vunpack.c.l.b16 %v5909
    %v6058 = vunpack.c.h.b16 %v5909
    %v6059 = vunpack.c.l.b16 %v5910
    %v6060 = vunpack.c.h.b16 %v5910
    %v6061 = vunpack.c.l.b16 %v5911
    %v6062 = vunpack.c.h.b16 %v5911
    %v6063 = vunpack.c.l.b16 %v5912
    %v6064 = vunpack.c.h.b16 %v5912
    %v6065 = vunpack.c.l.b16 %v5913
    %v6066 = vunpack.c.h.b16 %v5913
    %v6067 = vunpack.c.l.b16 %v5914
    %v6068 = vunpack.c.h.b16 %v5914
    %v6069 = vunpack.c.l.b16 %v5915
    %v6070 = vunpack.c.h.b16 %v5915
    %v6071 = vunpack.c.l.b16 %v5916
    %v6072 = vunpack.c.h.b16 %v5916
    %v6073 = vunpack.c.l.b16 %v5917
    %v6074 = vunpack.c.h.b16 %v5917
    %v6075 = vunpack.c.l.b16 %v5918
    %v6076 = vunpack.c.h.b16 %v5918
    %v6077 = vunpack.c.l.b16 %v5919
    %v6078 = vunpack.c.h.b16 %v5919
    %v6079 = vunpack.c.l.b16 %v5920
    %v6080 = vunpack.c.h.b16 %v5920
    %v6081 = vunpack.c.l.b16 %v5921
    %v6082 = vunpack.c.h.b16 %v5921
    %v6083 = vunpack.c.l.b16 %v5922
    %v6084 = vunpack.c.h.b16 %v5922
    %v6085 = vunpack.c.l.b16 %v5923
    %v6086 = vunpack.c.h.b16 %v5923
    %v6087 = vunpack.c.l.b16 %v5924
    %v6088 = vunpack.c.h.b16 %v5924
    %v6089 = vunpack.c.l.b16 %v5925
    %v6090 = vunpack.c.h.b16 %v5925
    %v6091 = vunpack.c.l.b16 %v5926
    %v6092 = vunpack.c.h.b16 %v5926
    %v6093 = vunpack.c.l.b16 %v5927
    %v6094 = vunpack.c.h.b16 %v5927
    %v6095 = vunpack.c.l.b16 %v5928
    %v6096 = vunpack.c.h.b16 %v5928
    %v6097 = vunpack.c.l.b16 %v5929
    %v6098 = vunpack.c.h.b16 %v5929
    %v6099 = vunpack.c.l.b16 %v5930
    %v6100 = vunpack.c.h.b16 %v5930
    %v6101 = vunpack.c.l.b16 %v5931
    %v6102 = vunpack.c.h.b16 %v5931
    %v6103 = vunpack.c.l.b16 %v5932
    %v6104 = vunpack.c.h.b16 %v5932
    %v6105 = vunpack.c.l.b16 %v5933
    %v6106 = vunpack.c.h.b16 %v5933
    %v6107 = vunpack.c.l.b16 %v5934
    %v6108 = vunpack.c.h.b16 %v5934
    %v6109 = vunpack.c.l.b16 %v5935
    %v6110 = vunpack.c.h.b16 %v5935
    %v6111 = vunpack.c.l.b16 %v5936
    %v6112 = vunpack.c.h.b16 %v5936
    %v6113 = vunpack.c.l.b16 %v5937
    %v6114 = vunpack.c.h.b16 %v5937
    %v6115 = vunpack.c.l.b16 %v5938
    %v6116 = vunpack.c.h.b16 %v5938
    %v6117 = vunpack.c.l.b16 %v5939
    %v6118 = vunpack.c.h.b16 %v5939
    %v6119 = vunpack.c.l.b16 %v5940
    %v6120 = vunpack.c.h.b16 %v5940
    %v6121 = vunpack.c.l.b16 %v5941
    %v6122 = vunpack.c.h.b16 %v5941
    %v6123 = vunpack.c.l.b16 %v5942
    %v6124 = vunpack.c.h.b16 %v5942
    %v6125 = vunpack.c.l.b16 %v5943
    %v6126 = vunpack.c.h.b16 %v5943
    %v6127 = vunpack.c.l.b16 %v5944
    %v6128 = vunpack.c.h.b16 %v5944
    %v6129 = vunpack.c.l.b16 %v5945
    %v6130 = vunpack.c.h.b16 %v5945
    %v6131 = vunpack.c.l.b16 %v5946
    %v6132 = vunpack.c.h.b16 %v5946
    %v6133 = vunpack.c.l.b16 %v5947
    %v6134 = vunpack.c.h.b16 %v5947
    %v6135 = vunpack.c.l.b16 %v5948
    %v6136 = vunpack.c.h.b16 %v5948
    %v6137 = vunpack.c.l.b16 %v5949
    %v6138 = vunpack.c.h.b16 %v5949
    %v6139 = vunpack.c.l.b16 %v5950
    %v6140 = vunpack.c.h.b16 %v5950
    %v6141 = vunpack.c.l.b16 %v5951
    %v6142 = vunpack.c.h.b16 %v5951
    %v6143 = vunpack.c.l.b16 %v5952
    %v6144 = vunpack.c.h.b16 %v5952
    %v6145 = vunpack.c.l.b16 %v5953
    %v6146 = vunpack.c.h.b16 %v5953
    %v6147 = vunpack.c.l.b16 %v5954
    %v6148 = vunpack.c.h.b16 %v5954
    %v6149 = vunpack.c.l.b16 %v5955
    %v6150 = vunpack.c.h.b16 %v5955
    %v6151 = vunpack.c.l.b16 %v5956
    %v6152 = vunpack.c.h.b16 %v5956
    %v6153 = vunpack.c.l.b16 %v5957
    %v6154 = vunpack.c.h.b16 %v5957
    %v6155 = vunpack.c.l.b16 %v5958
    %v6156 = vunpack.c.h.b16 %v5958
    %v6157 = vunpack.c.l.b16 %v5959
    %v6158 = vunpack.c.h.b16 %v5959
    %v6159 = vunpack.c.l.b16 %v5960
    %v6160 = vunpack.c.h.b16 %v5960
    %v6161 = vunpack.c.l.b16 %v5961
    %v6162 = vunpack.c.h.b16 %v5961
    %v6163 = vunpack.c.l.b16 %v5962
    %v6164 = vunpack.c.h.b16 %v5962
    %v6165 = vunpack.c.l.b16 %v5963
    %v6166 = vunpack.c.h.b16 %v5963
    %v6167 = vunpack.c.l.b16 %v5964
    %v6168 = vunpack.c.h.b16 %v5964
    %v6169 = vpack.c.b16 %v6043, %v6041
    %v6170 = vpack.c.b16 %v6044, %v6042
    %v6171 = vpack.c.b16 %v6047, %v6045
    %v6172 = vpack.c.b16 %v6048, %v6046
    %v6173 = vpack.c.b16 %v6051, %v6049
    %v6174 = vpack.c.b16 %v6052, %v6050
    %v6175 = vpack.c.b16 %v6055, %v6053
    %v6176 = vpack.c.b16 %v6056, %v6054
    %v6177 = vpack.c.b16 %v6059, %v6057
    %v6178 = vpack.c.b16 %v6060, %v6058
    %v6179 = vpack.c.b16 %v6063, %v6061
    %v6180 = vpack.c.b16 %v6064, %v6062
    %v6181 = vpack.c.b16 %v6067, %v6065
    %v6182 = vpack.c.b16 %v6068, %v6066
    %v6183 = vpack.c.b16 %v6071, %v6069
    %v6184 = vpack.c.b16 %v6072, %v6070
    %v6185 = vpack.c.b16 %v6075, %v6073
    %v6186 = vpack.c.b16 %v6076, %v6074
    %v6187 = vpack.c.b16 %v6079, %v6077
    %v6188 = vpack.c.b16 %v6080, %v6078
    %v6189 = vpack.c.b16 %v6083, %v6081
    %v6190 = vpack.c.b16 %v6084, %v6082
    %v6191 = vpack.c.b16 %v6087, %v6085
    %v6192 = vpack.c.b16 %v6088, %v6086
    %v6193 = vpack.c.b16 %v6091, %v6089
    %v6194 = vpack.c.b16 %v6092, %v6090
    %v6195 = vpack.c.b16 %v6095, %v6093
    %v6196 = vpack.c.b16 %v6096, %v6094
    %v6197 = vpack.c.b16 %v6099, %v6097
    %v6198 = vpack.c.b16 %v6100, %v6098
    %v6199 = vpack.c.b16 %v6103, %v6101
    %v6200 = vpack.c.b16 %v6104, %v6102
    %v6201 = vpack.c.b16 %v6107, %v6105
    %v6202 = vpack.c.b16 %v6108, %v6106
    %v6203 = vpack.c.b16 %v6111, %v6109
    %v6204 = vpack.c.b16 %v6112, %v6110
    %v6205 = vpack.c.b16 %v6115, %v6113
    %v6206 = vpack.c.b16 %v6116, %v6114
    %v6207 = vpack.c.b16 %v6119, %v6117
    %v6208 = vpack.c.b16 %v6120, %v6118
    %v6209 = vpack.c.b16 %v6123, %v6121
    %v6210 = vpack.c.b16 %v6124, %v6122
    %v6211 = vpack.c.b16 %v6127, %v6125
    %v6212 = vpack.c.b16 %v6128, %v6126
    %v6213 = vpack.c.b16 %v6131, %v6129
    %v6214 = vpack.c.b16 %v6132, %v6130
    %v6215 = vpack.c.b16 %v6135, %v6133
    %v6216 = vpack.c.b16 %v6136, %v6134
    %v6217 = vpack.c.b16 %v6139, %v6137
    %v6218 = vpack.c.b16 %v6140, %v6138
    %v6219 = vpack.c.b16 %v6143, %v6141
    %v6220 = vpack.c.b16 %v6144, %v6142
    %v6221 = vpack.c.b16 %v6147, %v6145
    %v6222 = vpack.c.b16 %v6148, %v6146
    %v6223 = vpack.c.b16 %v6151, %v6149
    %v6224 = vpack.c.b16 %v6152, %v6150
    %v6225 = vpack.c.b16 %v6155, %v6153
    %v6226 = vpack.c.b16 %v6156, %v6154
    %v6227 = vpack.c.b16 %v6159, %v6157
    %v6228 = vpack.c.b16 %v6160, %v6158
    %v6229 = vpack.c.b16 %v6163, %v6161
    %v6230 = vpack.c.b16 %v6164, %v6162
    %v6231 = vpack.c.b16 %v6167, %v6165
    %v6232 = vpack.c.b16 %v6168, %v6166
    %6297 = vmatprep.subr.bf16.mxu0 %v6170
    %6298 = vmatpush1.bf16.msra.mxu0 %v6169
    %6299 = vmatprep.subr.bf16.mxu0 %v6172
    %6300 = vmatpush1.bf16.msra.mxu0 %v6171
    %6301 = vmatprep.subr.bf16.mxu0 %v6174
    %6302 = vmatpush1.bf16.msra.mxu0 %v6173
    %6303 = vmatprep.subr.bf16.mxu0 %v6176
    %6304 = vmatpush1.bf16.msra.mxu0 %v6175
    %6305 = vmatprep.subr.bf16.mxu0 %v6178
    %6306 = vmatpush1.bf16.msra.mxu0 %v6177
    %6307 = vmatprep.subr.bf16.mxu0 %v6180
    %6308 = vmatpush1.bf16.msra.mxu0 %v6179
    %6309 = vmatprep.subr.bf16.mxu0 %v6182
    %6310 = vmatpush1.bf16.msra.mxu0 %v6181
    %6311 = vmatprep.subr.bf16.mxu0 %v6184
    %6312 = vmatpush1.bf16.msra.mxu0 %v6183
    %6313 = vmatprep.subr.bf16.mxu0 %v6186
    %6314 = vmatpush1.bf16.msra.mxu0 %v6185
    %6315 = vmatprep.subr.bf16.mxu0 %v6188
    %6316 = vmatpush1.bf16.msra.mxu0 %v6187
    %6317 = vmatprep.subr.bf16.mxu0 %v6190
    %6318 = vmatpush1.bf16.msra.mxu0 %v6189
    %6319 = vmatprep.subr.bf16.mxu0 %v6192
    %6320 = vmatpush1.bf16.msra.mxu0 %v6191
    %6321 = vmatprep.subr.bf16.mxu0 %v6194
    %6322 = vmatpush1.bf16.msra.mxu0 %v6193
    %6323 = vmatprep.subr.bf16.mxu0 %v6196
    %6324 = vmatpush1.bf16.msra.mxu0 %v6195
    %6325 = vmatprep.subr.bf16.mxu0 %v6198
    %6326 = vmatpush1.bf16.msra.mxu0 %v6197
    %6327 = vmatprep.subr.bf16.mxu0 %v6200
    %6328 = vmatpush1.bf16.msra.mxu0 %v6199
    %6329 = vmatprep.mubr.bf16.mxu0 %v5898
    %6330 = vmatmul.mubr.bf16.gmra.mrb[0].mxu0 %v5897
    %v6331 = vpop.f32.mrb[0].mxu0
    %v6332 = vadd.f32 %v5970, %v6331
    %v6333 = vpop.f32.mrb[0].mxu0
    %v6334 = vadd.f32 %v5974, %v6333
    %v6335 = vpop.f32.mrb[0].mxu0
    %v6336 = vpop.f32.mrb[0].mxu0
    %6337 = vdwg.mxu0
    %6338 = vmatprep.subr.bf16.mxu0 %v6202
    %6339 = vmatpush1.bf16.msra.mxu0 %v6201
    %6340 = vmatprep.subr.bf16.mxu0 %v6204
    %6341 = vmatpush1.bf16.msra.mxu0 %v6203
    %6342 = vmatprep.subr.bf16.mxu0 %v6206
    %6343 = vmatpush1.bf16.msra.mxu0 %v6205
    %6344 = vmatprep.subr.bf16.mxu0 %v6208
    %6345 = vmatpush1.bf16.msra.mxu0 %v6207
    %6346 = vmatprep.subr.bf16.mxu0 %v6210
    %6347 = vmatpush1.bf16.msra.mxu0 %v6209
    %6348 = vmatprep.subr.bf16.mxu0 %v6212
    %6349 = vmatpush1.bf16.msra.mxu0 %v6211
    %6350 = vmatprep.subr.bf16.mxu0 %v6214
    %6351 = vmatpush1.bf16.msra.mxu0 %v6213
    %6352 = vmatprep.subr.bf16.mxu0 %v6216
    %6353 = vmatpush1.bf16.msra.mxu0 %v6215
    %6354 = vmatprep.subr.bf16.mxu0 %v6218
    %6355 = vmatpush1.bf16.msra.mxu0 %v6217
    %6356 = vmatprep.subr.bf16.mxu0 %v6220
    %6357 = vmatpush1.bf16.msra.mxu0 %v6219
    %6358 = vmatprep.subr.bf16.mxu0 %v6222
    %6359 = vmatpush1.bf16.msra.mxu0 %v6221
    %6360 = vmatprep.subr.bf16.mxu0 %v6224
    %6361 = vmatpush1.bf16.msra.mxu0 %v6223
    %6362 = vmatprep.subr.bf16.mxu0 %v6226
    %6363 = vmatpush1.bf16.msra.mxu0 %v6225
    %6364 = vmatprep.subr.bf16.mxu0 %v6228
    %6365 = vmatpush1.bf16.msra.mxu0 %v6227
    %6366 = vmatprep.subr.bf16.mxu0 %v6230
    %6367 = vmatpush1.bf16.msra.mxu0 %v6229
    %6368 = vmatprep.subr.bf16.mxu0 %v6232
    %6369 = vmatpush1.bf16.msra.mxu0 %v6231
    %6370 = vmatprep.mubr.bf16.mxu0 %v5900
    %6371 = vmatmul.mubr.bf16.gmra.mrb[0].mxu0 %v5899
    %v6372 = vpop.f32.mrb[0].mxu0
    %v6373 = vadd.f32 %v6332, %v6372
    %v6374 = vpop.f32.mrb[0].mxu0
    %v6375 = vadd.f32 %v6334, %v6374
    %v6376 = vpop.f32.mrb[0].mxu0
    %v6377 = vpop.f32.mrb[0].mxu0
    %6378 = vdwg.mxu0
    %vm6379 = vcmp.gt.f32.partialorder %v6373, 0.0
    %vm6380 = vcmp.gt.f32.partialorder %v6375, 0.0
    %v6381 = vmul.f32 %v6373, 0.2
    %v6382 = vmul.f32 %v6375, 0.2
    %v6383 = vsel %vm6379, %v6373, %v6381
    %v6384 = vsel %vm6380, %v6375, %v6382
    %v6385 = vpack.c.bf16 %v6383, %v6383
    %v6386 = vpack.c.bf16 %v6384, %v6384
    %v6387 = vld [vmem:[#allocation12] sm:$0xf]
    %v6388 = vld [vmem:[#allocation12 + $0x4] sm:$0xf]
    %v6389 = vld [vmem:[#allocation12 + $0x8] sm:$0xf]
    %v6390 = vld [vmem:[#allocation12 + $0xc] sm:$0xf]
    %v6391 = vld [vmem:[#allocation12 + $0x10] sm:$0xf]
    %v6392 = vld [vmem:[#allocation12 + $0x14] sm:$0xf]
    %v6393 = vld [vmem:[#allocation12 + $0x18] sm:$0xf]
    %v6394 = vld [vmem:[#allocation12 + $0x1c] sm:$0xf]
    %v6395 = vld [vmem:[#allocation12 + $0x20] sm:$0xf]
    %v6396 = vld [vmem:[#allocation12 + $0x24] sm:$0xf]
    %v6397 = vld [vmem:[#allocation12 + $0x28] sm:$0xf]
    %v6398 = vld [vmem:[#allocation12 + $0x2c] sm:$0xf]
    %v6399 = vld [vmem:[#allocation12 + $0x30] sm:$0xf]
    %v6400 = vld [vmem:[#allocation12 + $0x34] sm:$0xf]
    %v6401 = vld [vmem:[#allocation12 + $0x38] sm:$0xf]
    %v6402 = vld [vmem:[#allocation12 + $0x3c] sm:$0xf]
    %v6403 = vld [vmem:[#allocation12 + $0x40] sm:$0xf]
    %v6404 = vld [vmem:[#allocation12 + $0x44] sm:$0xf]
    %v6405 = vld [vmem:[#allocation12 + $0x48] sm:$0xf]
    %v6406 = vld [vmem:[#allocation12 + $0x4c] sm:$0xf]
    %v6407 = vld [vmem:[#allocation12 + $0x50] sm:$0xf]
    %v6408 = vld [vmem:[#allocation12 + $0x54] sm:$0xf]
    %v6409 = vld [vmem:[#allocation12 + $0x58] sm:$0xf]
    %v6410 = vld [vmem:[#allocation12 + $0x5c] sm:$0xf]
    %v6411 = vld [vmem:[#allocation12 + $0x60] sm:$0xf]
    %v6412 = vld [vmem:[#allocation12 + $0x64] sm:$0xf]
    %v6413 = vld [vmem:[#allocation12 + $0x68] sm:$0xf]
    %v6414 = vld [vmem:[#allocation12 + $0x6c] sm:$0xf]
    %v6415 = vld [vmem:[#allocation12 + $0x70] sm:$0xf]
    %v6416 = vld [vmem:[#allocation12 + $0x74] sm:$0xf]
    %v6417 = vld [vmem:[#allocation12 + $0x78] sm:$0xf]
    %v6418 = vld [vmem:[#allocation12 + $0x7c] sm:$0xf]
    %v6419 = vld [vmem:[#allocation13] sm:$0x1]
    %v6421 = vlaneseq
    %v6422 = vshrl.u32 %v6421, 7
    %v6423 = vsub.s32 0, %v6422
    %v6424 = vrot.slane %v6419, %v6423
    %v6458 = vunpack.c.l.b16 %v6387
    %v6459 = vunpack.c.l.b16 %v6388
    %v6460 = vunpack.c.l.b16 %v6389
    %v6461 = vunpack.c.l.b16 %v6390
    %v6462 = vunpack.c.l.b16 %v6391
    %v6463 = vunpack.c.l.b16 %v6392
    %v6464 = vunpack.c.l.b16 %v6393
    %v6465 = vunpack.c.l.b16 %v6394
    %v6466 = vunpack.c.l.b16 %v6395
    %v6467 = vunpack.c.l.b16 %v6396
    %v6468 = vunpack.c.l.b16 %v6397
    %v6469 = vunpack.c.l.b16 %v6398
    %v6470 = vunpack.c.l.b16 %v6399
    %v6471 = vunpack.c.l.b16 %v6400
    %v6472 = vunpack.c.l.b16 %v6401
    %v6473 = vunpack.c.l.b16 %v6402
    %v6474 = vunpack.c.l.b16 %v6403
    %v6475 = vunpack.c.l.b16 %v6404
    %v6476 = vunpack.c.l.b16 %v6405
    %v6477 = vunpack.c.l.b16 %v6406
    %v6478 = vunpack.c.l.b16 %v6407
    %v6479 = vunpack.c.l.b16 %v6408
    %v6480 = vunpack.c.l.b16 %v6409
    %v6481 = vunpack.c.l.b16 %v6410
    %v6482 = vunpack.c.l.b16 %v6411
    %v6483 = vunpack.c.l.b16 %v6412
    %v6484 = vunpack.c.l.b16 %v6413
    %v6485 = vunpack.c.l.b16 %v6414
    %v6486 = vunpack.c.l.b16 %v6415
    %v6487 = vunpack.c.l.b16 %v6416
    %v6488 = vunpack.c.l.b16 %v6417
    %v6489 = vunpack.c.l.b16 %v6418
    %v6490 = vpack.c.b16 %v6459, %v6458
    %v6491 = vpack.c.b16 %v6461, %v6460
    %v6492 = vpack.c.b16 %v6463, %v6462
    %v6493 = vpack.c.b16 %v6465, %v6464
    %v6494 = vpack.c.b16 %v6467, %v6466
    %v6495 = vpack.c.b16 %v6469, %v6468
    %v6496 = vpack.c.b16 %v6471, %v6470
    %v6497 = vpack.c.b16 %v6473, %v6472
    %v6498 = vpack.c.b16 %v6475, %v6474
    %v6499 = vpack.c.b16 %v6477, %v6476
    %v6500 = vpack.c.b16 %v6479, %v6478
    %v6501 = vpack.c.b16 %v6481, %v6480
    %v6502 = vpack.c.b16 %v6483, %v6482
    %v6503 = vpack.c.b16 %v6485, %v6484
    %v6504 = vpack.c.b16 %v6487, %v6486
    %v6505 = vpack.c.b16 %v6489, %v6488
    %6522 = vmatprep.subr.bf16.mxu0 0
    %6523 = vmatpush1.bf16.msra.mxu0 %v6490
    %6524 = vmatprep.subr.bf16.mxu0 0
    %6525 = vmatpush1.bf16.msra.mxu0 %v6491
    %6526 = vmatprep.subr.bf16.mxu0 0
    %6527 = vmatpush1.bf16.msra.mxu0 %v6492
    %6528 = vmatprep.subr.bf16.mxu0 0
    %6529 = vmatpush1.bf16.msra.mxu0 %v6493
    %6530 = vmatprep.subr.bf16.mxu0 0
    %6531 = vmatpush1.bf16.msra.mxu0 %v6494
    %6532 = vmatprep.subr.bf16.mxu0 0
    %6533 = vmatpush1.bf16.msra.mxu0 %v6495
    %6534 = vmatprep.subr.bf16.mxu0 0
    %6535 = vmatpush1.bf16.msra.mxu0 %v6496
    %6536 = vmatprep.subr.bf16.mxu0 0
    %6537 = vmatpush1.bf16.msra.mxu0 %v6497
    %6538 = vmatprep.subr.bf16.mxu0 0
    %6539 = vmatpush1.bf16.msra.mxu0 %v6498
    %6540 = vmatprep.subr.bf16.mxu0 0
    %6541 = vmatpush1.bf16.msra.mxu0 %v6499
    %6542 = vmatprep.subr.bf16.mxu0 0
    %6543 = vmatpush1.bf16.msra.mxu0 %v6500
    %6544 = vmatprep.subr.bf16.mxu0 0
    %6545 = vmatpush1.bf16.msra.mxu0 %v6501
    %6546 = vmatprep.subr.bf16.mxu0 0
    %6547 = vmatpush1.bf16.msra.mxu0 %v6502
    %6548 = vmatprep.subr.bf16.mxu0 0
    %6549 = vmatpush1.bf16.msra.mxu0 %v6503
    %6550 = vmatprep.subr.bf16.mxu0 0
    %6551 = vmatpush1.bf16.msra.mxu0 %v6504
    %6552 = vmatprep.subr.bf16.mxu0 0
    %6553 = vmatpush1.bf16.msra.mxu0 %v6505
    %6554 = vmatprep.mubr.bf16.mxu0 %v6386
    %6555 = vmatmul.mubr.bf16.gmra.mrb[0].mxu0 %v6385
    %v6556 = vpop.f32.mrb[0].mxu0
    %v6557 = vadd.f32 %v6424, %v6556
    %v6558 = vpop.f32.mrb[0].mxu0
    %v6559 = vpop.f32.mrb[0].mxu0
    %v6560 = vpop.f32.mrb[0].mxu0
    %6561 = vdwg.mxu0
    %vm6562 = vcmp.gt.f32.partialorder %v6557, 0.0
    %v6563 = vmul.f32 %v6557, 0.2
    %v6564 = vsel %vm6562, %v6557, %v6563
    %v6565 = vpack.c.bf16 %v6564, %v6564
    %v6566 = vld [vmem:[#allocation15] sm:$0xf]
    %v6567 = vld [vmem:[#allocation15 + $0x4] sm:$0xf]
    %v6568 = vld [vmem:[#allocation15 + $0x8] sm:$0xf]
    %v6569 = vld [vmem:[#allocation15 + $0xc] sm:$0xf]
    %v6570 = vld [vmem:[#allocation15 + $0x10] sm:$0xf]
    %v6571 = vld [vmem:[#allocation15 + $0x14] sm:$0xf]
    %v6572 = vld [vmem:[#allocation15 + $0x18] sm:$0xf]
    %v6573 = vld [vmem:[#allocation15 + $0x1c] sm:$0xf]
    %v6574 = vld [vmem:[#allocation15 + $0x20] sm:$0xf]
    %v6575 = vld [vmem:[#allocation15 + $0x24] sm:$0xf]
    %v6576 = vld [vmem:[#allocation15 + $0x28] sm:$0xf]
    %v6577 = vld [vmem:[#allocation15 + $0x2c] sm:$0xf]
    %v6578 = vld [vmem:[#allocation15 + $0x30] sm:$0xf]
    %v6579 = vld [vmem:[#allocation15 + $0x34] sm:$0xf]
    %v6580 = vld [vmem:[#allocation15 + $0x38] sm:$0xf]
    %v6581 = vld [vmem:[#allocation15 + $0x3c] sm:$0xf]
    %v6582 = vld [vmem:[#allocation16] sm:$0x1]
    %v6584 = vlaneseq
    %v6585 = vshrl.u32 %v6584, 7
    %v6586 = vsub.s32 0, %v6585
    %v6587 = vrot.slane %v6582, %v6586
    %v6605 = vunpack.c.l.b16 %v6566
    %v6606 = vunpack.c.l.b16 %v6567
    %v6607 = vunpack.c.l.b16 %v6568
    %v6608 = vunpack.c.l.b16 %v6569
    %v6609 = vunpack.c.l.b16 %v6570
    %v6610 = vunpack.c.l.b16 %v6571
    %v6611 = vunpack.c.l.b16 %v6572
    %v6612 = vunpack.c.l.b16 %v6573
    %v6613 = vunpack.c.l.b16 %v6574
    %v6614 = vunpack.c.l.b16 %v6575
    %v6615 = vunpack.c.l.b16 %v6576
    %v6616 = vunpack.c.l.b16 %v6577
    %v6617 = vunpack.c.l.b16 %v6578
    %v6618 = vunpack.c.l.b16 %v6579
    %v6619 = vunpack.c.l.b16 %v6580
    %v6620 = vunpack.c.l.b16 %v6581
    %v6621 = vpack.c.b16 %v6606, %v6605
    %v6622 = vpack.c.b16 %v6608, %v6607
    %v6623 = vpack.c.b16 %v6610, %v6609
    %v6624 = vpack.c.b16 %v6612, %v6611
    %v6625 = vpack.c.b16 %v6614, %v6613
    %v6626 = vpack.c.b16 %v6616, %v6615
    %v6627 = vpack.c.b16 %v6618, %v6617
    %v6628 = vpack.c.b16 %v6620, %v6619
    %6637 = vmatprep.subr.bf16.mxu0 0
    %6638 = vmatpush1.bf16.msra.mxu0 %v6621
    %6639 = vmatprep.subr.bf16.mxu0 0
    %6640 = vmatpush1.bf16.msra.mxu0 %v6622
    %6641 = vmatprep.subr.bf16.mxu0 0
    %6642 = vmatpush1.bf16.msra.mxu0 %v6623
    %6643 = vmatprep.subr.bf16.mxu0 0
    %6644 = vmatpush1.bf16.msra.mxu0 %v6624
    %6645 = vmatprep.subr.bf16.mxu0 0
    %6646 = vmatpush1.bf16.msra.mxu0 %v6625
    %6647 = vmatprep.subr.bf16.mxu0 0
    %6648 = vmatpush1.bf16.msra.mxu0 %v6626
    %6649 = vmatprep.subr.bf16.mxu0 0
    %6650 = vmatpush1.bf16.msra.mxu0 %v6627
    %6651 = vmatprep.subr.bf16.mxu0 0
    %6652 = vmatpush1.bf16.msra.mxu0 %v6628
    %6653 = vmatprep.subr.bf16.mxu0 0
    %6654 = vmatpush1.bf16.msra.mxu0 0
    %6655 = vmatprep.subr.bf16.mxu0 0
    %6656 = vmatpush1.bf16.msra.mxu0 0
    %6657 = vmatprep.subr.bf16.mxu0 0
    %6658 = vmatpush1.bf16.msra.mxu0 0
    %6659 = vmatprep.subr.bf16.mxu0 0
    %6660 = vmatpush1.bf16.msra.mxu0 0
    %6661 = vmatprep.subr.bf16.mxu0 0
    %6662 = vmatpush1.bf16.msra.mxu0 0
    %6663 = vmatprep.subr.bf16.mxu0 0
    %6664 = vmatpush1.bf16.msra.mxu0 0
    %6665 = vmatprep.subr.bf16.mxu0 0
    %6666 = vmatpush1.bf16.msra.mxu0 0
    %6667 = vmatprep.subr.bf16.mxu0 0
    %6668 = vmatpush1.bf16.msra.mxu0 0
    %6669 = vmatprep.mubr.bf16.mxu0 0
    %6670 = vmatmul.mubr.bf16.gmra.mrb[0].mxu0 %v6565
    %v6671 = vpop.f32.mrb[0].mxu0
    %v6672 = vadd.f32 %v6587, %v6671
    %v6673 = vpop.f32.mrb[0].mxu0
    %v6674 = vpop.f32.mrb[0].mxu0
    %v6675 = vpop.f32.mrb[0].mxu0
    %6676 = vdwg.mxu0
    %6677 = vst [vmem:[%s11] sm:$0xff] %v6672
    // Predicated region
    $region86: #{discriminator_forward.1} parent=1 // pred_check
      _
    $region87: #{discriminator_forward.1} parent=1 // pred_check_branch
      %6679 = sbr.rel (0) target = $region89
    $region88: #{discriminator_forward.1} parent=1 // pred_region
      _
    $region89: #{discriminator_forward.1} parent=1 // pred_fallthru
      _
    // Predicated region
    $region90: #{discriminator_forward.1} parent=1 // pred_check
      _
    $region91: #{discriminator_forward.1} parent=1 // pred_check_branch
      %6681 = sbr.rel (0) target = $region93
    $region92: #{discriminator_forward.1} parent=1 // pred_region
      _
    $region93: #{discriminator_forward.1} parent=1 // pred_fallthru
      _
    %6682 = vsyncpa [#allocation3], 1
    %6683 = vsyncpa [#allocation5], 1
    %6684 = vsyncpa [#allocation8], 1
    %6685 = vsyncpa [#allocation11], 1
    %6686 = vsyncpa [#allocation14], 1
    %6687 = vsyncpa [#allocation17], 1

</llo_original>
